<compile_context>
chip_gen: v7x
topology: tpu7x:2x2x1
jax: 0.10.0
libtpu: 0.0.40
codegen_flags: <defaults>
</compile_context>

<pallas_src>
import functools

import jax
import jax.numpy as jnp
from jax import lax
from jax.experimental import pallas as pl
from jax.experimental.pallas import tpu as pltpu


def _fused_cnn_kernel(x_ref, w1_ref, w2_ref, w3_ref, w4_ref,
                      sb1_ref, sb2_ref, sb3_ref, sb4_ref, o_ref,
                      pad_ref, patch_ref, *, H, W, acts):
    """One batch element: x (1, Cin0, H*W) -> out (1, Cout, H*W), 4 fused layers."""
    HW = H * W
    pstart = W + 1                       # activation origin inside pad_ref

    # Horizontal (image-column) boundary masks. Vertical boundaries are
    # handled by the zero rows built into pad_ref.
    col = lax.broadcasted_iota(jnp.int32, (1, HW), 1) % W
    mask_l = (col != 0).astype(jnp.float32)          # taps with dx == 0
    mask_r = (col != W - 1).astype(jnp.float32)      # taps with dx == 2

    # Zero the padded staging buffer once per invocation (halo stays zero;
    # the interior is overwritten each layer before being read).
    pad_ref[...] = jnp.zeros_like(pad_ref)

    def conv_bn_act(act, w_ref, sb_ref, act_name):
        cin = act.shape[0]
        # Stage activation into the zero-padded buffer: one zero row above and
        # below plus one guard lane on each side, flattened along lanes.
        pad_ref[0:cin, pstart:pstart + HW] = act

        # im2col: 9 statically shifted views -> (9*cin, HW) patches scratch.
        for k in range(9):
            dy, dx = k // 3, k % 3
            start = dy * W + dx
            piece = pad_ref[0:cin, start:start + HW]      # (cin, HW)
            if dx == 0:
                piece = piece * mask_l
            elif dx == 2:
                piece = piece * mask_r
            patch_ref[k * cin:(k + 1) * cin, :] = piece

        # Single MXU matmul per layer: (cout, 9*cin) @ (9*cin, HW), f32 acc.
        acc = jnp.dot(w_ref[...], patch_ref[0:9 * cin, :],
                      preferred_element_type=jnp.float32)

        # Folded (eval-mode) BatchNorm + activation epilogue, f32.
        y = acc * sb_ref[0] + sb_ref[1]                   # sb_ref[i]: (cout, 1)
        if act_name == "relu":
            return jnp.maximum(y, 0.0)
        return jax.nn.sigmoid(y)

    a = x_ref[0, :, :]                                    # (Cin0, H*W)
    layer_params = ((w1_ref, sb1_ref), (w2_ref, sb2_ref),
                    (w3_ref, sb3_ref), (w4_ref, sb4_ref))
    for (w_ref, sb_ref), act_name in zip(layer_params, acts):
        a = conv_bn_act(a, w_ref, sb_ref, act_name)
    o_ref[0, :, :] = a.astype(o_ref.dtype)


def _prep_params(params):
    """HWIO weights / folded BN -> kernel-layout weights and scale-bias."""
    w2ds, sbs = [], []
    for (w_hwio, scale, bias) in params:
        kh, kw, cin, cout = w_hwio.shape
        # (3,3,Cin,Cout) -> (Cout, 9*Cin) with contraction order (dy, dx, ci),
        # matching the im2col row order built in the kernel.
        w2d = jnp.transpose(w_hwio, (3, 0, 1, 2)).reshape(cout, kh * kw * cin)
        sb = jnp.stack([scale, bias], axis=0).reshape(2, cout, 1)
        w2ds.append(w2d)
        sbs.append(sb)
    return w2ds, sbs


def cnnnet_forward(x_nchw, params):
    N, C0, H, W = x_nchw.shape
    HW = H * W
    x2 = x_nchw.reshape(N, C0, HW)                       # NCHW -> (N, C, H*W): free
    w2ds, sbs = _prep_params(params)
    cout_final = w2ds[-1].shape[0]
    cmax = max([C0] + [w.shape[0] for w in w2ds])        # max channel count
    acts = ("relu", "relu", "relu", "sigmoid")

    kernel = functools.partial(_fused_cnn_kernel, H=H, W=W, acts=acts)

    out = pl.pallas_call(
        kernel,
        out_shape=jax.ShapeDtypeStruct((N, cout_final, HW), jnp.float32),
        grid_spec=pltpu.PrefetchScalarGridSpec(
            num_scalar_prefetch=0,
            grid=(N,),
            in_specs=(
                [pl.BlockSpec((1, C0, HW), lambda n: (n, 0, 0))]
                + [pl.BlockSpec(w.shape, lambda n: (0, 0)) for w in w2ds]
                + [pl.BlockSpec(s.shape, lambda n: (0, 0, 0)) for s in sbs]),
            out_specs=pl.BlockSpec((1, cout_final, HW), lambda n: (n, 0, 0)),
            scratch_shapes=[
                pltpu.VMEM((cmax, (H + 2) * W + 2), jnp.float32),  # padded act
                pltpu.VMEM((9 * cmax, HW), jnp.float32),           # im2col patches
            ],
        ),
        compiler_params=pltpu.CompilerParams(
            dimension_semantics=("parallel",)),            # batch over TCs (v7x)
    )(x2, *w2ds, *sbs)
    return out.reshape(N, cout_final, H, W)               # (N,C,H*W) -> NCHW: free


def _fold_bn(conv_bias, gamma, beta, mean, var, eps=1e-5):
    """Fold conv bias + eval-mode BatchNorm into per-channel scale/bias."""
    scale = gamma / jnp.sqrt(var + eps)
    bias = beta + scale * (conv_bias - mean)
    return scale, bias


def _make_layer_params(key, cin, cout):
    kw, kb, kg, kbt, km, kv = jax.random.split(key, 6)
    w = jax.random.normal(kw, (3, 3, cin, cout), jnp.float32) * 0.1   # HWIO
    b = jax.random.normal(kb, (cout,), jnp.float32) * 0.05
    gamma = 1.0 + 0.1 * jax.random.normal(kg, (cout,), jnp.float32)
    beta = 0.05 * jax.random.normal(kbt, (cout,), jnp.float32)
    mean = 0.05 * jax.random.normal(km, (cout,), jnp.float32)
    var = 1.0 + 0.1 * jax.random.uniform(kv, (cout,), jnp.float32)
    scale, bias = _fold_bn(b, gamma, beta, mean, var)
    return w, scale, bias


def cnnnet_reference(x_nchw, params):
    """Pure-JAX reference (lax.conv) for correctness check."""
    x = jnp.transpose(x_nchw, (0, 2, 3, 1))
    acts = ["relu", "relu", "relu", "sigmoid"]
    for (w, s, b), act in zip(params, acts):
        dn = lax.conv_dimension_numbers(x.shape, w.shape, ("NHWC", "HWIO", "NHWC"))
        y = lax.conv_general_dilated(x, w, (1, 1), "SAME", dimension_numbers=dn)
        y = y * s[None, None, None, :] + b[None, None, None, :]
        x = jnp.maximum(y, 0.0) if act == "relu" else jax.nn.sigmoid(y)
    return jnp.transpose(x, (0, 3, 1, 2))


if __name__ == "__main__":
    key = jax.random.PRNGKey(0)
    kx, k1, k2, k3, k4 = jax.random.split(key, 5)

    # Input (PyTorch NCHW): batch=2, channels=3 (fixed by the module), spatial=16.
    x = jax.random.normal(kx, (2, 3, 16, 16), jnp.float32)

    # conv1: 3->16, conv2: 16->32, conv6: 32->16, conv7: 16->3
    params = [
        _make_layer_params(k1, 3, 16),
        _make_layer_params(k2, 16, 32),
        _make_layer_params(k3, 32, 16),
        _make_layer_params(k4, 16, 3),
    ]
    # TODO(synk): BatchNorm is implemented in eval mode (running stats folded
    # into per-channel scale/bias); training-mode batch statistics are not computed.

    fwd = jax.jit(cnnnet_forward)
    out = jax.block_until_ready(fwd(x, params))

    ref = cnnnet_reference(x, params)
    assert out.shape == (2, 3, 16, 16)
    assert jnp.max(jnp.abs(out - ref)) < 1e-4

    print("KERNEL_OK")
</pallas_src>

<mosaic_0001>
module attributes {stable_mosaic.version = 11 : i64} {
  func.func @_fused_cnn_kernel(%arg0: i32, %arg1: memref<1x3x256xf32, #tpu.memory_space<vmem>>, %arg2: memref<16x27xf32, #tpu.memory_space<vmem>>, %arg3: memref<32x144xf32, #tpu.memory_space<vmem>>, %arg4: memref<16x288xf32, #tpu.memory_space<vmem>>, %arg5: memref<3x144xf32, #tpu.memory_space<vmem>>, %arg6: memref<2x16x1xf32, #tpu.memory_space<vmem>>, %arg7: memref<2x32x1xf32, #tpu.memory_space<vmem>>, %arg8: memref<2x16x1xf32, #tpu.memory_space<vmem>>, %arg9: memref<2x3x1xf32, #tpu.memory_space<vmem>>, %arg10: memref<1x3x256xf32, #tpu.memory_space<vmem>>, %arg11: memref<32x290xf32, #tpu.memory_space<vmem>>, %arg12: memref<288x256xf32, #tpu.memory_space<vmem>>) attributes {dimension_semantics = [#tpu.dimension_semantics<parallel>], iteration_bounds = array<i64: 2>, scalar_prefetch = 0 : i64, scratch_operands = 2 : i64, tpu.core_type = #tpu.core_type<tc>, window_params = [{transform_indices = @transform_0, window_bounds = array<i64: 1, 3, 256>}, {pipeline_mode = #tpu.pipeline_mode<synchronous>, transform_indices = @transform_1, window_bounds = array<i64: 16, 27>}, {pipeline_mode = #tpu.pipeline_mode<synchronous>, transform_indices = @transform_2, window_bounds = array<i64: 32, 144>}, {pipeline_mode = #tpu.pipeline_mode<synchronous>, transform_indices = @transform_3, window_bounds = array<i64: 16, 288>}, {pipeline_mode = #tpu.pipeline_mode<synchronous>, transform_indices = @transform_4, window_bounds = array<i64: 3, 144>}, {pipeline_mode = #tpu.pipeline_mode<synchronous>, transform_indices = @transform_5, window_bounds = array<i64: 2, 16, 1>}, {pipeline_mode = #tpu.pipeline_mode<synchronous>, transform_indices = @transform_6, window_bounds = array<i64: 2, 32, 1>}, {pipeline_mode = #tpu.pipeline_mode<synchronous>, transform_indices = @transform_7, window_bounds = array<i64: 2, 16, 1>}, {pipeline_mode = #tpu.pipeline_mode<synchronous>, transform_indices = @transform_8, window_bounds = array<i64: 2, 3, 1>}, {transform_indices = @transform_9, window_bounds = array<i64: 1, 3, 256>}]} {
    %0 = tpu.iota {dimensions = array<i32: 1>} : vector<1x256xi32>
    %c16_i32 = arith.constant 16 : i32
    %c0_i32 = arith.constant 0 : i32
    %1 = arith.cmpi eq, %c16_i32, %c0_i32 : i32
    %c1_i32 = arith.constant 1 : i32
    %2 = arith.select %1, %c1_i32, %c16_i32 : i32
    %3 = vector.broadcast %2 : i32 to vector<1x256xi32>
    %4 = arith.remsi %0, %3 : vector<1x256xi32>
    %c0_i32_0 = arith.constant 0 : i32
    %5 = vector.broadcast %c0_i32_0 : i32 to vector<1x256xi32>
    %6 = arith.cmpi ne, %4, %5 : vector<1x256xi32>
    %c0_i32_1 = arith.constant 0 : i32
    %7 = vector.broadcast %c0_i32_1 : i32 to vector<1x256xi32>
    %8 = arith.cmpi slt, %4, %7 : vector<1x256xi32>
    %c0_i32_2 = arith.constant 0 : i32
    %9 = arith.cmpi slt, %2, %c0_i32_2 : i32
    %10 = vector.broadcast %9 : i1 to vector<1x256xi1>
    %11 = vector.broadcast %10 : vector<1x256xi1> to vector<1x256xi1>
    %12 = arith.xori %8, %11 : vector<1x256xi1>
    %13 = arith.andi %12, %6 : vector<1x256xi1>
    %14 = vector.broadcast %2 : i32 to vector<1x256xi32>
    %15 = arith.addi %4, %14 : vector<1x256xi32>
    %16 = arith.select %13, %15, %4 : vector<1x256xi1>, vector<1x256xi32>
    %c0_i32_3 = arith.constant 0 : i32
    %17 = vector.broadcast %c0_i32_3 : i32 to vector<1x256xi32>
    %18 = arith.cmpi ne, %16, %17 : vector<1x256xi32>
    %19 = arith.extui %18 : vector<1x256xi1> to vector<1x256xi32>
    %20 = arith.sitofp %19 : vector<1x256xi32> to vector<1x256xf32>
    %c15_i32 = arith.constant 15 : i32
    %21 = vector.broadcast %c15_i32 : i32 to vector<1x256xi32>
    %22 = arith.cmpi ne, %16, %21 : vector<1x256xi32>
    %23 = arith.extui %22 : vector<1x256xi1> to vector<1x256xi32>
    %24 = arith.sitofp %23 : vector<1x256xi32> to vector<1x256xf32>
    %cst = arith.constant 0.000000e+00 : f32
    %25 = vector.broadcast %cst : f32 to vector<32x290xf32>
    %c0 = arith.constant 0 : index
    %c0_4 = arith.constant 0 : index
    %26 = vector.load %arg11[%c0, %c0_4] : memref<32x290xf32, #tpu.memory_space<vmem>>, vector<32x290xf32>
    tpu.vector_store %arg11[%c0, %c0_4], %25 {strides = array<i32>} : memref<32x290xf32, #tpu.memory_space<vmem>>, vector<32x290xf32>,
    %c0_5 = arith.constant 0 : index
    %c0_6 = arith.constant 0 : index
    %c0_7 = arith.constant 0 : index
    %27 = vector.load %arg1[%c0_5, %c0_6, %c0_7] : memref<1x3x256xf32, #tpu.memory_space<vmem>>, vector<1x3x256xf32>
    %28 = vector.shape_cast %27 : vector<1x3x256xf32> to vector<3x256xf32>
    %c0_8 = arith.constant 0 : index
    %c17 = arith.constant 17 : index
    %29 = vector.load %arg11[%c0_8, %c17] : memref<32x290xf32, #tpu.memory_space<vmem>>, vector<3x256xf32>
    tpu.vector_store %arg11[%c0_8, %c17], %28 {strides = array<i32>} : memref<32x290xf32, #tpu.memory_space<vmem>>, vector<3x256xf32>,
    %c0_9 = arith.constant 0 : index
    %c0_10 = arith.constant 0 : index
    %30 = vector.load %arg11[%c0_9, %c0_10] : memref<32x290xf32, #tpu.memory_space<vmem>>, vector<3x256xf32>
    %31 = vector.broadcast %20 : vector<1x256xf32> to vector<3x256xf32>
    %32 = arith.mulf %30, %31 : vector<3x256xf32>
    %c0_11 = arith.constant 0 : index
    %c0_12 = arith.constant 0 : index
    %33 = vector.load %arg12[%c0_11, %c0_12] : memref<288x256xf32, #tpu.memory_space<vmem>>, vector<3x256xf32>
    tpu.vector_store %arg12[%c0_11, %c0_12], %32 {strides = array<i32>} : memref<288x256xf32, #tpu.memory_space<vmem>>, vector<3x256xf32>,
    %c0_13 = arith.constant 0 : index
    %c1 = arith.constant 1 : index
    %34 = vector.load %arg11[%c0_13, %c1] : memref<32x290xf32, #tpu.memory_space<vmem>>, vector<3x256xf32>
    %c3 = arith.constant 3 : index
    %c0_14 = arith.constant 0 : index
    %35 = vector.load %arg12[%c3, %c0_14] : memref<288x256xf32, #tpu.memory_space<vmem>>, vector<3x256xf32>
    tpu.vector_store %arg12[%c3, %c0_14], %34 {strides = array<i32>} : memref<288x256xf32, #tpu.memory_space<vmem>>, vector<3x256xf32>,
    %c0_15 = arith.constant 0 : index
    %c2 = arith.constant 2 : index
    %36 = vector.load %arg11[%c0_15, %c2] : memref<32x290xf32, #tpu.memory_space<vmem>>, vector<3x256xf32>
    %37 = vector.broadcast %24 : vector<1x256xf32> to vector<3x256xf32>
    %38 = arith.mulf %36, %37 : vector<3x256xf32>
    %c6 = arith.constant 6 : index
    %c0_16 = arith.constant 0 : index
    %39 = vector.load %arg12[%c6, %c0_16] : memref<288x256xf32, #tpu.memory_space<vmem>>, vector<3x256xf32>
    tpu.vector_store %arg12[%c6, %c0_16], %38 {strides = array<i32>} : memref<288x256xf32, #tpu.memory_space<vmem>>, vector<3x256xf32>,
    %c0_17 = arith.constant 0 : index
    %c16 = arith.constant 16 : index
    %40 = vector.load %arg11[%c0_17, %c16] : memref<32x290xf32, #tpu.memory_space<vmem>>, vector<3x256xf32>
    %41 = vector.broadcast %20 : vector<1x256xf32> to vector<3x256xf32>
    %42 = arith.mulf %40, %41 : vector<3x256xf32>
    %c9 = arith.constant 9 : index
    %c0_18 = arith.constant 0 : index
    %43 = vector.load %arg12[%c9, %c0_18] : memref<288x256xf32, #tpu.memory_space<vmem>>, vector<3x256xf32>
    tpu.vector_store %arg12[%c9, %c0_18], %42 {strides = array<i32>} : memref<288x256xf32, #tpu.memory_space<vmem>>, vector<3x256xf32>,
    %c0_19 = arith.constant 0 : index
    %c17_20 = arith.constant 17 : index
    %44 = vector.load %arg11[%c0_19, %c17_20] : memref<32x290xf32, #tpu.memory_space<vmem>>, vector<3x256xf32>
    %c12 = arith.constant 12 : index
    %c0_21 = arith.constant 0 : index
    %45 = vector.load %arg12[%c12, %c0_21] : memref<288x256xf32, #tpu.memory_space<vmem>>, vector<3x256xf32>
    tpu.vector_store %arg12[%c12, %c0_21], %44 {strides = array<i32>} : memref<288x256xf32, #tpu.memory_space<vmem>>, vector<3x256xf32>,
    %c0_22 = arith.constant 0 : index
    %c18 = arith.constant 18 : index
    %46 = vector.load %arg11[%c0_22, %c18] : memref<32x290xf32, #tpu.memory_space<vmem>>, vector<3x256xf32>
    %47 = vector.broadcast %24 : vector<1x256xf32> to vector<3x256xf32>
    %48 = arith.mulf %46, %47 : vector<3x256xf32>
    %c15 = arith.constant 15 : index
    %c0_23 = arith.constant 0 : index
    %49 = vector.load %arg12[%c15, %c0_23] : memref<288x256xf32, #tpu.memory_space<vmem>>, vector<3x256xf32>
    tpu.vector_store %arg12[%c15, %c0_23], %48 {strides = array<i32>} : memref<288x256xf32, #tpu.memory_space<vmem>>, vector<3x256xf32>,
    %c0_24 = arith.constant 0 : index
    %c32 = arith.constant 32 : index
    %50 = vector.load %arg11[%c0_24, %c32] : memref<32x290xf32, #tpu.memory_space<vmem>>, vector<3x256xf32>
    %51 = vector.broadcast %20 : vector<1x256xf32> to vector<3x256xf32>
    %52 = arith.mulf %50, %51 : vector<3x256xf32>
    %c18_25 = arith.constant 18 : index
    %c0_26 = arith.constant 0 : index
    %53 = vector.load %arg12[%c18_25, %c0_26] : memref<288x256xf32, #tpu.memory_space<vmem>>, vector<3x256xf32>
    tpu.vector_store %arg12[%c18_25, %c0_26], %52 {strides = array<i32>} : memref<288x256xf32, #tpu.memory_space<vmem>>, vector<3x256xf32>,
    %c0_27 = arith.constant 0 : index
    %c33 = arith.constant 33 : index
    %54 = vector.load %arg11[%c0_27, %c33] : memref<32x290xf32, #tpu.memory_space<vmem>>, vector<3x256xf32>
    %c21 = arith.constant 21 : index
    %c0_28 = arith.constant 0 : index
    %55 = vector.load %arg12[%c21, %c0_28] : memref<288x256xf32, #tpu.memory_space<vmem>>, vector<3x256xf32>
    tpu.vector_store %arg12[%c21, %c0_28], %54 {strides = array<i32>} : memref<288x256xf32, #tpu.memory_space<vmem>>, vector<3x256xf32>,
    %c0_29 = arith.constant 0 : index
    %c34 = arith.constant 34 : index
    %56 = vector.load %arg11[%c0_29, %c34] : memref<32x290xf32, #tpu.memory_space<vmem>>, vector<3x256xf32>
    %57 = vector.broadcast %24 : vector<1x256xf32> to vector<3x256xf32>
    %58 = arith.mulf %56, %57 : vector<3x256xf32>
    %c24 = arith.constant 24 : index
    %c0_30 = arith.constant 0 : index
    %59 = vector.load %arg12[%c24, %c0_30] : memref<288x256xf32, #tpu.memory_space<vmem>>, vector<3x256xf32>
    tpu.vector_store %arg12[%c24, %c0_30], %58 {strides = array<i32>} : memref<288x256xf32, #tpu.memory_space<vmem>>, vector<3x256xf32>,
    %c0_31 = arith.constant 0 : index
    %c0_32 = arith.constant 0 : index
    %60 = vector.load %arg2[%c0_31, %c0_32] : memref<16x27xf32, #tpu.memory_space<vmem>>, vector<16x27xf32>
    %c0_33 = arith.constant 0 : index
    %c0_34 = arith.constant 0 : index
    %61 = vector.load %arg12[%c0_33, %c0_34] : memref<288x256xf32, #tpu.memory_space<vmem>>, vector<27x256xf32>
    %cst_35 = arith.constant dense<0.000000e+00> : vector<16x256xf32>
    %62 = tpu.matmul %60, %61, %cst_35 {dimension_numbers = #tpu.dot_dimension_numbers<[1], [0], [0], [1], [0, 0, 1, 1], [], []>} : vector<16x27xf32>, vector<27x256xf32>, vector<16x256xf32> -> vector<16x256xf32>
    %c0_36 = arith.constant 0 : index
    %c0_37 = arith.constant 0 : index
    %c0_38 = arith.constant 0 : index
    %63 = vector.load %arg6[%c0_36, %c0_37, %c0_38] : memref<2x16x1xf32, #tpu.memory_space<vmem>>, vector<1x16x1xf32>
    %64 = vector.shape_cast %63 : vector<1x16x1xf32> to vector<16x1xf32>
    %65 = vector.broadcast %64 : vector<16x1xf32> to vector<16x256xf32>
    %66 = arith.mulf %62, %65 : vector<16x256xf32>
    %c1_39 = arith.constant 1 : index
    %c0_40 = arith.constant 0 : index
    %c0_41 = arith.constant 0 : index
    %67 = vector.load %arg6[%c1_39, %c0_40, %c0_41] : memref<2x16x1xf32, #tpu.memory_space<vmem>>, vector<1x16x1xf32>
    %68 = vector.shape_cast %67 : vector<1x16x1xf32> to vector<16x1xf32>
    %69 = vector.broadcast %68 : vector<16x1xf32> to vector<16x256xf32>
    %70 = arith.addf %66, %69 : vector<16x256xf32>
    %cst_42 = arith.constant 0.000000e+00 : f32
    %71 = vector.broadcast %cst_42 : f32 to vector<16x256xf32>
    %72 = arith.maximumf %70, %71 : vector<16x256xf32>
    %c0_43 = arith.constant 0 : index
    %c17_44 = arith.constant 17 : index
    %73 = vector.load %arg11[%c0_43, %c17_44] : memref<32x290xf32, #tpu.memory_space<vmem>>, vector<16x256xf32>
    tpu.vector_store %arg11[%c0_43, %c17_44], %72 {strides = array<i32>} : memref<32x290xf32, #tpu.memory_space<vmem>>, vector<16x256xf32>,
    %c0_45 = arith.constant 0 : index
    %c0_46 = arith.constant 0 : index
    %74 = vector.load %arg11[%c0_45, %c0_46] : memref<32x290xf32, #tpu.memory_space<vmem>>, vector<16x256xf32>
    %75 = vector.broadcast %20 : vector<1x256xf32> to vector<16x256xf32>
    %76 = arith.mulf %74, %75 : vector<16x256xf32>
    %c0_47 = arith.constant 0 : index
    %c0_48 = arith.constant 0 : index
    %77 = vector.load %arg12[%c0_47, %c0_48] : memref<288x256xf32, #tpu.memory_space<vmem>>, vector<16x256xf32>
    tpu.vector_store %arg12[%c0_47, %c0_48], %76 {strides = array<i32>} : memref<288x256xf32, #tpu.memory_space<vmem>>, vector<16x256xf32>,
    %c0_49 = arith.constant 0 : index
    %c1_50 = arith.constant 1 : index
    %78 = vector.load %arg11[%c0_49, %c1_50] : memref<32x290xf32, #tpu.memory_space<vmem>>, vector<16x256xf32>
    %c16_51 = arith.constant 16 : index
    %c0_52 = arith.constant 0 : index
    %79 = vector.load %arg12[%c16_51, %c0_52] : memref<288x256xf32, #tpu.memory_space<vmem>>, vector<16x256xf32>
    tpu.vector_store %arg12[%c16_51, %c0_52], %78 {strides = array<i32>} : memref<288x256xf32, #tpu.memory_space<vmem>>, vector<16x256xf32>,
    %c0_53 = arith.constant 0 : index
    %c2_54 = arith.constant 2 : index
    %80 = vector.load %arg11[%c0_53, %c2_54] : memref<32x290xf32, #tpu.memory_space<vmem>>, vector<16x256xf32>
    %81 = vector.broadcast %24 : vector<1x256xf32> to vector<16x256xf32>
    %82 = arith.mulf %80, %81 : vector<16x256xf32>
    %c32_55 = arith.constant 32 : index
    %c0_56 = arith.constant 0 : index
    %83 = vector.load %arg12[%c32_55, %c0_56] : memref<288x256xf32, #tpu.memory_space<vmem>>, vector<16x256xf32>
    tpu.vector_store %arg12[%c32_55, %c0_56], %82 {strides = array<i32>} : memref<288x256xf32, #tpu.memory_space<vmem>>, vector<16x256xf32>,
    %c0_57 = arith.constant 0 : index
    %c16_58 = arith.constant 16 : index
    %84 = vector.load %arg11[%c0_57, %c16_58] : memref<32x290xf32, #tpu.memory_space<vmem>>, vector<16x256xf32>
    %85 = vector.broadcast %20 : vector<1x256xf32> to vector<16x256xf32>
    %86 = arith.mulf %84, %85 : vector<16x256xf32>
    %c48 = arith.constant 48 : index
    %c0_59 = arith.constant 0 : index
    %87 = vector.load %arg12[%c48, %c0_59] : memref<288x256xf32, #tpu.memory_space<vmem>>, vector<16x256xf32>
    tpu.vector_store %arg12[%c48, %c0_59], %86 {strides = array<i32>} : memref<288x256xf32, #tpu.memory_space<vmem>>, vector<16x256xf32>,
    %c0_60 = arith.constant 0 : index
    %c17_61 = arith.constant 17 : index
    %88 = vector.load %arg11[%c0_60, %c17_61] : memref<32x290xf32, #tpu.memory_space<vmem>>, vector<16x256xf32>
    %c64 = arith.constant 64 : index
    %c0_62 = arith.constant 0 : index
    %89 = vector.load %arg12[%c64, %c0_62] : memref<288x256xf32, #tpu.memory_space<vmem>>, vector<16x256xf32>
    tpu.vector_store %arg12[%c64, %c0_62], %88 {strides = array<i32>} : memref<288x256xf32, #tpu.memory_space<vmem>>, vector<16x256xf32>,
    %c0_63 = arith.constant 0 : index
    %c18_64 = arith.constant 18 : index
    %90 = vector.load %arg11[%c0_63, %c18_64] : memref<32x290xf32, #tpu.memory_space<vmem>>, vector<16x256xf32>
    %91 = vector.broadcast %24 : vector<1x256xf32> to vector<16x256xf32>
    %92 = arith.mulf %90, %91 : vector<16x256xf32>
    %c80 = arith.constant 80 : index
    %c0_65 = arith.constant 0 : index
    %93 = vector.load %arg12[%c80, %c0_65] : memref<288x256xf32, #tpu.memory_space<vmem>>, vector<16x256xf32>
    tpu.vector_store %arg12[%c80, %c0_65], %92 {strides = array<i32>} : memref<288x256xf32, #tpu.memory_space<vmem>>, vector<16x256xf32>,
    %c0_66 = arith.constant 0 : index
    %c32_67 = arith.constant 32 : index
    %94 = vector.load %arg11[%c0_66, %c32_67] : memref<32x290xf32, #tpu.memory_space<vmem>>, vector<16x256xf32>
    %95 = vector.broadcast %20 : vector<1x256xf32> to vector<16x256xf32>
    %96 = arith.mulf %94, %95 : vector<16x256xf32>
    %c96 = arith.constant 96 : index
    %c0_68 = arith.constant 0 : index
    %97 = vector.load %arg12[%c96, %c0_68] : memref<288x256xf32, #tpu.memory_space<vmem>>, vector<16x256xf32>
    tpu.vector_store %arg12[%c96, %c0_68], %96 {strides = array<i32>} : memref<288x256xf32, #tpu.memory_space<vmem>>, vector<16x256xf32>,
    %c0_69 = arith.constant 0 : index
    %c33_70 = arith.constant 33 : index
    %98 = vector.load %arg11[%c0_69, %c33_70] : memref<32x290xf32, #tpu.memory_space<vmem>>, vector<16x256xf32>
    %c112 = arith.constant 112 : index
    %c0_71 = arith.constant 0 : index
    %99 = vector.load %arg12[%c112, %c0_71] : memref<288x256xf32, #tpu.memory_space<vmem>>, vector<16x256xf32>
    tpu.vector_store %arg12[%c112, %c0_71], %98 {strides = array<i32>} : memref<288x256xf32, #tpu.memory_space<vmem>>, vector<16x256xf32>,
    %c0_72 = arith.constant 0 : index
    %c34_73 = arith.constant 34 : index
    %100 = vector.load %arg11[%c0_72, %c34_73] : memref<32x290xf32, #tpu.memory_space<vmem>>, vector<16x256xf32>
    %101 = vector.broadcast %24 : vector<1x256xf32> to vector<16x256xf32>
    %102 = arith.mulf %100, %101 : vector<16x256xf32>
    %c128 = arith.constant 128 : index
    %c0_74 = arith.constant 0 : index
    %103 = vector.load %arg12[%c128, %c0_74] : memref<288x256xf32, #tpu.memory_space<vmem>>, vector<16x256xf32>
    tpu.vector_store %arg12[%c128, %c0_74], %102 {strides = array<i32>} : memref<288x256xf32, #tpu.memory_space<vmem>>, vector<16x256xf32>,
    %c0_75 = arith.constant 0 : index
    %c0_76 = arith.constant 0 : index
    %104 = vector.load %arg3[%c0_75, %c0_76] : memref<32x144xf32, #tpu.memory_space<vmem>>, vector<32x144xf32>
    %c0_77 = arith.constant 0 : index
    %c0_78 = arith.constant 0 : index
    %105 = vector.load %arg12[%c0_77, %c0_78] : memref<288x256xf32, #tpu.memory_space<vmem>>, vector<144x256xf32>
    %cst_79 = arith.constant dense<0.000000e+00> : vector<32x256xf32>
    %106 = tpu.matmul %104, %105, %cst_79 {dimension_numbers = #tpu.dot_dimension_numbers<[1], [0], [0], [1], [0, 0, 1, 1], [], []>} : vector<32x144xf32>, vector<144x256xf32>, vector<32x256xf32> -> vector<32x256xf32>
    %c0_80 = arith.constant 0 : index
    %c0_81 = arith.constant 0 : index
    %c0_82 = arith.constant 0 : index
    %107 = vector.load %arg7[%c0_80, %c0_81, %c0_82] : memref<2x32x1xf32, #tpu.memory_space<vmem>>, vector<1x32x1xf32>
    %108 = vector.shape_cast %107 : vector<1x32x1xf32> to vector<32x1xf32>
    %109 = vector.broadcast %108 : vector<32x1xf32> to vector<32x256xf32>
    %110 = arith.mulf %106, %109 : vector<32x256xf32>
    %c1_83 = arith.constant 1 : index
    %c0_84 = arith.constant 0 : index
    %c0_85 = arith.constant 0 : index
    %111 = vector.load %arg7[%c1_83, %c0_84, %c0_85] : memref<2x32x1xf32, #tpu.memory_space<vmem>>, vector<1x32x1xf32>
    %112 = vector.shape_cast %111 : vector<1x32x1xf32> to vector<32x1xf32>
    %113 = vector.broadcast %112 : vector<32x1xf32> to vector<32x256xf32>
    %114 = arith.addf %110, %113 : vector<32x256xf32>
    %cst_86 = arith.constant 0.000000e+00 : f32
    %115 = vector.broadcast %cst_86 : f32 to vector<32x256xf32>
    %116 = arith.maximumf %114, %115 : vector<32x256xf32>
    %c0_87 = arith.constant 0 : index
    %c17_88 = arith.constant 17 : index
    %117 = vector.load %arg11[%c0_87, %c17_88] : memref<32x290xf32, #tpu.memory_space<vmem>>, vector<32x256xf32>
    tpu.vector_store %arg11[%c0_87, %c17_88], %116 {strides = array<i32>} : memref<32x290xf32, #tpu.memory_space<vmem>>, vector<32x256xf32>,
    %c0_89 = arith.constant 0 : index
    %c0_90 = arith.constant 0 : index
    %118 = vector.load %arg11[%c0_89, %c0_90] : memref<32x290xf32, #tpu.memory_space<vmem>>, vector<32x256xf32>
    %119 = vector.broadcast %20 : vector<1x256xf32> to vector<32x256xf32>
    %120 = arith.mulf %118, %119 : vector<32x256xf32>
    %c0_91 = arith.constant 0 : index
    %c0_92 = arith.constant 0 : index
    %121 = vector.load %arg12[%c0_91, %c0_92] : memref<288x256xf32, #tpu.memory_space<vmem>>, vector<32x256xf32>
    tpu.vector_store %arg12[%c0_91, %c0_92], %120 {strides = array<i32>} : memref<288x256xf32, #tpu.memory_space<vmem>>, vector<32x256xf32>,
    %c0_93 = arith.constant 0 : index
    %c1_94 = arith.constant 1 : index
    %122 = vector.load %arg11[%c0_93, %c1_94] : memref<32x290xf32, #tpu.memory_space<vmem>>, vector<32x256xf32>
    %c32_95 = arith.constant 32 : index
    %c0_96 = arith.constant 0 : index
    %123 = vector.load %arg12[%c32_95, %c0_96] : memref<288x256xf32, #tpu.memory_space<vmem>>, vector<32x256xf32>
    tpu.vector_store %arg12[%c32_95, %c0_96], %122 {strides = array<i32>} : memref<288x256xf32, #tpu.memory_space<vmem>>, vector<32x256xf32>,
    %c0_97 = arith.constant 0 : index
    %c2_98 = arith.constant 2 : index
    %124 = vector.load %arg11[%c0_97, %c2_98] : memref<32x290xf32, #tpu.memory_space<vmem>>, vector<32x256xf32>
    %125 = vector.broadcast %24 : vector<1x256xf32> to vector<32x256xf32>
    %126 = arith.mulf %124, %125 : vector<32x256xf32>
    %c64_99 = arith.constant 64 : index
    %c0_100 = arith.constant 0 : index
    %127 = vector.load %arg12[%c64_99, %c0_100] : memref<288x256xf32, #tpu.memory_space<vmem>>, vector<32x256xf32>
    tpu.vector_store %arg12[%c64_99, %c0_100], %126 {strides = array<i32>} : memref<288x256xf32, #tpu.memory_space<vmem>>, vector<32x256xf32>,
    %c0_101 = arith.constant 0 : index
    %c16_102 = arith.constant 16 : index
    %128 = vector.load %arg11[%c0_101, %c16_102] : memref<32x290xf32, #tpu.memory_space<vmem>>, vector<32x256xf32>
    %129 = vector.broadcast %20 : vector<1x256xf32> to vector<32x256xf32>
    %130 = arith.mulf %128, %129 : vector<32x256xf32>
    %c96_103 = arith.constant 96 : index
    %c0_104 = arith.constant 0 : index
    %131 = vector.load %arg12[%c96_103, %c0_104] : memref<288x256xf32, #tpu.memory_space<vmem>>, vector<32x256xf32>
    tpu.vector_store %arg12[%c96_103, %c0_104], %130 {strides = array<i32>} : memref<288x256xf32, #tpu.memory_space<vmem>>, vector<32x256xf32>,
    %c0_105 = arith.constant 0 : index
    %c17_106 = arith.constant 17 : index
    %132 = vector.load %arg11[%c0_105, %c17_106] : memref<32x290xf32, #tpu.memory_space<vmem>>, vector<32x256xf32>
    %c128_107 = arith.constant 128 : index
    %c0_108 = arith.constant 0 : index
    %133 = vector.load %arg12[%c128_107, %c0_108] : memref<288x256xf32, #tpu.memory_space<vmem>>, vector<32x256xf32>
    tpu.vector_store %arg12[%c128_107, %c0_108], %132 {strides = array<i32>} : memref<288x256xf32, #tpu.memory_space<vmem>>, vector<32x256xf32>,
    %c0_109 = arith.constant 0 : index
    %c18_110 = arith.constant 18 : index
    %134 = vector.load %arg11[%c0_109, %c18_110] : memref<32x290xf32, #tpu.memory_space<vmem>>, vector<32x256xf32>
    %135 = vector.broadcast %24 : vector<1x256xf32> to vector<32x256xf32>
    %136 = arith.mulf %134, %135 : vector<32x256xf32>
    %c160 = arith.constant 160 : index
    %c0_111 = arith.constant 0 : index
    %137 = vector.load %arg12[%c160, %c0_111] : memref<288x256xf32, #tpu.memory_space<vmem>>, vector<32x256xf32>
    tpu.vector_store %arg12[%c160, %c0_111], %136 {strides = array<i32>} : memref<288x256xf32, #tpu.memory_space<vmem>>, vector<32x256xf32>,
    %c0_112 = arith.constant 0 : index
    %c32_113 = arith.constant 32 : index
    %138 = vector.load %arg11[%c0_112, %c32_113] : memref<32x290xf32, #tpu.memory_space<vmem>>, vector<32x256xf32>
    %139 = vector.broadcast %20 : vector<1x256xf32> to vector<32x256xf32>
    %140 = arith.mulf %138, %139 : vector<32x256xf32>
    %c192 = arith.constant 192 : index
    %c0_114 = arith.constant 0 : index
    %141 = vector.load %arg12[%c192, %c0_114] : memref<288x256xf32, #tpu.memory_space<vmem>>, vector<32x256xf32>
    tpu.vector_store %arg12[%c192, %c0_114], %140 {strides = array<i32>} : memref<288x256xf32, #tpu.memory_space<vmem>>, vector<32x256xf32>,
    %c0_115 = arith.constant 0 : index
    %c33_116 = arith.constant 33 : index
    %142 = vector.load %arg11[%c0_115, %c33_116] : memref<32x290xf32, #tpu.memory_space<vmem>>, vector<32x256xf32>
    %c224 = arith.constant 224 : index
    %c0_117 = arith.constant 0 : index
    %143 = vector.load %arg12[%c224, %c0_117] : memref<288x256xf32, #tpu.memory_space<vmem>>, vector<32x256xf32>
    tpu.vector_store %arg12[%c224, %c0_117], %142 {strides = array<i32>} : memref<288x256xf32, #tpu.memory_space<vmem>>, vector<32x256xf32>,
    %c0_118 = arith.constant 0 : index
    %c34_119 = arith.constant 34 : index
    %144 = vector.load %arg11[%c0_118, %c34_119] : memref<32x290xf32, #tpu.memory_space<vmem>>, vector<32x256xf32>
    %145 = vector.broadcast %24 : vector<1x256xf32> to vector<32x256xf32>
    %146 = arith.mulf %144, %145 : vector<32x256xf32>
    %c256 = arith.constant 256 : index
    %c0_120 = arith.constant 0 : index
    %147 = vector.load %arg12[%c256, %c0_120] : memref<288x256xf32, #tpu.memory_space<vmem>>, vector<32x256xf32>
    tpu.vector_store %arg12[%c256, %c0_120], %146 {strides = array<i32>} : memref<288x256xf32, #tpu.memory_space<vmem>>, vector<32x256xf32>,
    %c0_121 = arith.constant 0 : index
    %c0_122 = arith.constant 0 : index
    %148 = vector.load %arg4[%c0_121, %c0_122] : memref<16x288xf32, #tpu.memory_space<vmem>>, vector<16x288xf32>
    %c0_123 = arith.constant 0 : index
    %c0_124 = arith.constant 0 : index
    %149 = vector.load %arg12[%c0_123, %c0_124] : memref<288x256xf32, #tpu.memory_space<vmem>>, vector<288x256xf32>
    %cst_125 = arith.constant dense<0.000000e+00> : vector<16x256xf32>
    %150 = tpu.matmul %148, %149, %cst_125 {dimension_numbers = #tpu.dot_dimension_numbers<[1], [0], [0], [1], [0, 0, 1, 1], [], []>} : vector<16x288xf32>, vector<288x256xf32>, vector<16x256xf32> -> vector<16x256xf32>
    %c0_126 = arith.constant 0 : index
    %c0_127 = arith.constant 0 : index
    %c0_128 = arith.constant 0 : index
    %151 = vector.load %arg8[%c0_126, %c0_127, %c0_128] : memref<2x16x1xf32, #tpu.memory_space<vmem>>, vector<1x16x1xf32>
    %152 = vector.shape_cast %151 : vector<1x16x1xf32> to vector<16x1xf32>
    %153 = vector.broadcast %152 : vector<16x1xf32> to vector<16x256xf32>
    %154 = arith.mulf %150, %153 : vector<16x256xf32>
    %c1_129 = arith.constant 1 : index
    %c0_130 = arith.constant 0 : index
    %c0_131 = arith.constant 0 : index
    %155 = vector.load %arg8[%c1_129, %c0_130, %c0_131] : memref<2x16x1xf32, #tpu.memory_space<vmem>>, vector<1x16x1xf32>
    %156 = vector.shape_cast %155 : vector<1x16x1xf32> to vector<16x1xf32>
    %157 = vector.broadcast %156 : vector<16x1xf32> to vector<16x256xf32>
    %158 = arith.addf %154, %157 : vector<16x256xf32>
    %cst_132 = arith.constant 0.000000e+00 : f32
    %159 = vector.broadcast %cst_132 : f32 to vector<16x256xf32>
    %160 = arith.maximumf %158, %159 : vector<16x256xf32>
    %c0_133 = arith.constant 0 : index
    %c17_134 = arith.constant 17 : index
    %161 = vector.load %arg11[%c0_133, %c17_134] : memref<32x290xf32, #tpu.memory_space<vmem>>, vector<16x256xf32>
    tpu.vector_store %arg11[%c0_133, %c17_134], %160 {strides = array<i32>} : memref<32x290xf32, #tpu.memory_space<vmem>>, vector<16x256xf32>,
    %c0_135 = arith.constant 0 : index
    %c0_136 = arith.constant 0 : index
    %162 = vector.load %arg11[%c0_135, %c0_136] : memref<32x290xf32, #tpu.memory_space<vmem>>, vector<16x256xf32>
    %163 = vector.broadcast %20 : vector<1x256xf32> to vector<16x256xf32>
    %164 = arith.mulf %162, %163 : vector<16x256xf32>
    %c0_137 = arith.constant 0 : index
    %c0_138 = arith.constant 0 : index
    %165 = vector.load %arg12[%c0_137, %c0_138] : memref<288x256xf32, #tpu.memory_space<vmem>>, vector<16x256xf32>
    tpu.vector_store %arg12[%c0_137, %c0_138], %164 {strides = array<i32>} : memref<288x256xf32, #tpu.memory_space<vmem>>, vector<16x256xf32>,
    %c0_139 = arith.constant 0 : index
    %c1_140 = arith.constant 1 : index
    %166 = vector.load %arg11[%c0_139, %c1_140] : memref<32x290xf32, #tpu.memory_space<vmem>>, vector<16x256xf32>
    %c16_141 = arith.constant 16 : index
    %c0_142 = arith.constant 0 : index
    %167 = vector.load %arg12[%c16_141, %c0_142] : memref<288x256xf32, #tpu.memory_space<vmem>>, vector<16x256xf32>
    tpu.vector_store %arg12[%c16_141, %c0_142], %166 {strides = array<i32>} : memref<288x256xf32, #tpu.memory_space<vmem>>, vector<16x256xf32>,
    %c0_143 = arith.constant 0 : index
    %c2_144 = arith.constant 2 : index
    %168 = vector.load %arg11[%c0_143, %c2_144] : memref<32x290xf32, #tpu.memory_space<vmem>>, vector<16x256xf32>
    %169 = vector.broadcast %24 : vector<1x256xf32> to vector<16x256xf32>
    %170 = arith.mulf %168, %169 : vector<16x256xf32>
    %c32_145 = arith.constant 32 : index
    %c0_146 = arith.constant 0 : index
    %171 = vector.load %arg12[%c32_145, %c0_146] : memref<288x256xf32, #tpu.memory_space<vmem>>, vector<16x256xf32>
    tpu.vector_store %arg12[%c32_145, %c0_146], %170 {strides = array<i32>} : memref<288x256xf32, #tpu.memory_space<vmem>>, vector<16x256xf32>,
    %c0_147 = arith.constant 0 : index
    %c16_148 = arith.constant 16 : index
    %172 = vector.load %arg11[%c0_147, %c16_148] : memref<32x290xf32, #tpu.memory_space<vmem>>, vector<16x256xf32>
    %173 = vector.broadcast %20 : vector<1x256xf32> to vector<16x256xf32>
    %174 = arith.mulf %172, %173 : vector<16x256xf32>
    %c48_149 = arith.constant 48 : index
    %c0_150 = arith.constant 0 : index
    %175 = vector.load %arg12[%c48_149, %c0_150] : memref<288x256xf32, #tpu.memory_space<vmem>>, vector<16x256xf32>
    tpu.vector_store %arg12[%c48_149, %c0_150], %174 {strides = array<i32>} : memref<288x256xf32, #tpu.memory_space<vmem>>, vector<16x256xf32>,
    %c0_151 = arith.constant 0 : index
    %c17_152 = arith.constant 17 : index
    %176 = vector.load %arg11[%c0_151, %c17_152] : memref<32x290xf32, #tpu.memory_space<vmem>>, vector<16x256xf32>
    %c64_153 = arith.constant 64 : index
    %c0_154 = arith.constant 0 : index
    %177 = vector.load %arg12[%c64_153, %c0_154] : memref<288x256xf32, #tpu.memory_space<vmem>>, vector<16x256xf32>
    tpu.vector_store %arg12[%c64_153, %c0_154], %176 {strides = array<i32>} : memref<288x256xf32, #tpu.memory_space<vmem>>, vector<16x256xf32>,
    %c0_155 = arith.constant 0 : index
    %c18_156 = arith.constant 18 : index
    %178 = vector.load %arg11[%c0_155, %c18_156] : memref<32x290xf32, #tpu.memory_space<vmem>>, vector<16x256xf32>
    %179 = vector.broadcast %24 : vector<1x256xf32> to vector<16x256xf32>
    %180 = arith.mulf %178, %179 : vector<16x256xf32>
    %c80_157 = arith.constant 80 : index
    %c0_158 = arith.constant 0 : index
    %181 = vector.load %arg12[%c80_157, %c0_158] : memref<288x256xf32, #tpu.memory_space<vmem>>, vector<16x256xf32>
    tpu.vector_store %arg12[%c80_157, %c0_158], %180 {strides = array<i32>} : memref<288x256xf32, #tpu.memory_space<vmem>>, vector<16x256xf32>,
    %c0_159 = arith.constant 0 : index
    %c32_160 = arith.constant 32 : index
    %182 = vector.load %arg11[%c0_159, %c32_160] : memref<32x290xf32, #tpu.memory_space<vmem>>, vector<16x256xf32>
    %183 = vector.broadcast %20 : vector<1x256xf32> to vector<16x256xf32>
    %184 = arith.mulf %182, %183 : vector<16x256xf32>
    %c96_161 = arith.constant 96 : index
    %c0_162 = arith.constant 0 : index
    %185 = vector.load %arg12[%c96_161, %c0_162] : memref<288x256xf32, #tpu.memory_space<vmem>>, vector<16x256xf32>
    tpu.vector_store %arg12[%c96_161, %c0_162], %184 {strides = array<i32>} : memref<288x256xf32, #tpu.memory_space<vmem>>, vector<16x256xf32>,
    %c0_163 = arith.constant 0 : index
    %c33_164 = arith.constant 33 : index
    %186 = vector.load %arg11[%c0_163, %c33_164] : memref<32x290xf32, #tpu.memory_space<vmem>>, vector<16x256xf32>
    %c112_165 = arith.constant 112 : index
    %c0_166 = arith.constant 0 : index
    %187 = vector.load %arg12[%c112_165, %c0_166] : memref<288x256xf32, #tpu.memory_space<vmem>>, vector<16x256xf32>
    tpu.vector_store %arg12[%c112_165, %c0_166], %186 {strides = array<i32>} : memref<288x256xf32, #tpu.memory_space<vmem>>, vector<16x256xf32>,
    %c0_167 = arith.constant 0 : index
    %c34_168 = arith.constant 34 : index
    %188 = vector.load %arg11[%c0_167, %c34_168] : memref<32x290xf32, #tpu.memory_space<vmem>>, vector<16x256xf32>
    %189 = vector.broadcast %24 : vector<1x256xf32> to vector<16x256xf32>
    %190 = arith.mulf %188, %189 : vector<16x256xf32>
    %c128_169 = arith.constant 128 : index
    %c0_170 = arith.constant 0 : index
    %191 = vector.load %arg12[%c128_169, %c0_170] : memref<288x256xf32, #tpu.memory_space<vmem>>, vector<16x256xf32>
    tpu.vector_store %arg12[%c128_169, %c0_170], %190 {strides = array<i32>} : memref<288x256xf32, #tpu.memory_space<vmem>>, vector<16x256xf32>,
    %c0_171 = arith.constant 0 : index
    %c0_172 = arith.constant 0 : index
    %192 = vector.load %arg5[%c0_171, %c0_172] : memref<3x144xf32, #tpu.memory_space<vmem>>, vector<3x144xf32>
    %c0_173 = arith.constant 0 : index
    %c0_174 = arith.constant 0 : index
    %193 = vector.load %arg12[%c0_173, %c0_174] : memref<288x256xf32, #tpu.memory_space<vmem>>, vector<144x256xf32>
    %cst_175 = arith.constant dense<0.000000e+00> : vector<3x256xf32>
    %194 = tpu.matmul %192, %193, %cst_175 {dimension_numbers = #tpu.dot_dimension_numbers<[1], [0], [0], [1], [0, 0, 1, 1], [], []>} : vector<3x144xf32>, vector<144x256xf32>, vector<3x256xf32> -> vector<3x256xf32>
    %c0_176 = arith.constant 0 : index
    %c0_177 = arith.constant 0 : index
    %c0_178 = arith.constant 0 : index
    %195 = vector.load %arg9[%c0_176, %c0_177, %c0_178] : memref<2x3x1xf32, #tpu.memory_space<vmem>>, vector<1x3x1xf32>
    %196 = vector.shape_cast %195 : vector<1x3x1xf32> to vector<3x1xf32>
    %197 = vector.broadcast %196 : vector<3x1xf32> to vector<3x256xf32>
    %198 = arith.mulf %194, %197 : vector<3x256xf32>
    %c1_179 = arith.constant 1 : index
    %c0_180 = arith.constant 0 : index
    %c0_181 = arith.constant 0 : index
    %199 = vector.load %arg9[%c1_179, %c0_180, %c0_181] : memref<2x3x1xf32, #tpu.memory_space<vmem>>, vector<1x3x1xf32>
    %200 = vector.shape_cast %199 : vector<1x3x1xf32> to vector<3x1xf32>
    %201 = vector.broadcast %200 : vector<3x1xf32> to vector<3x256xf32>
    %202 = arith.addf %198, %201 : vector<3x256xf32>
    %203 = arith.negf %202 : vector<3x256xf32>
    %204 = math.exp %203 : vector<3x256xf32>
    %cst_182 = arith.constant 1.000000e+00 : f32
    %205 = vector.broadcast %cst_182 : f32 to vector<3x256xf32>
    %206 = arith.addf %205, %204 : vector<3x256xf32>
    %207 = arith.divf %205, %206 : vector<3x256xf32>
    %c0_183 = arith.constant 0 : index
    %c0_184 = arith.constant 0 : index
    %c0_185 = arith.constant 0 : index
    %208 = vector.load %arg10[%c0_183, %c0_184, %c0_185] : memref<1x3x256xf32, #tpu.memory_space<vmem>>, vector<1x3x256xf32>
    %209 = vector.shape_cast %208 : vector<1x3x256xf32> to vector<3x256xf32>
    %210 = vector.shape_cast %207 : vector<3x256xf32> to vector<1x3x256xf32>
    tpu.vector_store %arg10[%c0_183, %c0_184, %c0_185], %210 {strides = array<i32>} : memref<1x3x256xf32, #tpu.memory_space<vmem>>, vector<1x3x256xf32>,
    return
  }
  func.func @transform_0(%arg0: i32) -> (i32, i32, i32) {
    %c0_i32 = arith.constant 0 : i32
    %c0_i32_0 = arith.constant 0 : i32
    %c0_i32_1 = arith.constant 0 : i32
    return %arg0, %c0_i32, %c0_i32_0 : i32, i32, i32
  }
  func.func @transform_1(%arg0: i32) -> (i32, i32) {
    %c0_i32 = arith.constant 0 : i32
    %c0_i32_0 = arith.constant 0 : i32
    %c0_i32_1 = arith.constant 0 : i32
    return %c0_i32, %c0_i32_0 : i32, i32
  }
  func.func @transform_2(%arg0: i32) -> (i32, i32) {
    %c0_i32 = arith.constant 0 : i32
    %c0_i32_0 = arith.constant 0 : i32
    %c0_i32_1 = arith.constant 0 : i32
    return %c0_i32, %c0_i32_0 : i32, i32
  }
  func.func @transform_3(%arg0: i32) -> (i32, i32) {
    %c0_i32 = arith.constant 0 : i32
    %c0_i32_0 = arith.constant 0 : i32
    %c0_i32_1 = arith.constant 0 : i32
    return %c0_i32, %c0_i32_0 : i32, i32
  }
  func.func @transform_4(%arg0: i32) -> (i32, i32) {
    %c0_i32 = arith.constant 0 : i32
    %c0_i32_0 = arith.constant 0 : i32
    %c0_i32_1 = arith.constant 0 : i32
    return %c0_i32, %c0_i32_0 : i32, i32
  }
  func.func @transform_5(%arg0: i32) -> (i32, i32, i32) {
    %c0_i32 = arith.constant 0 : i32
    %c0_i32_0 = arith.constant 0 : i32
    %c0_i32_1 = arith.constant 0 : i32
    %c0_i32_2 = arith.constant 0 : i32
    return %c0_i32, %c0_i32_0, %c0_i32_1 : i32, i32, i32
  }
  func.func @transform_6(%arg0: i32) -> (i32, i32, i32) {
    %c0_i32 = arith.constant 0 : i32
    %c0_i32_0 = arith.constant 0 : i32
    %c0_i32_1 = arith.constant 0 : i32
    %c0_i32_2 = arith.constant 0 : i32
    return %c0_i32, %c0_i32_0, %c0_i32_1 : i32, i32, i32
  }
  func.func @transform_7(%arg0: i32) -> (i32, i32, i32) {
    %c0_i32 = arith.constant 0 : i32
    %c0_i32_0 = arith.constant 0 : i32
    %c0_i32_1 = arith.constant 0 : i32
    %c0_i32_2 = arith.constant 0 : i32
    return %c0_i32, %c0_i32_0, %c0_i32_1 : i32, i32, i32
  }
  func.func @transform_8(%arg0: i32) -> (i32, i32, i32) {
    %c0_i32 = arith.constant 0 : i32
    %c0_i32_0 = arith.constant 0 : i32
    %c0_i32_1 = arith.constant 0 : i32
    %c0_i32_2 = arith.constant 0 : i32
    return %c0_i32, %c0_i32_0, %c0_i32_1 : i32, i32, i32
  }
  func.func @transform_9(%arg0: i32) -> (i32, i32, i32) {
    %c0_i32 = arith.constant 0 : i32
    %c0_i32_0 = arith.constant 0 : i32
    %c0_i32_1 = arith.constant 0 : i32
    return %arg0, %c0_i32, %c0_i32_0 : i32, i32, i32
  }
}

</mosaic_0001>

<llo_original>
// kernel: cnnnet_forward.1
$region0: #{cnnnet_forward.1}
  #allocation0 [shape = 'u32[]', space=smem, size = 0x4, offset = 0x4, fixed_abs, tag = 'smem constant byte address 0x4 - core index']
  #allocation1 [shape = 'u32[144,128]{1,0:T(1,128)}', space=vmem, size = 0x12000, scoped, tag = 'internal scratch']
  #allocation2 [shape = 'f32[32,290]{1,0:T(8,128)}', space=vmem, size = 0xc000, scoped, tag = 'scratch operand']
  #allocation3 [shape = 'f32[288,256]{1,0:T(8,128)}', space=vmem, size = 0x48000, scoped, tag = 'scratch operand']
  %s0 = inlined_call_operand.vmem [shape: f32[2,3,256], index: 0, kind: input, shape index: {}]
  %s1 = inlined_call_operand.vmem [shape: f32[16,27], index: 1, kind: input, shape index: {}]
  %s2 = inlined_call_operand.vmem [shape: f32[32,144], index: 2, kind: input, shape index: {}]
  %s3 = inlined_call_operand.vmem [shape: f32[16,288], index: 3, kind: input, shape index: {}]
  %s4 = inlined_call_operand.vmem [shape: f32[3,144], index: 4, kind: input, shape index: {}]
  %s5 = inlined_call_operand.vmem [shape: f32[2,16,1], index: 5, kind: input, shape index: {}]
  %s6 = inlined_call_operand.vmem [shape: f32[2,32,1], index: 6, kind: input, shape index: {}]
  %s7 = inlined_call_operand.vmem [shape: f32[2,16,1], index: 7, kind: input, shape index: {}]
  %s8 = inlined_call_operand.vmem [shape: f32[2,3,1], index: 8, kind: input, shape index: {}]
  %s9 = inlined_call_operand.vmem [shape: f32[2,3,256], index: 9, kind: output, shape index: {}]
  %s10 = sld [smem:[#allocation0]]
  $region69: #{cnnnet_forward.1} parent=0
    _
  %s12 = ssub.s32 1, %s10
  %s13 = scalar_select 0, %s12, %s10
  loop: start=0, step=1, limit=4
  $region2: #{cnnnet_forward.1} parent=0 // loop_pre_header
    _
  $region3: #{cnnnet_forward.1} parent=0 // loop_header
    %s15 = sphi 0, %s19
    %p16 = scmp.ge.s32.totalorder %s15, 4
    %s25 = sphi 0, %s27
    %s28 = sphi 0, %s25
    %s29 = sphi 0, %s28
    %s45 = sphi 0, %s29
    %s49 = sphi 0, %s49
    %s51 = sphi 0, %s49
    %s52 = sphi 0, %s51
    %s66 = sphi 0, %s52
    %s70 = sphi 0, %s70
    %s72 = sphi 0, %s70
    %s73 = sphi 0, %s72
    %s87 = sphi 0, %s73
    %s91 = sphi 0, %s91
    %s93 = sphi 0, %s91
    %s94 = sphi 0, %s93
    %s108 = sphi 0, %s94
    %s112 = sphi 0, %s112
    %s114 = sphi 0, %s112
    %s115 = sphi 0, %s114
    %s129 = sphi 0, %s115
    %s133 = sphi 0, %s133
    %s135 = sphi 0, %s133
    %s136 = sphi 0, %s135
    %s150 = sphi 0, %s136
    %s154 = sphi 0, %s154
    %s156 = sphi 0, %s154
    %s157 = sphi 0, %s156
    %s171 = sphi 0, %s157
    %s175 = sphi 0, %s175
    %s177 = sphi 0, %s175
    %s178 = sphi 0, %s177
    %s192 = sphi 0, %s178
    %s196 = sphi 0, %s196
    %s198 = sphi 0, %s196
    %s199 = sphi 0, %s198
    %s213 = sphi 0, %s199
    %s219 = sphi 0, %s221
    %s222 = sphi 0, %s219
    %s223 = sphi 0, %s222
    %s239 = sphi 0, %s223
  $region4: #{cnnnet_forward.1} parent=0 // loop_header_branch
    %18 = sbr.rel (%p16) target = $region8
  $region5: #{cnnnet_forward.1} parent=0 // loop_body
    %s20 = ssub.s32 %s15, 1
    %s21 = ssub.s32 %s15, 2
    %s22 = sadd.s32 %s15, 1
    %s23 = ssub.s32 %s15, %s22
    %p24 = scmp.eq.s32.totalorder %s23, 0
    %s26 = sadd.s32 %s25, 1
    %s27 = scalar_select %p24, %s25, %s26
    %p30 = pneg %p24
    %p31 = scmp.eq.s32.totalorder %s15, 1
    %p32 = por %p30, %p31
    %p33 = scmp.ne.s32.totalorder %s25, %s28
    %p34 = scmp.eq.s32.totalorder %s15, 0
    %p35 = por %p33, %p34
    %p36 = scmp.ne.s32.totalorder %s25, %s28
    %p37 = scmp.eq.s32.totalorder %s20, 1
    %p38 = por %p36, %p37
    %p39 = scmp.ne.s32.totalorder %s28, %s29
    %p40 = scmp.eq.s32.totalorder %s20, 0
    %p41 = por %p39, %p40
    %p42 = scmp.ne.s32.totalorder %s28, %s29
    %p43 = scmp.eq.s32.totalorder %s21, 1
    %p44 = por %p42, %p43
    %p46 = scmp.ne.s32.totalorder %s29, %s45
    %p47 = scmp.eq.s32.totalorder %s21, 0
    %p48 = por %p46, %p47
    %s50 = sadd.s32 %s49, 1
    %p53 = scmp.eq.s32.totalorder %s15, 1
    %p54 = scmp.ne.s32.totalorder %s49, %s51
    %p55 = scmp.eq.s32.totalorder %s15, 0
    %p56 = por %p54, %p55
    %p57 = scmp.ne.s32.totalorder %s49, %s51
    %p58 = scmp.eq.s32.totalorder %s20, 1
    %p59 = por %p57, %p58
    %p60 = scmp.ne.s32.totalorder %s51, %s52
    %p61 = scmp.eq.s32.totalorder %s20, 0
    %p62 = por %p60, %p61
    %p63 = scmp.ne.s32.totalorder %s51, %s52
    %p64 = scmp.eq.s32.totalorder %s21, 1
    %p65 = por %p63, %p64
    %p67 = scmp.ne.s32.totalorder %s52, %s66
    %p68 = scmp.eq.s32.totalorder %s21, 0
    %p69 = por %p67, %p68
    %s71 = sadd.s32 %s70, 1
    %p74 = scmp.eq.s32.totalorder %s15, 1
    %p75 = scmp.ne.s32.totalorder %s70, %s72
    %p76 = scmp.eq.s32.totalorder %s15, 0
    %p77 = por %p75, %p76
    %p78 = scmp.ne.s32.totalorder %s70, %s72
    %p79 = scmp.eq.s32.totalorder %s20, 1
    %p80 = por %p78, %p79
    %p81 = scmp.ne.s32.totalorder %s72, %s73
    %p82 = scmp.eq.s32.totalorder %s20, 0
    %p83 = por %p81, %p82
    %p84 = scmp.ne.s32.totalorder %s72, %s73
    %p85 = scmp.eq.s32.totalorder %s21, 1
    %p86 = por %p84, %p85
    %p88 = scmp.ne.s32.totalorder %s73, %s87
    %p89 = scmp.eq.s32.totalorder %s21, 0
    %p90 = por %p88, %p89
    %s92 = sadd.s32 %s91, 1
    %p95 = scmp.eq.s32.totalorder %s15, 1
    %p96 = scmp.ne.s32.totalorder %s91, %s93
    %p97 = scmp.eq.s32.totalorder %s15, 0
    %p98 = por %p96, %p97
    %p99 = scmp.ne.s32.totalorder %s91, %s93
    %p100 = scmp.eq.s32.totalorder %s20, 1
    %p101 = por %p99, %p100
    %p102 = scmp.ne.s32.totalorder %s93, %s94
    %p103 = scmp.eq.s32.totalorder %s20, 0
    %p104 = por %p102, %p103
    %p105 = scmp.ne.s32.totalorder %s93, %s94
    %p106 = scmp.eq.s32.totalorder %s21, 1
    %p107 = por %p105, %p106
    %p109 = scmp.ne.s32.totalorder %s94, %s108
    %p110 = scmp.eq.s32.totalorder %s21, 0
    %p111 = por %p109, %p110
    %s113 = sadd.s32 %s112, 1
    %p116 = scmp.eq.s32.totalorder %s15, 1
    %p117 = scmp.ne.s32.totalorder %s112, %s114
    %p118 = scmp.eq.s32.totalorder %s15, 0
    %p119 = por %p117, %p118
    %p120 = scmp.ne.s32.totalorder %s112, %s114
    %p121 = scmp.eq.s32.totalorder %s20, 1
    %p122 = por %p120, %p121
    %p123 = scmp.ne.s32.totalorder %s114, %s115
    %p124 = scmp.eq.s32.totalorder %s20, 0
    %p125 = por %p123, %p124
    %p126 = scmp.ne.s32.totalorder %s114, %s115
    %p127 = scmp.eq.s32.totalorder %s21, 1
    %p128 = por %p126, %p127
    %p130 = scmp.ne.s32.totalorder %s115, %s129
    %p131 = scmp.eq.s32.totalorder %s21, 0
    %p132 = por %p130, %p131
    %s134 = sadd.s32 %s133, 1
    %p137 = scmp.eq.s32.totalorder %s15, 1
    %p138 = scmp.ne.s32.totalorder %s133, %s135
    %p139 = scmp.eq.s32.totalorder %s15, 0
    %p140 = por %p138, %p139
    %p141 = scmp.ne.s32.totalorder %s133, %s135
    %p142 = scmp.eq.s32.totalorder %s20, 1
    %p143 = por %p141, %p142
    %p144 = scmp.ne.s32.totalorder %s135, %s136
    %p145 = scmp.eq.s32.totalorder %s20, 0
    %p146 = por %p144, %p145
    %p147 = scmp.ne.s32.totalorder %s135, %s136
    %p148 = scmp.eq.s32.totalorder %s21, 1
    %p149 = por %p147, %p148
    %p151 = scmp.ne.s32.totalorder %s136, %s150
    %p152 = scmp.eq.s32.totalorder %s21, 0
    %p153 = por %p151, %p152
    %s155 = sadd.s32 %s154, 1
    %p158 = scmp.eq.s32.totalorder %s15, 1
    %p159 = scmp.ne.s32.totalorder %s154, %s156
    %p160 = scmp.eq.s32.totalorder %s15, 0
    %p161 = por %p159, %p160
    %p162 = scmp.ne.s32.totalorder %s154, %s156
    %p163 = scmp.eq.s32.totalorder %s20, 1
    %p164 = por %p162, %p163
    %p165 = scmp.ne.s32.totalorder %s156, %s157
    %p166 = scmp.eq.s32.totalorder %s20, 0
    %p167 = por %p165, %p166
    %p168 = scmp.ne.s32.totalorder %s156, %s157
    %p169 = scmp.eq.s32.totalorder %s21, 1
    %p170 = por %p168, %p169
    %p172 = scmp.ne.s32.totalorder %s157, %s171
    %p173 = scmp.eq.s32.totalorder %s21, 0
    %p174 = por %p172, %p173
    %s176 = sadd.s32 %s175, 1
    %p179 = scmp.eq.s32.totalorder %s15, 1
    %p180 = scmp.ne.s32.totalorder %s175, %s177
    %p181 = scmp.eq.s32.totalorder %s15, 0
    %p182 = por %p180, %p181
    %p183 = scmp.ne.s32.totalorder %s175, %s177
    %p184 = scmp.eq.s32.totalorder %s20, 1
    %p185 = por %p183, %p184
    %p186 = scmp.ne.s32.totalorder %s177, %s178
    %p187 = scmp.eq.s32.totalorder %s20, 0
    %p188 = por %p186, %p187
    %p189 = scmp.ne.s32.totalorder %s177, %s178
    %p190 = scmp.eq.s32.totalorder %s21, 1
    %p191 = por %p189, %p190
    %p193 = scmp.ne.s32.totalorder %s178, %s192
    %p194 = scmp.eq.s32.totalorder %s21, 0
    %p195 = por %p193, %p194
    %s197 = sadd.s32 %s196, 1
    %p200 = scmp.eq.s32.totalorder %s15, 1
    %p201 = scmp.ne.s32.totalorder %s196, %s198
    %p202 = scmp.eq.s32.totalorder %s15, 0
    %p203 = por %p201, %p202
    %p204 = scmp.ne.s32.totalorder %s196, %s198
    %p205 = scmp.eq.s32.totalorder %s20, 1
    %p206 = por %p204, %p205
    %p207 = scmp.ne.s32.totalorder %s198, %s199
    %p208 = scmp.eq.s32.totalorder %s20, 0
    %p209 = por %p207, %p208
    %p210 = scmp.ne.s32.totalorder %s198, %s199
    %p211 = scmp.eq.s32.totalorder %s21, 1
    %p212 = por %p210, %p211
    %p214 = scmp.ne.s32.totalorder %s199, %s213
    %p215 = scmp.eq.s32.totalorder %s21, 0
    %p216 = por %p214, %p215
    %s217 = ssub.s32 %s15, %s22
    %p218 = scmp.eq.s32.totalorder %s217, 0
    %s220 = sadd.s32 %s219, 1
    %s221 = scalar_select %p218, %s219, %s220
    %p224 = pneg %p218
    %p225 = scmp.eq.s32.totalorder %s15, 1
    %p226 = por %p224, %p225
    %p227 = scmp.ne.s32.totalorder %s219, %s222
    %p228 = scmp.eq.s32.totalorder %s15, 0
    %p229 = por %p227, %p228
    %p230 = scmp.ne.s32.totalorder %s219, %s222
    %p231 = scmp.eq.s32.totalorder %s20, 1
    %p232 = por %p230, %p231
    %p233 = scmp.ne.s32.totalorder %s222, %s223
    %p234 = scmp.eq.s32.totalorder %s20, 0
    %p235 = por %p233, %p234
    %p236 = scmp.ne.s32.totalorder %s222, %s223
    %p237 = scmp.eq.s32.totalorder %s21, 1
    %p238 = por %p236, %p237
    %p240 = scmp.ne.s32.totalorder %s223, %s239
    %p241 = scmp.eq.s32.totalorder %s21, 0
    %p242 = por %p240, %p241
    %p243 = scmp.le.s32.totalorder 1, %s15
    %p244 = scmp.lt.s32.totalorder %s15, 3
    %p245 = pnand %p243, %p244
    %p246 = pneg %p245
    // Predicated region
    $region9: #{cnnnet_forward.1} parent=5 // pred_check
      _
    $region10: #{cnnnet_forward.1} parent=5 // pred_check_branch
      %248 = sbr.rel (%p245) target = $region12
    $region11: #{cnnnet_forward.1} parent=5 // pred_region
      %s249 = ssub.s32 %s15, 1
      // Predicated region
      $region13: #{cnnnet_forward.1} parent=11 // pred_check
        %p250 = pneg %p62
      $region14: #{cnnnet_forward.1} parent=11 // pred_check_branch
        %252 = sbr.rel (%p250) target = $region16
      $region15: #{cnnnet_forward.1} parent=11 // pred_region
        _
      $region16: #{cnnnet_forward.1} parent=11 // pred_fallthru
        _
      // Predicated region
      $region17: #{cnnnet_forward.1} parent=11 // pred_check
        %p253 = pneg %p83
      $region18: #{cnnnet_forward.1} parent=11 // pred_check_branch
        %255 = sbr.rel (%p253) target = $region20
      $region19: #{cnnnet_forward.1} parent=11 // pred_region
        _
      $region20: #{cnnnet_forward.1} parent=11 // pred_fallthru
        _
      // Predicated region
      $region21: #{cnnnet_forward.1} parent=11 // pred_check
        %p256 = pneg %p104
      $region22: #{cnnnet_forward.1} parent=11 // pred_check_branch
        %258 = sbr.rel (%p256) target = $region24
      $region23: #{cnnnet_forward.1} parent=11 // pred_region
        _
      $region24: #{cnnnet_forward.1} parent=11 // pred_fallthru
        _
      // Predicated region
      $region25: #{cnnnet_forward.1} parent=11 // pred_check
        %p259 = pneg %p125
      $region26: #{cnnnet_forward.1} parent=11 // pred_check_branch
        %261 = sbr.rel (%p259) target = $region28
      $region27: #{cnnnet_forward.1} parent=11 // pred_region
        _
      $region28: #{cnnnet_forward.1} parent=11 // pred_fallthru
        _
      // Predicated region
      $region29: #{cnnnet_forward.1} parent=11 // pred_check
        %p262 = pneg %p146
      $region30: #{cnnnet_forward.1} parent=11 // pred_check_branch
        %264 = sbr.rel (%p262) target = $region32
      $region31: #{cnnnet_forward.1} parent=11 // pred_region
        _
      $region32: #{cnnnet_forward.1} parent=11 // pred_fallthru
        _
      // Predicated region
      $region33: #{cnnnet_forward.1} parent=11 // pred_check
        %p265 = pneg %p167
      $region34: #{cnnnet_forward.1} parent=11 // pred_check_branch
        %267 = sbr.rel (%p265) target = $region36
      $region35: #{cnnnet_forward.1} parent=11 // pred_region
        _
      $region36: #{cnnnet_forward.1} parent=11 // pred_fallthru
        _
      // Predicated region
      $region37: #{cnnnet_forward.1} parent=11 // pred_check
        %p268 = pneg %p188
      $region38: #{cnnnet_forward.1} parent=11 // pred_check_branch
        %270 = sbr.rel (%p268) target = $region40
      $region39: #{cnnnet_forward.1} parent=11 // pred_region
        _
      $region40: #{cnnnet_forward.1} parent=11 // pred_fallthru
        _
      // Predicated region
      $region41: #{cnnnet_forward.1} parent=11 // pred_check
        %p271 = pneg %p209
      $region42: #{cnnnet_forward.1} parent=11 // pred_check_branch
        %273 = sbr.rel (%p271) target = $region44
      $region43: #{cnnnet_forward.1} parent=11 // pred_region
        _
      $region44: #{cnnnet_forward.1} parent=11 // pred_fallthru
        _
    $region12: #{cnnnet_forward.1} parent=5 // pred_fallthru
      _
    %p274 = scmp.lt.s32.totalorder %s15, 2
    // Predicated region
    $region45: #{cnnnet_forward.1} parent=5 // pred_check
      %p275 = pneg %p274
    $region46: #{cnnnet_forward.1} parent=5 // pred_check_branch
      %277 = sbr.rel (%p275) target = $region48
    $region47: #{cnnnet_forward.1} parent=5 // pred_region
      // Predicated region
      $region49: #{cnnnet_forward.1} parent=47 // pred_check
        %p278 = pneg %p35
      $region50: #{cnnnet_forward.1} parent=47 // pred_check_branch
        %280 = sbr.rel (%p278) target = $region52
      $region51: #{cnnnet_forward.1} parent=47 // pred_region
        %p281 = scmp.lt.s32.totalorder %s15, 1
        %s282 = scalar_select %p281, %s15, 1
        %s283 = smul.addr %s282, 2
        %s284 = smul.addr %s283, 4
        %s285 = scalar_lea.vmem %s0, %s284
      $region52: #{cnnnet_forward.1} parent=47 // pred_fallthru
        _
    $region48: #{cnnnet_forward.1} parent=5 // pred_fallthru
      _
    %p286 = scmp.le.s32.totalorder 1, %s15
    %p287 = scmp.lt.s32.totalorder %s15, 3
    %p288 = pnand %p286, %p287
    %p289 = pneg %p288
    // Predicated region
    $region53: #{cnnnet_forward.1} parent=5 // pred_check
      _
    $region54: #{cnnnet_forward.1} parent=5 // pred_check_branch
      %291 = sbr.rel (%p288) target = $region56
    $region55: #{cnnnet_forward.1} parent=5 // pred_region
      %s292 = ssub.s32 %s15, 1
      %p293 = scmp.lt.s32.totalorder %s20, 1
      %s294 = scalar_select %p293, %s20, 1
      %s295 = smul.addr %s294, 2
      %s296 = smul.addr %s295, 4
      %s297 = scalar_lea.vmem %s0, %s296
      %p298 = pneg %p41
      %p299 = pneg %p38
      %p300 = pneg %p62
      %p301 = pneg %p59
      %p302 = pneg %p83
      %p303 = pneg %p80
      %p304 = pneg %p104
      %p305 = pneg %p101
      %p306 = pneg %p125
      %p307 = pneg %p122
      %p308 = pneg %p146
      %p309 = pneg %p143
      %p310 = pneg %p167
      %p311 = pneg %p164
      %p312 = pneg %p188
      %p313 = pneg %p185
      %p314 = pneg %p209
      %p315 = pneg %p206
      %p316 = pneg %p235
      %p317 = pneg %p232
      %p318 = scmp.lt.s32.totalorder %s20, 1
      %s319 = scalar_select %p318, %s20, 1
      %s320 = smul.addr %s319, 2
      %s321 = smul.addr %s320, 4
      %s322 = scalar_lea.vmem %s9, %s321
      %p323 = scmp.lt.s32.totalorder %s20, 1
      %s324 = scalar_select %p323, %s20, 1
      %s325 = smul.addr %s324, 2
      %s326 = smul.addr %s325, 4
      %s327 = scalar_lea.vmem %s0, %s326
      %p328 = scmp.lt.s32.totalorder %s20, 1
      %s329 = scalar_select %p328, %s20, 1
      %s330 = smul.addr %s329, 2
      %s331 = smul.addr %s330, 4
      %s332 = scalar_lea.vmem %s9, %s331
      %v333 = vlaneseq
      %v334 = vand.u32 %v333, 127
      %v335 = vadd.s32 %v334, 128
      %vm336 = vcmp.lt.s32.totalorder %v334, 0
      %v337 = vsub.s32 0, %v334
      %v338 = vsel %vm336, %v337, %v334
      %v339 = vshrl.u32 %v338, 4
      %v340 = vand.u32 %v338, 15
      %v341 = vsub.s32 0, %v340
      %v342 = vsel %vm336, %v341, %v340
      %vm343 = vcmp.lt.s32.totalorder %v335, 0
      %v344 = vsub.s32 0, %v335
      %v345 = vsel %vm343, %v344, %v335
      %v346 = vshrl.u32 %v345, 4
      %v347 = vand.u32 %v345, 15
      %v348 = vsub.s32 0, %v347
      %v349 = vsel %vm343, %v348, %v347
      %vm350 = vcmp.ne.s32.totalorder %v342, 0
      %vm351 = vcmp.ne.s32.totalorder %v349, 0
      %vm352 = vcmp.lt.s32.totalorder %v342, 0
      %vm353 = vcmp.lt.s32.totalorder %v349, 0
      %vm354 = vmand %vm352, %vm350
      %vm355 = vmand %vm353, %vm351
      %v356 = vadd.s32 %v342, 16
      %v357 = vadd.s32 %v349, 16
      %v358 = vsel %vm354, %v356, %v342
      %v359 = vsel %vm355, %v357, %v349
      %vm360 = vcmp.ne.s32.totalorder %v358, 0
      %vm361 = vcmp.ne.s32.totalorder %v359, 0
      %v362 = vsel %vm360, 1, 0
      %v363 = vsel %vm361, 1, 0
      %v364 = vcvt.s32.f32 %v362
      %v365 = vcvt.s32.f32 %v363
      %vm366 = vcmp.ne.s32.totalorder %v358, 15
      %vm367 = vcmp.ne.s32.totalorder %v359, 15
      %v368 = vsel %vm366, 1, 0
      %v369 = vsel %vm367, 1, 0
      %v370 = vcvt.s32.f32 %v368
      %v371 = vcvt.s32.f32 %v369
      %372 = vst [vmem:[#allocation2] sm:$0xff] 0.0
      %373 = vst [vmem:[#allocation2 + $0x8] sm:$0xff] 0.0
      %vm374 = vcmask 277504
      %375 = vst.msk [vmem:[#allocation2 + $0x10] sm:$0xff] %vm374, 0.0
      %376 = vst [vmem:[#allocation2 + $0x18] sm:$0xff] 0.0
      %377 = vst [vmem:[#allocation2 + $0x20] sm:$0xff] 0.0
      %378 = vst.msk [vmem:[#allocation2 + $0x28] sm:$0xff] %vm374, 0.0
      %379 = vst [vmem:[#allocation2 + $0x30] sm:$0xff] 0.0
      %380 = vst [vmem:[#allocation2 + $0x38] sm:$0xff] 0.0
      %381 = vst.msk [vmem:[#allocation2 + $0x40] sm:$0xff] %vm374, 0.0
      %382 = vst [vmem:[#allocation2 + $0x48] sm:$0xff] 0.0
      %383 = vst [vmem:[#allocation2 + $0x50] sm:$0xff] 0.0
      %384 = vst.msk [vmem:[#allocation2 + $0x58] sm:$0xff] %vm374, 0.0
      %v385 = vld [vmem:[%s327] sm:$0x77]
      %v387 = vcombine.high %v385, %v385
      %388 = vrot.lane.b32.xlu0 %v385, 17
      %v389 = vpop.permute.xlu0 %388
      %390 = vrot.lane.b32.xlu0 %v387, 17
      %v391 = vpop.permute.xlu0 %390
      %vm392 = vcmask 138240
      %v393 = vsel %vm392, %v389, %v391
      %vm397 = vcmask 1042568
      %398 = vst.msk [vmem:[#allocation2] sm:$0x7] %vm397, %v389
      %399 = vst [vmem:[#allocation2 + $0x8] sm:$0x7] %v393
      %vm400 = vcmask 133120
      %401 = vst.msk [vmem:[#allocation2 + $0x10] sm:$0x7] %vm400, %v391
      %v402 = vld [vmem:[#allocation2] sm:$0x7]
      %v403 = vld [vmem:[#allocation2 + $0x8] sm:$0x7]
      %v404 = vmul.f32 %v402, %v364
      %v405 = vmul.f32 %v403, %v365
      %406 = vst [vmem:[#allocation3] sm:$0x7] %v404
      %407 = vst [vmem:[#allocation3 + $0x8] sm:$0x7] %v405
      %v408 = vld [vmem:[#allocation2] sm:$0x7]
      %v409 = vld [vmem:[#allocation2 + $0x8] sm:$0x7]
      %v410 = vld [vmem:[#allocation2 + $0x10] sm:$0x7]
      %v414 = vrot.slane %v408, 5
      %v415 = vrot.slane %v409, 5
      %v416 = vrot.slane %v410, 5
      %417 = vrot.lane.b32.xlu0 %v414, 127
      %v418 = vpop.permute.xlu0 %417
      %419 = vrot.lane.b32.xlu0 %v415, 127
      %v420 = vpop.permute.xlu0 %419
      %421 = vrot.lane.b32.xlu0 %v416, 127
      %v422 = vpop.permute.xlu0 %421
      %vm423 = vcmask 1039360
      %v424 = vsel %vm423, %v418, %v420
      %v425 = vsel %vm423, %v420, %v422
      %428 = vst [vmem:[#allocation3] sm:$0x38] %v424
      %429 = vst [vmem:[#allocation3 + $0x8] sm:$0x38] %v425
      %v430 = vld [vmem:[#allocation2] sm:$0x7]
      %v431 = vld [vmem:[#allocation2 + $0x8] sm:$0x7]
      %v432 = vld [vmem:[#allocation2 + $0x10] sm:$0x7]
      %435 = vrot.lane.b32.xlu0 %v370, 2
      %v436 = vpop.permute.xlu0 %435
      %437 = vrot.lane.b32.xlu0 %v371, 2
      %v438 = vpop.permute.xlu0 %437
      %vm439 = vcmask 15360
      %v440 = vsel %vm439, %v436, %v438
      %v444 = vmul.f32 %v430, %v436
      %v445 = vmul.f32 %v431, %v440
      %v446 = vmul.f32 %v432, %v438
      %v450 = vrot.slane %v444, 2
      %v451 = vrot.slane %v445, 2
      %v452 = vrot.slane %v446, 2
      %453 = vrot.lane.b32.xlu0 %v450, 126
      %v454 = vpop.permute.xlu0 %453
      %455 = vrot.lane.b32.xlu0 %v451, 126
      %v456 = vpop.permute.xlu0 %455
      %457 = vrot.lane.b32.xlu0 %v452, 126
      %v458 = vpop.permute.xlu0 %457
      %vm459 = vcmask 1031168
      %v460 = vsel %vm459, %v454, %v456
      %v461 = vsel %vm459, %v456, %v458
      %464 = vst [vmem:[#allocation3] sm:$0xc0] %v460
      %465 = vst [vmem:[#allocation3 + $0x8] sm:$0xc0] %v461
      %466 = vst [vmem:[#allocation3 + $0x10] sm:$0x1] %v460
      %467 = vst [vmem:[#allocation3 + $0x18] sm:$0x1] %v461
      %v468 = vld [vmem:[#allocation2] sm:$0x7]
      %v469 = vld [vmem:[#allocation2 + $0x8] sm:$0x7]
      %v470 = vld [vmem:[#allocation2 + $0x10] sm:$0x7]
      %473 = vrot.lane.b32.xlu0 %v364, 16
      %v474 = vpop.permute.xlu0 %473
      %475 = vrot.lane.b32.xlu0 %v365, 16
      %v476 = vpop.permute.xlu0 %475
      %vm477 = vcmask 130048
      %v478 = vsel %vm477, %v474, %v476
      %v482 = vmul.f32 %v468, %v474
      %v483 = vmul.f32 %v469, %v478
      %v484 = vmul.f32 %v470, %v476
      %v488 = vrot.slane %v482, 7
      %v489 = vrot.slane %v483, 7
      %v490 = vrot.slane %v484, 7
      %491 = vrot.lane.b32.xlu0 %v488, 112
      %v492 = vpop.permute.xlu0 %491
      %493 = vrot.lane.b32.xlu0 %v489, 112
      %v494 = vpop.permute.xlu0 %493
      %495 = vrot.lane.b32.xlu0 %v490, 112
      %v496 = vpop.permute.xlu0 %495
      %vm497 = vcmask 916480
      %v498 = vsel %vm497, %v492, %v494
      %v499 = vsel %vm497, %v494, %v496
      %502 = vst [vmem:[#allocation3 + $0x10] sm:$0xe] %v498
      %503 = vst [vmem:[#allocation3 + $0x18] sm:$0xe] %v499
      %v504 = vld [vmem:[#allocation2] sm:$0x7]
      %v505 = vld [vmem:[#allocation2 + $0x8] sm:$0x7]
      %v506 = vld [vmem:[#allocation2 + $0x10] sm:$0x7]
      %v510 = vrot.slane %v504, 4
      %v511 = vrot.slane %v505, 4
      %v512 = vrot.slane %v506, 4
      %513 = vrot.lane.b32.xlu0 %v510, 111
      %v514 = vpop.permute.xlu0 %513
      %515 = vrot.lane.b32.xlu0 %v511, 111
      %v516 = vpop.permute.xlu0 %515
      %517 = vrot.lane.b32.xlu0 %v512, 111
      %v518 = vpop.permute.xlu0 %517
      %vm519 = vcmask 908288
      %v520 = vsel %vm519, %v514, %v516
      %v521 = vsel %vm519, %v516, %v518
      %524 = vst [vmem:[#allocation3 + $0x10] sm:$0x70] %v520
      %525 = vst [vmem:[#allocation3 + $0x18] sm:$0x70] %v521
      %v526 = vld [vmem:[#allocation2] sm:$0x7]
      %v527 = vld [vmem:[#allocation2 + $0x8] sm:$0x7]
      %v528 = vld [vmem:[#allocation2 + $0x10] sm:$0x7]
      %529 = vrot.lane.b32.xlu0 %v370, 18
      %v530 = vpop.permute.xlu0 %529
      %531 = vrot.lane.b32.xlu0 %v371, 18
      %v532 = vpop.permute.xlu0 %531
      %vm533 = vcmask 146432
      %v534 = vsel %vm533, %v530, %v532
      %v538 = vmul.f32 %v526, %v530
      %v539 = vmul.f32 %v527, %v534
      %v540 = vmul.f32 %v528, %v532
      %v544 = vrot.slane %v538, 1
      %v545 = vrot.slane %v539, 1
      %v546 = vrot.slane %v540, 1
      %547 = vrot.lane.b32.xlu0 %v544, 110
      %v548 = vpop.permute.xlu0 %547
      %549 = vrot.lane.b32.xlu0 %v545, 110
      %v550 = vpop.permute.xlu0 %549
      %551 = vrot.lane.b32.xlu0 %v546, 110
      %v552 = vpop.permute.xlu0 %551
      %vm553 = vcmask 900096
      %v554 = vsel %vm553, %v548, %v550
      %v555 = vsel %vm553, %v550, %v552
      %558 = vst [vmem:[#allocation3 + $0x10] sm:$0x80] %v554
      %559 = vst [vmem:[#allocation3 + $0x18] sm:$0x80] %v555
      %560 = vst [vmem:[#allocation3 + $0x20] sm:$0x3] %v554
      %561 = vst [vmem:[#allocation3 + $0x28] sm:$0x3] %v555
      %v562 = vld [vmem:[#allocation2] sm:$0x7]
      %v563 = vld [vmem:[#allocation2 + $0x8] sm:$0x7]
      %v564 = vld [vmem:[#allocation2 + $0x10] sm:$0x7]
      %565 = vrot.lane.b32.xlu0 %v364, 32
      %v566 = vpop.permute.xlu0 %565
      %567 = vrot.lane.b32.xlu0 %v365, 32
      %v568 = vpop.permute.xlu0 %567
      %vm569 = vcmask 261120
      %v570 = vsel %vm569, %v566, %v568
      %v574 = vmul.f32 %v562, %v566
      %v575 = vmul.f32 %v563, %v570
      %v576 = vmul.f32 %v564, %v568
      %v580 = vrot.slane %v574, 6
      %v581 = vrot.slane %v575, 6
      %v582 = vrot.slane %v576, 6
      %583 = vrot.lane.b32.xlu0 %v580, 96
      %v584 = vpop.permute.xlu0 %583
      %585 = vrot.lane.b32.xlu0 %v581, 96
      %v586 = vpop.permute.xlu0 %585
      %587 = vrot.lane.b32.xlu0 %v582, 96
      %v588 = vpop.permute.xlu0 %587
      %vm589 = vcmask 785408
      %v590 = vsel %vm589, %v584, %v586
      %v591 = vsel %vm589, %v586, %v588
      %594 = vst [vmem:[#allocation3 + $0x20] sm:$0x1c] %v590
      %595 = vst [vmem:[#allocation3 + $0x28] sm:$0x1c] %v591
      %v596 = vld [vmem:[#allocation2] sm:$0x7]
      %v597 = vld [vmem:[#allocation2 + $0x8] sm:$0x7]
      %v598 = vld [vmem:[#allocation2 + $0x10] sm:$0x7]
      %v602 = vrot.slane %v596, 3
      %v603 = vrot.slane %v597, 3
      %v604 = vrot.slane %v598, 3
      %605 = vrot.lane.b32.xlu0 %v602, 95
      %v606 = vpop.permute.xlu0 %605
      %607 = vrot.lane.b32.xlu0 %v603, 95
      %v608 = vpop.permute.xlu0 %607
      %609 = vrot.lane.b32.xlu0 %v604, 95
      %v610 = vpop.permute.xlu0 %609
      %vm611 = vcmask 777216
      %v612 = vsel %vm611, %v606, %v608
      %v613 = vsel %vm611, %v608, %v610
      %616 = vst [vmem:[#allocation3 + $0x20] sm:$0xe0] %v612
      %617 = vst [vmem:[#allocation3 + $0x28] sm:$0xe0] %v613
      %v618 = vld [vmem:[#allocation2] sm:$0x7]
      %v619 = vld [vmem:[#allocation2 + $0x8] sm:$0x7]
      %v620 = vld [vmem:[#allocation2 + $0x10] sm:$0x7]
      %621 = vrot.lane.b32.xlu0 %v370, 34
      %v622 = vpop.permute.xlu0 %621
      %623 = vrot.lane.b32.xlu0 %v371, 34
      %v624 = vpop.permute.xlu0 %623
      %v625 = vsel %vm374, %v622, %v624
      %v629 = vmul.f32 %v618, %v622
      %v630 = vmul.f32 %v619, %v625
      %v631 = vmul.f32 %v620, %v624
      %635 = vrot.lane.b32.xlu0 %v629, 94
      %v636 = vpop.permute.xlu0 %635
      %637 = vrot.lane.b32.xlu0 %v630, 94
      %v638 = vpop.permute.xlu0 %637
      %639 = vrot.lane.b32.xlu0 %v631, 94
      %v640 = vpop.permute.xlu0 %639
      %vm641 = vcmask 769024
      %v642 = vsel %vm641, %v636, %v638
      %v643 = vsel %vm641, %v638, %v640
      %646 = vst [vmem:[#allocation3 + $0x30] sm:$0x7] %v642
      %647 = vst [vmem:[#allocation3 + $0x38] sm:$0x7] %v643
      %v648 = vld [vmem:[%s1] sm:$0xff]
      %v649 = vld [vmem:[%s1 + $0x8] sm:$0xff]
      %v650 = vld [vmem:[#allocation3] sm:$0xff]
      %v651 = vld [vmem:[#allocation3 + $0x8] sm:$0xff]
      %v652 = vld [vmem:[#allocation3 + $0x10] sm:$0xff]
      %v653 = vld [vmem:[#allocation3 + $0x18] sm:$0xff]
      %v654 = vld [vmem:[#allocation3 + $0x20] sm:$0xff]
      %v655 = vld [vmem:[#allocation3 + $0x28] sm:$0xff]
      %v656 = vld [vmem:[#allocation3 + $0x30] sm:$0x7]
      %v657 = vld [vmem:[#allocation3 + $0x38] sm:$0x7]
      %vm658 = vcmask 220160
      %v660 = vsel %vm658, %v648, 0
      %v663 = vsel %vm658, %v649, 0
      %vm665 = vcmask 1042432
      %v667 = vsel %vm665, %v656, 0
      %v670 = vsel %vm665, %v657, 0
      %672 = vmatprep.subr.mxu0 %v651
      %673 = vmatpush1.msra.mxu0 %v650
      %674 = vmatprep.subr.mxu0 %v653
      %675 = vmatpush1.msra.mxu0 %v652
      %676 = vmatprep.subr.mxu0 %v655
      %677 = vmatpush1.msra.mxu0 %v654
      %678 = vmatprep.subr.mxu0 %v670
      %679 = vmatpush1.msra.mxu0 %v667
      %680 = vmatprep.subr.mxu0 0.0
      %681 = vmatpush1.msra.mxu0 0.0
      %682 = vmatprep.subr.mxu0 0.0
      %683 = vmatpush1.msra.mxu0 0.0
      %684 = vmatprep.subr.mxu0 0.0
      %685 = vmatpush1.msra.mxu0 0.0
      %686 = vmatprep.subr.mxu0 0.0
      %687 = vmatpush1.msra.mxu0 0.0
      %688 = vmatprep.subr.mxu0 0.0
      %689 = vmatpush1.msra.mxu0 0.0
      %690 = vmatprep.subr.mxu0 0.0
      %691 = vmatpush1.msra.mxu0 0.0
      %692 = vmatprep.subr.mxu0 0.0
      %693 = vmatpush1.msra.mxu0 0.0
      %694 = vmatprep.subr.mxu0 0.0
      %695 = vmatpush1.msra.mxu0 0.0
      %696 = vmatprep.subr.mxu0 0.0
      %697 = vmatpush1.msra.mxu0 0.0
      %698 = vmatprep.subr.mxu0 0.0
      %699 = vmatpush1.msra.mxu0 0.0
      %700 = vmatprep.subr.mxu0 0.0
      %701 = vmatpush1.msra.mxu0 0.0
      %702 = vmatprep.subr.mxu0 0.0
      %703 = vmatpush1.msra.mxu0 0.0
      %704 = vmatprep.subr.mxu0 0.0
      %705 = vmatpush1.msra.mxu0 0.0
      %706 = vmatprep.subr.mxu0 0.0
      %707 = vmatpush1.msra.mxu0 0.0
      %708 = vmatprep.subr.mxu0 0.0
      %709 = vmatpush1.msra.mxu0 0.0
      %710 = vmatprep.subr.mxu0 0.0
      %711 = vmatpush1.msra.mxu0 0.0
      %712 = vmatprep.subr.mxu0 0.0
      %713 = vmatpush1.msra.mxu0 0.0
      %714 = vmatprep.subr.mxu0 0.0
      %715 = vmatpush1.msra.mxu0 0.0
      %716 = vmatprep.subr.mxu0 0.0
      %717 = vmatpush1.msra.mxu0 0.0
      %718 = vmatprep.subr.mxu0 0.0
      %719 = vmatpush1.msra.mxu0 0.0
      %720 = vmatprep.subr.mxu0 0.0
      %721 = vmatpush1.msra.mxu0 0.0
      %722 = vmatprep.subr.mxu0 0.0
      %723 = vmatpush1.msra.mxu0 0.0
      %724 = vmatprep.subr.mxu0 0.0
      %725 = vmatpush1.msra.mxu0 0.0
      %726 = vmatprep.subr.mxu0 0.0
      %727 = vmatpush1.msra.mxu0 0.0
      %728 = vmatprep.subr.mxu0 0.0
      %729 = vmatpush1.msra.mxu0 0.0
      %730 = vmatprep.subr.mxu0 0.0
      %731 = vmatpush1.msra.mxu0 0.0
      %732 = vmatprep.subr.mxu0 0.0
      %733 = vmatpush1.msra.mxu0 0.0
      %734 = vmatprep.subr.mxu0 0.0
      %735 = vmatpush1.msra.mxu0 0.0
      %736 = vmatprep.mubr.f32.mxu0 0.0
      %737 = vmatmul.mubr.f32.gmra.mrb[0].mxu0 %v660
      %v738 = vpop.f32.mrb[0].mxu0
      %v739 = vadd.f32 0.0, %v738
      %v740 = vpop.f32.mrb[0].mxu0
      %v741 = vadd.f32 0.0, %v740
      %742 = vmatprep.mubr.f32.mxu0 0.0
      %743 = vmatmul.mubr.f32.gmra.mrb[0].mxu0 %v663
      %v744 = vpop.f32.mrb[0].mxu0
      %v745 = vadd.f32 0.0, %v744
      %v746 = vpop.f32.mrb[0].mxu0
      %v747 = vadd.f32 0.0, %v746
      %748 = vdwg.mxu0
      %v749 = vld [vmem:[%s5] sm:$0xff]
      %v750 = vld [vmem:[%s5 + $0x8] sm:$0xff]
      %752 = vset.pattern.permute.xlu0 0
      %753 = vperm.xlu0 %752, %v749
      %v754 = vpop.permute.xlu0 %753
      %757 = vset.pattern.permute.xlu0 0
      %758 = vperm.xlu0 %757, %v750
      %v759 = vpop.permute.xlu0 %758
      %v761 = vmul.f32 %v739, %v754
      %v762 = vmul.f32 %v741, %v754
      %v763 = vmul.f32 %v745, %v759
      %v764 = vmul.f32 %v747, %v759
      %s765 = scalar_lea.vmem %s5, 16
      %v766 = vld [vmem:[%s765] sm:$0xff]
      %v767 = vld [vmem:[%s765 + $0x8] sm:$0xff]
      %769 = vset.pattern.permute.xlu0 0
      %770 = vperm.xlu0 %769, %v766
      %v771 = vpop.permute.xlu0 %770
      %774 = vset.pattern.permute.xlu0 0
      %775 = vperm.xlu0 %774, %v767
      %v776 = vpop.permute.xlu0 %775
      %v778 = vadd.f32 %v761, %v771
      %v779 = vadd.f32 %v762, %v771
      %v780 = vadd.f32 %v763, %v776
      %v781 = vadd.f32 %v764, %v776
      %v782 = vmax.f32 %v778, 0.0
      %v783 = vmax.f32 %v779, 0.0
      %v784 = vmax.f32 %v780, 0.0
      %v785 = vmax.f32 %v781, 0.0
      %790 = vrot.lane.b32.xlu0 %v782, 17
      %v791 = vpop.permute.xlu0 %790
      %792 = vrot.lane.b32.xlu0 %v783, 17
      %v793 = vpop.permute.xlu0 %792
      %794 = vrot.lane.b32.xlu0 %v784, 17
      %v795 = vpop.permute.xlu0 %794
      %796 = vrot.lane.b32.xlu0 %v785, 17
      %v797 = vpop.permute.xlu0 %796
      %v798 = vsel %vm392, %v791, %v793
      %v799 = vsel %vm392, %v795, %v797
      %vm806 = vcmask 1047688
      %807 = vst.msk [vmem:[#allocation2] sm:$0xff] %vm806, %v791
      %808 = vst [vmem:[#allocation2 + $0x8] sm:$0xff] %v798
      %809 = vst.msk [vmem:[#allocation2 + $0x10] sm:$0xff] %vm392, %v793
      %810 = vst.msk [vmem:[#allocation2 + $0x18] sm:$0xff] %vm806, %v795
      %811 = vst [vmem:[#allocation2 + $0x20] sm:$0xff] %v799
      %812 = vst.msk [vmem:[#allocation2 + $0x28] sm:$0xff] %vm392, %v797
      %v813 = vld [vmem:[#allocation2] sm:$0xff]
      %v814 = vld [vmem:[#allocation2 + $0x8] sm:$0xff]
      %v815 = vld [vmem:[#allocation2 + $0x18] sm:$0xff]
      %v816 = vld [vmem:[#allocation2 + $0x20] sm:$0xff]
      %v817 = vmul.f32 %v813, %v364
      %v818 = vmul.f32 %v814, %v365
      %v819 = vmul.f32 %v815, %v364
      %v820 = vmul.f32 %v816, %v365
      %821 = vst [vmem:[#allocation3] sm:$0xff] %v817
      %822 = vst [vmem:[#allocation3 + $0x8] sm:$0xff] %v818
      %823 = vst [vmem:[#allocation3 + $0x10] sm:$0xff] %v819
      %824 = vst [vmem:[#allocation3 + $0x18] sm:$0xff] %v820
      %v825 = vld [vmem:[#allocation2] sm:$0xff]
      %v826 = vld [vmem:[#allocation2 + $0x8] sm:$0xff]
      %v827 = vld [vmem:[#allocation2 + $0x10] sm:$0xff]
      %v828 = vld [vmem:[#allocation2 + $0x18] sm:$0xff]
      %v829 = vld [vmem:[#allocation2 + $0x20] sm:$0xff]
      %v830 = vld [vmem:[#allocation2 + $0x28] sm:$0xff]
      %837 = vrot.lane.b32.xlu0 %v825, 127
      %v838 = vpop.permute.xlu0 %837
      %839 = vrot.lane.b32.xlu0 %v826, 127
      %v840 = vpop.permute.xlu0 %839
      %841 = vrot.lane.b32.xlu0 %v827, 127
      %v842 = vpop.permute.xlu0 %841
      %843 = vrot.lane.b32.xlu0 %v828, 127
      %v844 = vpop.permute.xlu0 %843
      %845 = vrot.lane.b32.xlu0 %v829, 127
      %v846 = vpop.permute.xlu0 %845
      %847 = vrot.lane.b32.xlu0 %v830, 127
      %v848 = vpop.permute.xlu0 %847
      %v849 = vsel %vm423, %v838, %v840
      %v850 = vsel %vm423, %v840, %v842
      %v851 = vsel %vm423, %v844, %v846
      %v852 = vsel %vm423, %v846, %v848
      %857 = vst [vmem:[#allocation3 + $0x20] sm:$0xff] %v849
      %858 = vst [vmem:[#allocation3 + $0x28] sm:$0xff] %v850
      %859 = vst [vmem:[#allocation3 + $0x30] sm:$0xff] %v851
      %860 = vst [vmem:[#allocation3 + $0x38] sm:$0xff] %v852
      %v861 = vld [vmem:[#allocation2] sm:$0xff]
      %v862 = vld [vmem:[#allocation2 + $0x8] sm:$0xff]
      %v863 = vld [vmem:[#allocation2 + $0x10] sm:$0xff]
      %v864 = vld [vmem:[#allocation2 + $0x18] sm:$0xff]
      %v865 = vld [vmem:[#allocation2 + $0x20] sm:$0xff]
      %v866 = vld [vmem:[#allocation2 + $0x28] sm:$0xff]
      %v867 = vmul.f32 %v861, %v436
      %v868 = vmul.f32 %v862, %v440
      %v869 = vmul.f32 %v863, %v438
      %v870 = vmul.f32 %v864, %v436
      %v871 = vmul.f32 %v865, %v440
      %v872 = vmul.f32 %v866, %v438
      %879 = vrot.lane.b32.xlu0 %v867, 126
      %v880 = vpop.permute.xlu0 %879
      %881 = vrot.lane.b32.xlu0 %v868, 126
      %v882 = vpop.permute.xlu0 %881
      %883 = vrot.lane.b32.xlu0 %v869, 126
      %v884 = vpop.permute.xlu0 %883
      %885 = vrot.lane.b32.xlu0 %v870, 126
      %v886 = vpop.permute.xlu0 %885
      %887 = vrot.lane.b32.xlu0 %v871, 126
      %v888 = vpop.permute.xlu0 %887
      %889 = vrot.lane.b32.xlu0 %v872, 126
      %v890 = vpop.permute.xlu0 %889
      %v891 = vsel %vm459, %v880, %v882
      %v892 = vsel %vm459, %v882, %v884
      %v893 = vsel %vm459, %v886, %v888
      %v894 = vsel %vm459, %v888, %v890
      %899 = vst [vmem:[#allocation3 + $0x40] sm:$0xff] %v891
      %900 = vst [vmem:[#allocation3 + $0x48] sm:$0xff] %v892
      %901 = vst [vmem:[#allocation3 + $0x50] sm:$0xff] %v893
      %902 = vst [vmem:[#allocation3 + $0x58] sm:$0xff] %v894
      %v903 = vld [vmem:[#allocation2] sm:$0xff]
      %v904 = vld [vmem:[#allocation2 + $0x8] sm:$0xff]
      %v905 = vld [vmem:[#allocation2 + $0x10] sm:$0xff]
      %v906 = vld [vmem:[#allocation2 + $0x18] sm:$0xff]
      %v907 = vld [vmem:[#allocation2 + $0x20] sm:$0xff]
      %v908 = vld [vmem:[#allocation2 + $0x28] sm:$0xff]
      %v909 = vmul.f32 %v903, %v474
      %v910 = vmul.f32 %v904, %v478
      %v911 = vmul.f32 %v905, %v476
      %v912 = vmul.f32 %v906, %v474
      %v913 = vmul.f32 %v907, %v478
      %v914 = vmul.f32 %v908, %v476
      %921 = vrot.lane.b32.xlu0 %v909, 112
      %v922 = vpop.permute.xlu0 %921
      %923 = vrot.lane.b32.xlu0 %v910, 112
      %v924 = vpop.permute.xlu0 %923
      %925 = vrot.lane.b32.xlu0 %v911, 112
      %v926 = vpop.permute.xlu0 %925
      %927 = vrot.lane.b32.xlu0 %v912, 112
      %v928 = vpop.permute.xlu0 %927
      %929 = vrot.lane.b32.xlu0 %v913, 112
      %v930 = vpop.permute.xlu0 %929
      %931 = vrot.lane.b32.xlu0 %v914, 112
      %v932 = vpop.permute.xlu0 %931
      %v933 = vsel %vm497, %v922, %v924
      %v934 = vsel %vm497, %v924, %v926
      %v935 = vsel %vm497, %v928, %v930
      %v936 = vsel %vm497, %v930, %v932
      %941 = vst [vmem:[#allocation3 + $0x60] sm:$0xff] %v933
      %942 = vst [vmem:[#allocation3 + $0x68] sm:$0xff] %v934
      %943 = vst [vmem:[#allocation3 + $0x70] sm:$0xff] %v935
      %944 = vst [vmem:[#allocation3 + $0x78] sm:$0xff] %v936
      %v945 = vld [vmem:[#allocation2] sm:$0xff]
      %v946 = vld [vmem:[#allocation2 + $0x8] sm:$0xff]
      %v947 = vld [vmem:[#allocation2 + $0x10] sm:$0xff]
      %v948 = vld [vmem:[#allocation2 + $0x18] sm:$0xff]
      %v949 = vld [vmem:[#allocation2 + $0x20] sm:$0xff]
      %v950 = vld [vmem:[#allocation2 + $0x28] sm:$0xff]
      %957 = vrot.lane.b32.xlu0 %v945, 111
      %v958 = vpop.permute.xlu0 %957
      %959 = vrot.lane.b32.xlu0 %v946, 111
      %v960 = vpop.permute.xlu0 %959
      %961 = vrot.lane.b32.xlu0 %v947, 111
      %v962 = vpop.permute.xlu0 %961
      %963 = vrot.lane.b32.xlu0 %v948, 111
      %v964 = vpop.permute.xlu0 %963
      %965 = vrot.lane.b32.xlu0 %v949, 111
      %v966 = vpop.permute.xlu0 %965
      %967 = vrot.lane.b32.xlu0 %v950, 111
      %v968 = vpop.permute.xlu0 %967
      %v969 = vsel %vm519, %v958, %v960
      %v970 = vsel %vm519, %v960, %v962
      %v971 = vsel %vm519, %v964, %v966
      %v972 = vsel %vm519, %v966, %v968
      %977 = vst [vmem:[#allocation3 + $0x80] sm:$0xff] %v969
      %978 = vst [vmem:[#allocation3 + $0x88] sm:$0xff] %v970
      %979 = vst [vmem:[#allocation3 + $0x90] sm:$0xff] %v971
      %980 = vst [vmem:[#allocation3 + $0x98] sm:$0xff] %v972
      %v981 = vld [vmem:[#allocation2] sm:$0xff]
      %v982 = vld [vmem:[#allocation2 + $0x8] sm:$0xff]
      %v983 = vld [vmem:[#allocation2 + $0x10] sm:$0xff]
      %v984 = vld [vmem:[#allocation2 + $0x18] sm:$0xff]
      %v985 = vld [vmem:[#allocation2 + $0x20] sm:$0xff]
      %v986 = vld [vmem:[#allocation2 + $0x28] sm:$0xff]
      %v987 = vmul.f32 %v981, %v530
      %v988 = vmul.f32 %v982, %v534
      %v989 = vmul.f32 %v983, %v532
      %v990 = vmul.f32 %v984, %v530
      %v991 = vmul.f32 %v985, %v534
      %v992 = vmul.f32 %v986, %v532
      %999 = vrot.lane.b32.xlu0 %v987, 110
      %v1000 = vpop.permute.xlu0 %999
      %1001 = vrot.lane.b32.xlu0 %v988, 110
      %v1002 = vpop.permute.xlu0 %1001
      %1003 = vrot.lane.b32.xlu0 %v989, 110
      %v1004 = vpop.permute.xlu0 %1003
      %1005 = vrot.lane.b32.xlu0 %v990, 110
      %v1006 = vpop.permute.xlu0 %1005
      %1007 = vrot.lane.b32.xlu0 %v991, 110
      %v1008 = vpop.permute.xlu0 %1007
      %1009 = vrot.lane.b32.xlu0 %v992, 110
      %v1010 = vpop.permute.xlu0 %1009
      %v1011 = vsel %vm553, %v1000, %v1002
      %v1012 = vsel %vm553, %v1002, %v1004
      %v1013 = vsel %vm553, %v1006, %v1008
      %v1014 = vsel %vm553, %v1008, %v1010
      %1019 = vst [vmem:[#allocation3 + $0xa0] sm:$0xff] %v1011
      %1020 = vst [vmem:[#allocation3 + $0xa8] sm:$0xff] %v1012
      %1021 = vst [vmem:[#allocation3 + $0xb0] sm:$0xff] %v1013
      %1022 = vst [vmem:[#allocation3 + $0xb8] sm:$0xff] %v1014
      %v1023 = vld [vmem:[#allocation2] sm:$0xff]
      %v1024 = vld [vmem:[#allocation2 + $0x8] sm:$0xff]
      %v1025 = vld [vmem:[#allocation2 + $0x10] sm:$0xff]
      %v1026 = vld [vmem:[#allocation2 + $0x18] sm:$0xff]
      %v1027 = vld [vmem:[#allocation2 + $0x20] sm:$0xff]
      %v1028 = vld [vmem:[#allocation2 + $0x28] sm:$0xff]
      %v1029 = vmul.f32 %v1023, %v566
      %v1030 = vmul.f32 %v1024, %v570
      %v1031 = vmul.f32 %v1025, %v568
      %v1032 = vmul.f32 %v1026, %v566
      %v1033 = vmul.f32 %v1027, %v570
      %v1034 = vmul.f32 %v1028, %v568
      %1041 = vrot.lane.b32.xlu0 %v1029, 96
      %v1042 = vpop.permute.xlu0 %1041
      %1043 = vrot.lane.b32.xlu0 %v1030, 96
      %v1044 = vpop.permute.xlu0 %1043
      %1045 = vrot.lane.b32.xlu0 %v1031, 96
      %v1046 = vpop.permute.xlu0 %1045
      %1047 = vrot.lane.b32.xlu0 %v1032, 96
      %v1048 = vpop.permute.xlu0 %1047
      %1049 = vrot.lane.b32.xlu0 %v1033, 96
      %v1050 = vpop.permute.xlu0 %1049
      %1051 = vrot.lane.b32.xlu0 %v1034, 96
      %v1052 = vpop.permute.xlu0 %1051
      %v1053 = vsel %vm589, %v1042, %v1044
      %v1054 = vsel %vm589, %v1044, %v1046
      %v1055 = vsel %vm589, %v1048, %v1050
      %v1056 = vsel %vm589, %v1050, %v1052
      %1061 = vst [vmem:[#allocation3 + $0xc0] sm:$0xff] %v1053
      %1062 = vst [vmem:[#allocation3 + $0xc8] sm:$0xff] %v1054
      %1063 = vst [vmem:[#allocation3 + $0xd0] sm:$0xff] %v1055
      %1064 = vst [vmem:[#allocation3 + $0xd8] sm:$0xff] %v1056
      %v1065 = vld [vmem:[#allocation2] sm:$0xff]
      %v1066 = vld [vmem:[#allocation2 + $0x8] sm:$0xff]
      %v1067 = vld [vmem:[#allocation2 + $0x10] sm:$0xff]
      %v1068 = vld [vmem:[#allocation2 + $0x18] sm:$0xff]
      %v1069 = vld [vmem:[#allocation2 + $0x20] sm:$0xff]
      %v1070 = vld [vmem:[#allocation2 + $0x28] sm:$0xff]
      %1077 = vrot.lane.b32.xlu0 %v1065, 95
      %v1078 = vpop.permute.xlu0 %1077
      %1079 = vrot.lane.b32.xlu0 %v1066, 95
      %v1080 = vpop.permute.xlu0 %1079
      %1081 = vrot.lane.b32.xlu0 %v1067, 95
      %v1082 = vpop.permute.xlu0 %1081
      %1083 = vrot.lane.b32.xlu0 %v1068, 95
      %v1084 = vpop.permute.xlu0 %1083
      %1085 = vrot.lane.b32.xlu0 %v1069, 95
      %v1086 = vpop.permute.xlu0 %1085
      %1087 = vrot.lane.b32.xlu0 %v1070, 95
      %v1088 = vpop.permute.xlu0 %1087
      %v1089 = vsel %vm611, %v1078, %v1080
      %v1090 = vsel %vm611, %v1080, %v1082
      %v1091 = vsel %vm611, %v1084, %v1086
      %v1092 = vsel %vm611, %v1086, %v1088
      %1097 = vst [vmem:[#allocation3 + $0xe0] sm:$0xff] %v1089
      %1098 = vst [vmem:[#allocation3 + $0xe8] sm:$0xff] %v1090
      %1099 = vst [vmem:[#allocation3 + $0xf0] sm:$0xff] %v1091
      %1100 = vst [vmem:[#allocation3 + $0xf8] sm:$0xff] %v1092
      %v1101 = vld [vmem:[#allocation2] sm:$0xff]
      %v1102 = vld [vmem:[#allocation2 + $0x8] sm:$0xff]
      %v1103 = vld [vmem:[#allocation2 + $0x10] sm:$0xff]
      %v1104 = vld [vmem:[#allocation2 + $0x18] sm:$0xff]
      %v1105 = vld [vmem:[#allocation2 + $0x20] sm:$0xff]
      %v1106 = vld [vmem:[#allocation2 + $0x28] sm:$0xff]
      %v1107 = vmul.f32 %v1101, %v622
      %v1108 = vmul.f32 %v1102, %v625
      %v1109 = vmul.f32 %v1103, %v624
      %v1110 = vmul.f32 %v1104, %v622
      %v1111 = vmul.f32 %v1105, %v625
      %v1112 = vmul.f32 %v1106, %v624
      %1119 = vrot.lane.b32.xlu0 %v1107, 94
      %v1120 = vpop.permute.xlu0 %1119
      %1121 = vrot.lane.b32.xlu0 %v1108, 94
      %v1122 = vpop.permute.xlu0 %1121
      %1123 = vrot.lane.b32.xlu0 %v1109, 94
      %v1124 = vpop.permute.xlu0 %1123
      %1125 = vrot.lane.b32.xlu0 %v1110, 94
      %v1126 = vpop.permute.xlu0 %1125
      %1127 = vrot.lane.b32.xlu0 %v1111, 94
      %v1128 = vpop.permute.xlu0 %1127
      %1129 = vrot.lane.b32.xlu0 %v1112, 94
      %v1130 = vpop.permute.xlu0 %1129
      %v1131 = vsel %vm641, %v1120, %v1122
      %v1132 = vsel %vm641, %v1122, %v1124
      %v1133 = vsel %vm641, %v1126, %v1128
      %v1134 = vsel %vm641, %v1128, %v1130
      %1139 = vst [vmem:[#allocation3 + $0x100] sm:$0xff] %v1131
      %1140 = vst [vmem:[#allocation3 + $0x108] sm:$0xff] %v1132
      %1141 = vst [vmem:[#allocation3 + $0x110] sm:$0xff] %v1133
      %1142 = vst [vmem:[#allocation3 + $0x118] sm:$0xff] %v1134
      %v1143 = vld [vmem:[%s2] sm:$0xff]
      %v1144 = vld [vmem:[%s2 + $0x8] sm:$0xff]
      %v1145 = vld [vmem:[%s2 + $0x10] sm:$0xff]
      %v1146 = vld [vmem:[%s2 + $0x18] sm:$0xff]
      %v1147 = vld [vmem:[%s2 + $0x20] sm:$0xff]
      %v1148 = vld [vmem:[%s2 + $0x28] sm:$0xff]
      %v1149 = vld [vmem:[%s2 + $0x30] sm:$0xff]
      %v1150 = vld [vmem:[%s2 + $0x38] sm:$0xff]
      %v1151 = vld [vmem:[#allocation3] sm:$0xff]
      %v1152 = vld [vmem:[#allocation3 + $0x8] sm:$0xff]
      %v1153 = vld [vmem:[#allocation3 + $0x10] sm:$0xff]
      %v1154 = vld [vmem:[#allocation3 + $0x18] sm:$0xff]
      %v1155 = vld [vmem:[#allocation3 + $0x20] sm:$0xff]
      %v1156 = vld [vmem:[#allocation3 + $0x28] sm:$0xff]
      %v1157 = vld [vmem:[#allocation3 + $0x30] sm:$0xff]
      %v1158 = vld [vmem:[#allocation3 + $0x38] sm:$0xff]
      %v1159 = vld [vmem:[#allocation3 + $0x40] sm:$0xff]
      %v1160 = vld [vmem:[#allocation3 + $0x48] sm:$0xff]
      %v1161 = vld [vmem:[#allocation3 + $0x50] sm:$0xff]
      %v1162 = vld [vmem:[#allocation3 + $0x58] sm:$0xff]
      %v1163 = vld [vmem:[#allocation3 + $0x60] sm:$0xff]
      %v1164 = vld [vmem:[#allocation3 + $0x68] sm:$0xff]
      %v1165 = vld [vmem:[#allocation3 + $0x70] sm:$0xff]
      %v1166 = vld [vmem:[#allocation3 + $0x78] sm:$0xff]
      %v1167 = vld [vmem:[#allocation3 + $0x80] sm:$0xff]
      %v1168 = vld [vmem:[#allocation3 + $0x88] sm:$0xff]
      %v1169 = vld [vmem:[#allocation3 + $0x90] sm:$0xff]
      %v1170 = vld [vmem:[#allocation3 + $0x98] sm:$0xff]
      %v1171 = vld [vmem:[#allocation3 + $0xa0] sm:$0xff]
      %v1172 = vld [vmem:[#allocation3 + $0xa8] sm:$0xff]
      %v1173 = vld [vmem:[#allocation3 + $0xb0] sm:$0xff]
      %v1174 = vld [vmem:[#allocation3 + $0xb8] sm:$0xff]
      %v1175 = vld [vmem:[#allocation3 + $0xc0] sm:$0xff]
      %v1176 = vld [vmem:[#allocation3 + $0xc8] sm:$0xff]
      %v1177 = vld [vmem:[#allocation3 + $0xd0] sm:$0xff]
      %v1178 = vld [vmem:[#allocation3 + $0xd8] sm:$0xff]
      %v1179 = vld [vmem:[#allocation3 + $0xe0] sm:$0xff]
      %v1180 = vld [vmem:[#allocation3 + $0xe8] sm:$0xff]
      %v1181 = vld [vmem:[#allocation3 + $0xf0] sm:$0xff]
      %v1182 = vld [vmem:[#allocation3 + $0xf8] sm:$0xff]
      %v1183 = vld [vmem:[#allocation3 + $0x100] sm:$0xff]
      %v1184 = vld [vmem:[#allocation3 + $0x108] sm:$0xff]
      %v1185 = vld [vmem:[#allocation3 + $0x110] sm:$0xff]
      %v1186 = vld [vmem:[#allocation3 + $0x118] sm:$0xff]
      %v1188 = vsel %vm477, %v1144, 0
      %v1191 = vsel %vm477, %v1146, 0
      %v1194 = vsel %vm477, %v1148, 0
      %v1197 = vsel %vm477, %v1150, 0
      %1199 = vmatprep.subr.mxu0 %v1152
      %1200 = vmatpush1.msra.mxu0 %v1151
      %1201 = vmatprep.subr.mxu0 %v1154
      %1202 = vmatpush1.msra.mxu0 %v1153
      %1203 = vmatprep.subr.mxu0 %v1156
      %1204 = vmatpush1.msra.mxu0 %v1155
      %1205 = vmatprep.subr.mxu0 %v1158
      %1206 = vmatpush1.msra.mxu0 %v1157
      %1207 = vmatprep.subr.mxu0 %v1160
      %1208 = vmatpush1.msra.mxu0 %v1159
      %1209 = vmatprep.subr.mxu0 %v1162
      %1210 = vmatpush1.msra.mxu0 %v1161
      %1211 = vmatprep.subr.mxu0 %v1164
      %1212 = vmatpush1.msra.mxu0 %v1163
      %1213 = vmatprep.subr.mxu0 %v1166
      %1214 = vmatpush1.msra.mxu0 %v1165
      %1215 = vmatprep.subr.mxu0 %v1168
      %1216 = vmatpush1.msra.mxu0 %v1167
      %1217 = vmatprep.subr.mxu0 %v1170
      %1218 = vmatpush1.msra.mxu0 %v1169
      %1219 = vmatprep.subr.mxu0 %v1172
      %1220 = vmatpush1.msra.mxu0 %v1171
      %1221 = vmatprep.subr.mxu0 %v1174
      %1222 = vmatpush1.msra.mxu0 %v1173
      %1223 = vmatprep.subr.mxu0 %v1176
      %1224 = vmatpush1.msra.mxu0 %v1175
      %1225 = vmatprep.subr.mxu0 %v1178
      %1226 = vmatpush1.msra.mxu0 %v1177
      %1227 = vmatprep.subr.mxu0 %v1180
      %1228 = vmatpush1.msra.mxu0 %v1179
      %1229 = vmatprep.subr.mxu0 %v1182
      %1230 = vmatpush1.msra.mxu0 %v1181
      %1231 = vmatprep.subr.mxu0 %v1184
      %1232 = vmatpush1.msra.mxu0 %v1183
      %1233 = vmatprep.subr.mxu0 %v1186
      %1234 = vmatpush1.msra.mxu0 %v1185
      %1235 = vmatprep.subr.mxu0 0.0
      %1236 = vmatpush1.msra.mxu0 0.0
      %1237 = vmatprep.subr.mxu0 0.0
      %1238 = vmatpush1.msra.mxu0 0.0
      %1239 = vmatprep.subr.mxu0 0.0
      %1240 = vmatpush1.msra.mxu0 0.0
      %1241 = vmatprep.subr.mxu0 0.0
      %1242 = vmatpush1.msra.mxu0 0.0
      %1243 = vmatprep.subr.mxu0 0.0
      %1244 = vmatpush1.msra.mxu0 0.0
      %1245 = vmatprep.subr.mxu0 0.0
      %1246 = vmatpush1.msra.mxu0 0.0
      %1247 = vmatprep.subr.mxu0 0.0
      %1248 = vmatpush1.msra.mxu0 0.0
      %1249 = vmatprep.subr.mxu0 0.0
      %1250 = vmatpush1.msra.mxu0 0.0
      %1251 = vmatprep.subr.mxu0 0.0
      %1252 = vmatpush1.msra.mxu0 0.0
      %1253 = vmatprep.subr.mxu0 0.0
      %1254 = vmatpush1.msra.mxu0 0.0
      %1255 = vmatprep.subr.mxu0 0.0
      %1256 = vmatpush1.msra.mxu0 0.0
      %1257 = vmatprep.subr.mxu0 0.0
      %1258 = vmatpush1.msra.mxu0 0.0
      %1259 = vmatprep.subr.mxu0 0.0
      %1260 = vmatpush1.msra.mxu0 0.0
      %1261 = vmatprep.subr.mxu0 0.0
      %1262 = vmatpush1.msra.mxu0 0.0
      %1263 = vmatprep.mubr.f32.mxu0 %v1188
      %1264 = vmatmul.mubr.f32.gmra.mrb[0].mxu0 %v1143
      %v1265 = vpop.f32.mrb[0].mxu0
      %v1266 = vadd.f32 0.0, %v1265
      %v1267 = vpop.f32.mrb[0].mxu0
      %v1268 = vadd.f32 0.0, %v1267
      %1269 = vmatprep.mubr.f32.mxu0 %v1191
      %1270 = vmatmul.mubr.f32.gmra.mrb[0].mxu0 %v1145
      %v1271 = vpop.f32.mrb[0].mxu0
      %v1272 = vadd.f32 0.0, %v1271
      %v1273 = vpop.f32.mrb[0].mxu0
      %v1274 = vadd.f32 0.0, %v1273
      %1275 = vmatprep.mubr.f32.mxu0 %v1194
      %1276 = vmatmul.mubr.f32.gmra.mrb[0].mxu0 %v1147
      %v1277 = vpop.f32.mrb[0].mxu0
      %v1278 = vadd.f32 0.0, %v1277
      %v1279 = vpop.f32.mrb[0].mxu0
      %v1280 = vadd.f32 0.0, %v1279
      %1281 = vmatprep.mubr.f32.mxu0 %v1197
      %1282 = vmatmul.mubr.f32.gmra.mrb[0].mxu0 %v1149
      %v1283 = vpop.f32.mrb[0].mxu0
      %v1284 = vadd.f32 0.0, %v1283
      %v1285 = vpop.f32.mrb[0].mxu0
      %v1286 = vadd.f32 0.0, %v1285
      %1287 = vdwg.mxu0
      %v1288 = vld [vmem:[%s6] sm:$0xff]
      %v1289 = vld [vmem:[%s6 + $0x8] sm:$0xff]
      %v1290 = vld [vmem:[%s6 + $0x10] sm:$0xff]
      %v1291 = vld [vmem:[%s6 + $0x18] sm:$0xff]
      %1293 = vset.pattern.permute.xlu0 0
      %1294 = vperm.xlu0 %1293, %v1288
      %v1295 = vpop.permute.xlu0 %1294
      %1298 = vset.pattern.permute.xlu0 0
      %1299 = vperm.xlu0 %1298, %v1289
      %v1300 = vpop.permute.xlu0 %1299
      %1303 = vset.pattern.permute.xlu0 0
      %1304 = vperm.xlu0 %1303, %v1290
      %v1305 = vpop.permute.xlu0 %1304
      %1308 = vset.pattern.permute.xlu0 0
      %1309 = vperm.xlu0 %1308, %v1291
      %v1310 = vpop.permute.xlu0 %1309
      %v1312 = vmul.f32 %v1266, %v1295
      %v1313 = vmul.f32 %v1268, %v1295
      %v1314 = vmul.f32 %v1272, %v1300
      %v1315 = vmul.f32 %v1274, %v1300
      %v1316 = vmul.f32 %v1278, %v1305
      %v1317 = vmul.f32 %v1280, %v1305
      %v1318 = vmul.f32 %v1284, %v1310
      %v1319 = vmul.f32 %v1286, %v1310
      %s1320 = scalar_lea.vmem %s6, 32
      %v1321 = vld [vmem:[%s1320] sm:$0xff]
      %v1322 = vld [vmem:[%s1320 + $0x8] sm:$0xff]
      %v1323 = vld [vmem:[%s1320 + $0x10] sm:$0xff]
      %v1324 = vld [vmem:[%s1320 + $0x18] sm:$0xff]
      %1326 = vset.pattern.permute.xlu0 0
      %1327 = vperm.xlu0 %1326, %v1321
      %v1328 = vpop.permute.xlu0 %1327
      %1331 = vset.pattern.permute.xlu0 0
      %1332 = vperm.xlu0 %1331, %v1322
      %v1333 = vpop.permute.xlu0 %1332
      %1336 = vset.pattern.permute.xlu0 0
      %1337 = vperm.xlu0 %1336, %v1323
      %v1338 = vpop.permute.xlu0 %1337
      %1341 = vset.pattern.permute.xlu0 0
      %1342 = vperm.xlu0 %1341, %v1324
      %v1343 = vpop.permute.xlu0 %1342
      %v1345 = vadd.f32 %v1312, %v1328
      %v1346 = vadd.f32 %v1313, %v1328
      %v1347 = vadd.f32 %v1314, %v1333
      %v1348 = vadd.f32 %v1315, %v1333
      %v1349 = vadd.f32 %v1316, %v1338
      %v1350 = vadd.f32 %v1317, %v1338
      %v1351 = vadd.f32 %v1318, %v1343
      %v1352 = vadd.f32 %v1319, %v1343
      %v1353 = vmax.f32 %v1345, 0.0
      %v1354 = vmax.f32 %v1346, 0.0
      %v1355 = vmax.f32 %v1347, 0.0
      %v1356 = vmax.f32 %v1348, 0.0
      %v1357 = vmax.f32 %v1349, 0.0
      %v1358 = vmax.f32 %v1350, 0.0
      %v1359 = vmax.f32 %v1351, 0.0
      %v1360 = vmax.f32 %v1352, 0.0
      %1369 = vrot.lane.b32.xlu0 %v1353, 17
      %v1370 = vpop.permute.xlu0 %1369
      %1371 = vrot.lane.b32.xlu0 %v1354, 17
      %v1372 = vpop.permute.xlu0 %1371
      %1373 = vrot.lane.b32.xlu0 %v1355, 17
      %v1374 = vpop.permute.xlu0 %1373
      %1375 = vrot.lane.b32.xlu0 %v1356, 17
      %v1376 = vpop.permute.xlu0 %1375
      %1377 = vrot.lane.b32.xlu0 %v1357, 17
      %v1378 = vpop.permute.xlu0 %1377
      %1379 = vrot.lane.b32.xlu0 %v1358, 17
      %v1380 = vpop.permute.xlu0 %1379
      %1381 = vrot.lane.b32.xlu0 %v1359, 17
      %v1382 = vpop.permute.xlu0 %1381
      %1383 = vrot.lane.b32.xlu0 %v1360, 17
      %v1384 = vpop.permute.xlu0 %1383
      %v1385 = vsel %vm392, %v1370, %v1372
      %v1386 = vsel %vm392, %v1374, %v1376
      %v1387 = vsel %vm392, %v1378, %v1380
      %v1388 = vsel %vm392, %v1382, %v1384
      %1401 = vst.msk [vmem:[#allocation2] sm:$0xff] %vm806, %v1370
      %1402 = vst [vmem:[#allocation2 + $0x8] sm:$0xff] %v1385
      %1403 = vst.msk [vmem:[#allocation2 + $0x10] sm:$0xff] %vm392, %v1372
      %1404 = vst.msk [vmem:[#allocation2 + $0x18] sm:$0xff] %vm806, %v1374
      %1405 = vst [vmem:[#allocation2 + $0x20] sm:$0xff] %v1386
      %1406 = vst.msk [vmem:[#allocation2 + $0x28] sm:$0xff] %vm392, %v1376
      %1407 = vst.msk [vmem:[#allocation2 + $0x30] sm:$0xff] %vm806, %v1378
      %1408 = vst [vmem:[#allocation2 + $0x38] sm:$0xff] %v1387
      %1409 = vst.msk [vmem:[#allocation2 + $0x40] sm:$0xff] %vm392, %v1380
      %1410 = vst.msk [vmem:[#allocation2 + $0x48] sm:$0xff] %vm806, %v1382
      %1411 = vst [vmem:[#allocation2 + $0x50] sm:$0xff] %v1388
      %1412 = vst.msk [vmem:[#allocation2 + $0x58] sm:$0xff] %vm392, %v1384
      %v1413 = vld [vmem:[#allocation2] sm:$0xff]
      %v1414 = vld [vmem:[#allocation2 + $0x8] sm:$0xff]
      %v1415 = vld [vmem:[#allocation2 + $0x18] sm:$0xff]
      %v1416 = vld [vmem:[#allocation2 + $0x20] sm:$0xff]
      %v1417 = vld [vmem:[#allocation2 + $0x30] sm:$0xff]
      %v1418 = vld [vmem:[#allocation2 + $0x38] sm:$0xff]
      %v1419 = vld [vmem:[#allocation2 + $0x48] sm:$0xff]
      %v1420 = vld [vmem:[#allocation2 + $0x50] sm:$0xff]
      %v1421 = vmul.f32 %v1413, %v364
      %v1422 = vmul.f32 %v1414, %v365
      %v1423 = vmul.f32 %v1415, %v364
      %v1424 = vmul.f32 %v1416, %v365
      %v1425 = vmul.f32 %v1417, %v364
      %v1426 = vmul.f32 %v1418, %v365
      %v1427 = vmul.f32 %v1419, %v364
      %v1428 = vmul.f32 %v1420, %v365
      %1429 = vst [vmem:[#allocation3] sm:$0xff] %v1421
      %1430 = vst [vmem:[#allocation3 + $0x8] sm:$0xff] %v1422
      %1431 = vst [vmem:[#allocation3 + $0x10] sm:$0xff] %v1423
      %1432 = vst [vmem:[#allocation3 + $0x18] sm:$0xff] %v1424
      %1433 = vst [vmem:[#allocation3 + $0x20] sm:$0xff] %v1425
      %1434 = vst [vmem:[#allocation3 + $0x28] sm:$0xff] %v1426
      %1435 = vst [vmem:[#allocation3 + $0x30] sm:$0xff] %v1427
      %1436 = vst [vmem:[#allocation3 + $0x38] sm:$0xff] %v1428
      %v1437 = vld [vmem:[#allocation2] sm:$0xff]
      %v1438 = vld [vmem:[#allocation2 + $0x8] sm:$0xff]
      %v1439 = vld [vmem:[#allocation2 + $0x10] sm:$0xff]
      %v1440 = vld [vmem:[#allocation2 + $0x18] sm:$0xff]
      %v1441 = vld [vmem:[#allocation2 + $0x20] sm:$0xff]
      %v1442 = vld [vmem:[#allocation2 + $0x28] sm:$0xff]
      %v1443 = vld [vmem:[#allocation2 + $0x30] sm:$0xff]
      %v1444 = vld [vmem:[#allocation2 + $0x38] sm:$0xff]
      %v1445 = vld [vmem:[#allocation2 + $0x40] sm:$0xff]
      %v1446 = vld [vmem:[#allocation2 + $0x48] sm:$0xff]
      %v1447 = vld [vmem:[#allocation2 + $0x50] sm:$0xff]
      %v1448 = vld [vmem:[#allocation2 + $0x58] sm:$0xff]
      %1461 = vrot.lane.b32.xlu0 %v1437, 127
      %v1462 = vpop.permute.xlu0 %1461
      %1463 = vrot.lane.b32.xlu0 %v1438, 127
      %v1464 = vpop.permute.xlu0 %1463
      %1465 = vrot.lane.b32.xlu0 %v1439, 127
      %v1466 = vpop.permute.xlu0 %1465
      %1467 = vrot.lane.b32.xlu0 %v1440, 127
      %v1468 = vpop.permute.xlu0 %1467
      %1469 = vrot.lane.b32.xlu0 %v1441, 127
      %v1470 = vpop.permute.xlu0 %1469
      %1471 = vrot.lane.b32.xlu0 %v1442, 127
      %v1472 = vpop.permute.xlu0 %1471
      %1473 = vrot.lane.b32.xlu0 %v1443, 127
      %v1474 = vpop.permute.xlu0 %1473
      %1475 = vrot.lane.b32.xlu0 %v1444, 127
      %v1476 = vpop.permute.xlu0 %1475
      %1477 = vrot.lane.b32.xlu0 %v1445, 127
      %v1478 = vpop.permute.xlu0 %1477
      %1479 = vrot.lane.b32.xlu0 %v1446, 127
      %v1480 = vpop.permute.xlu0 %1479
      %1481 = vrot.lane.b32.xlu0 %v1447, 127
      %v1482 = vpop.permute.xlu0 %1481
      %1483 = vrot.lane.b32.xlu0 %v1448, 127
      %v1484 = vpop.permute.xlu0 %1483
      %v1485 = vsel %vm423, %v1462, %v1464
      %v1486 = vsel %vm423, %v1464, %v1466
      %v1487 = vsel %vm423, %v1468, %v1470
      %v1488 = vsel %vm423, %v1470, %v1472
      %v1489 = vsel %vm423, %v1474, %v1476
      %v1490 = vsel %vm423, %v1476, %v1478
      %v1491 = vsel %vm423, %v1480, %v1482
      %v1492 = vsel %vm423, %v1482, %v1484
      %1501 = vst [vmem:[#allocation3 + $0x40] sm:$0xff] %v1485
      %1502 = vst [vmem:[#allocation3 + $0x48] sm:$0xff] %v1486
      %1503 = vst [vmem:[#allocation3 + $0x50] sm:$0xff] %v1487
      %1504 = vst [vmem:[#allocation3 + $0x58] sm:$0xff] %v1488
      %1505 = vst [vmem:[#allocation3 + $0x60] sm:$0xff] %v1489
      %1506 = vst [vmem:[#allocation3 + $0x68] sm:$0xff] %v1490
      %1507 = vst [vmem:[#allocation3 + $0x70] sm:$0xff] %v1491
      %1508 = vst [vmem:[#allocation3 + $0x78] sm:$0xff] %v1492
      %v1509 = vld [vmem:[#allocation2] sm:$0xff]
      %v1510 = vld [vmem:[#allocation2 + $0x8] sm:$0xff]
      %v1511 = vld [vmem:[#allocation2 + $0x10] sm:$0xff]
      %v1512 = vld [vmem:[#allocation2 + $0x18] sm:$0xff]
      %v1513 = vld [vmem:[#allocation2 + $0x20] sm:$0xff]
      %v1514 = vld [vmem:[#allocation2 + $0x28] sm:$0xff]
      %v1515 = vld [vmem:[#allocation2 + $0x30] sm:$0xff]
      %v1516 = vld [vmem:[#allocation2 + $0x38] sm:$0xff]
      %v1517 = vld [vmem:[#allocation2 + $0x40] sm:$0xff]
      %v1518 = vld [vmem:[#allocation2 + $0x48] sm:$0xff]
      %v1519 = vld [vmem:[#allocation2 + $0x50] sm:$0xff]
      %v1520 = vld [vmem:[#allocation2 + $0x58] sm:$0xff]
      %v1521 = vmul.f32 %v1509, %v436
      %v1522 = vmul.f32 %v1510, %v440
      %v1523 = vmul.f32 %v1511, %v438
      %v1524 = vmul.f32 %v1512, %v436
      %v1525 = vmul.f32 %v1513, %v440
      %v1526 = vmul.f32 %v1514, %v438
      %v1527 = vmul.f32 %v1515, %v436
      %v1528 = vmul.f32 %v1516, %v440
      %v1529 = vmul.f32 %v1517, %v438
      %v1530 = vmul.f32 %v1518, %v436
      %v1531 = vmul.f32 %v1519, %v440
      %v1532 = vmul.f32 %v1520, %v438
      %1545 = vrot.lane.b32.xlu0 %v1521, 126
      %v1546 = vpop.permute.xlu0 %1545
      %1547 = vrot.lane.b32.xlu0 %v1522, 126
      %v1548 = vpop.permute.xlu0 %1547
      %1549 = vrot.lane.b32.xlu0 %v1523, 126
      %v1550 = vpop.permute.xlu0 %1549
      %1551 = vrot.lane.b32.xlu0 %v1524, 126
      %v1552 = vpop.permute.xlu0 %1551
      %1553 = vrot.lane.b32.xlu0 %v1525, 126
      %v1554 = vpop.permute.xlu0 %1553
      %1555 = vrot.lane.b32.xlu0 %v1526, 126
      %v1556 = vpop.permute.xlu0 %1555
      %1557 = vrot.lane.b32.xlu0 %v1527, 126
      %v1558 = vpop.permute.xlu0 %1557
      %1559 = vrot.lane.b32.xlu0 %v1528, 126
      %v1560 = vpop.permute.xlu0 %1559
      %1561 = vrot.lane.b32.xlu0 %v1529, 126
      %v1562 = vpop.permute.xlu0 %1561
      %1563 = vrot.lane.b32.xlu0 %v1530, 126
      %v1564 = vpop.permute.xlu0 %1563
      %1565 = vrot.lane.b32.xlu0 %v1531, 126
      %v1566 = vpop.permute.xlu0 %1565
      %1567 = vrot.lane.b32.xlu0 %v1532, 126
      %v1568 = vpop.permute.xlu0 %1567
      %v1569 = vsel %vm459, %v1546, %v1548
      %v1570 = vsel %vm459, %v1548, %v1550
      %v1571 = vsel %vm459, %v1552, %v1554
      %v1572 = vsel %vm459, %v1554, %v1556
      %v1573 = vsel %vm459, %v1558, %v1560
      %v1574 = vsel %vm459, %v1560, %v1562
      %v1575 = vsel %vm459, %v1564, %v1566
      %v1576 = vsel %vm459, %v1566, %v1568
      %1585 = vst [vmem:[#allocation3 + $0x80] sm:$0xff] %v1569
      %1586 = vst [vmem:[#allocation3 + $0x88] sm:$0xff] %v1570
      %1587 = vst [vmem:[#allocation3 + $0x90] sm:$0xff] %v1571
      %1588 = vst [vmem:[#allocation3 + $0x98] sm:$0xff] %v1572
      %1589 = vst [vmem:[#allocation3 + $0xa0] sm:$0xff] %v1573
      %1590 = vst [vmem:[#allocation3 + $0xa8] sm:$0xff] %v1574
      %1591 = vst [vmem:[#allocation3 + $0xb0] sm:$0xff] %v1575
      %1592 = vst [vmem:[#allocation3 + $0xb8] sm:$0xff] %v1576
      %v1593 = vld [vmem:[#allocation2] sm:$0xff]
      %v1594 = vld [vmem:[#allocation2 + $0x8] sm:$0xff]
      %v1595 = vld [vmem:[#allocation2 + $0x10] sm:$0xff]
      %v1596 = vld [vmem:[#allocation2 + $0x18] sm:$0xff]
      %v1597 = vld [vmem:[#allocation2 + $0x20] sm:$0xff]
      %v1598 = vld [vmem:[#allocation2 + $0x28] sm:$0xff]
      %v1599 = vld [vmem:[#allocation2 + $0x30] sm:$0xff]
      %v1600 = vld [vmem:[#allocation2 + $0x38] sm:$0xff]
      %v1601 = vld [vmem:[#allocation2 + $0x40] sm:$0xff]
      %v1602 = vld [vmem:[#allocation2 + $0x48] sm:$0xff]
      %v1603 = vld [vmem:[#allocation2 + $0x50] sm:$0xff]
      %v1604 = vld [vmem:[#allocation2 + $0x58] sm:$0xff]
      %v1605 = vmul.f32 %v1593, %v474
      %v1606 = vmul.f32 %v1594, %v478
      %v1607 = vmul.f32 %v1595, %v476
      %v1608 = vmul.f32 %v1596, %v474
      %v1609 = vmul.f32 %v1597, %v478
      %v1610 = vmul.f32 %v1598, %v476
      %v1611 = vmul.f32 %v1599, %v474
      %v1612 = vmul.f32 %v1600, %v478
      %v1613 = vmul.f32 %v1601, %v476
      %v1614 = vmul.f32 %v1602, %v474
      %v1615 = vmul.f32 %v1603, %v478
      %v1616 = vmul.f32 %v1604, %v476
      %1629 = vrot.lane.b32.xlu0 %v1605, 112
      %v1630 = vpop.permute.xlu0 %1629
      %1631 = vrot.lane.b32.xlu0 %v1606, 112
      %v1632 = vpop.permute.xlu0 %1631
      %1633 = vrot.lane.b32.xlu0 %v1607, 112
      %v1634 = vpop.permute.xlu0 %1633
      %1635 = vrot.lane.b32.xlu0 %v1608, 112
      %v1636 = vpop.permute.xlu0 %1635
      %1637 = vrot.lane.b32.xlu0 %v1609, 112
      %v1638 = vpop.permute.xlu0 %1637
      %1639 = vrot.lane.b32.xlu0 %v1610, 112
      %v1640 = vpop.permute.xlu0 %1639
      %1641 = vrot.lane.b32.xlu0 %v1611, 112
      %v1642 = vpop.permute.xlu0 %1641
      %1643 = vrot.lane.b32.xlu0 %v1612, 112
      %v1644 = vpop.permute.xlu0 %1643
      %1645 = vrot.lane.b32.xlu0 %v1613, 112
      %v1646 = vpop.permute.xlu0 %1645
      %1647 = vrot.lane.b32.xlu0 %v1614, 112
      %v1648 = vpop.permute.xlu0 %1647
      %1649 = vrot.lane.b32.xlu0 %v1615, 112
      %v1650 = vpop.permute.xlu0 %1649
      %1651 = vrot.lane.b32.xlu0 %v1616, 112
      %v1652 = vpop.permute.xlu0 %1651
      %v1653 = vsel %vm497, %v1630, %v1632
      %v1654 = vsel %vm497, %v1632, %v1634
      %v1655 = vsel %vm497, %v1636, %v1638
      %v1656 = vsel %vm497, %v1638, %v1640
      %v1657 = vsel %vm497, %v1642, %v1644
      %v1658 = vsel %vm497, %v1644, %v1646
      %v1659 = vsel %vm497, %v1648, %v1650
      %v1660 = vsel %vm497, %v1650, %v1652
      %1669 = vst [vmem:[#allocation3 + $0xc0] sm:$0xff] %v1653
      %1670 = vst [vmem:[#allocation3 + $0xc8] sm:$0xff] %v1654
      %1671 = vst [vmem:[#allocation3 + $0xd0] sm:$0xff] %v1655
      %1672 = vst [vmem:[#allocation3 + $0xd8] sm:$0xff] %v1656
      %1673 = vst [vmem:[#allocation3 + $0xe0] sm:$0xff] %v1657
      %1674 = vst [vmem:[#allocation3 + $0xe8] sm:$0xff] %v1658
      %1675 = vst [vmem:[#allocation3 + $0xf0] sm:$0xff] %v1659
      %1676 = vst [vmem:[#allocation3 + $0xf8] sm:$0xff] %v1660
      %v1677 = vld [vmem:[#allocation2] sm:$0xff]
      %v1678 = vld [vmem:[#allocation2 + $0x8] sm:$0xff]
      %v1679 = vld [vmem:[#allocation2 + $0x10] sm:$0xff]
      %v1680 = vld [vmem:[#allocation2 + $0x18] sm:$0xff]
      %v1681 = vld [vmem:[#allocation2 + $0x20] sm:$0xff]
      %v1682 = vld [vmem:[#allocation2 + $0x28] sm:$0xff]
      %v1683 = vld [vmem:[#allocation2 + $0x30] sm:$0xff]
      %v1684 = vld [vmem:[#allocation2 + $0x38] sm:$0xff]
      %v1685 = vld [vmem:[#allocation2 + $0x40] sm:$0xff]
      %v1686 = vld [vmem:[#allocation2 + $0x48] sm:$0xff]
      %v1687 = vld [vmem:[#allocation2 + $0x50] sm:$0xff]
      %v1688 = vld [vmem:[#allocation2 + $0x58] sm:$0xff]
      %1701 = vrot.lane.b32.xlu0 %v1677, 111
      %v1702 = vpop.permute.xlu0 %1701
      %1703 = vrot.lane.b32.xlu0 %v1678, 111
      %v1704 = vpop.permute.xlu0 %1703
      %1705 = vrot.lane.b32.xlu0 %v1679, 111
      %v1706 = vpop.permute.xlu0 %1705
      %1707 = vrot.lane.b32.xlu0 %v1680, 111
      %v1708 = vpop.permute.xlu0 %1707
      %1709 = vrot.lane.b32.xlu0 %v1681, 111
      %v1710 = vpop.permute.xlu0 %1709
      %1711 = vrot.lane.b32.xlu0 %v1682, 111
      %v1712 = vpop.permute.xlu0 %1711
      %1713 = vrot.lane.b32.xlu0 %v1683, 111
      %v1714 = vpop.permute.xlu0 %1713
      %1715 = vrot.lane.b32.xlu0 %v1684, 111
      %v1716 = vpop.permute.xlu0 %1715
      %1717 = vrot.lane.b32.xlu0 %v1685, 111
      %v1718 = vpop.permute.xlu0 %1717
      %1719 = vrot.lane.b32.xlu0 %v1686, 111
      %v1720 = vpop.permute.xlu0 %1719
      %1721 = vrot.lane.b32.xlu0 %v1687, 111
      %v1722 = vpop.permute.xlu0 %1721
      %1723 = vrot.lane.b32.xlu0 %v1688, 111
      %v1724 = vpop.permute.xlu0 %1723
      %v1725 = vsel %vm519, %v1702, %v1704
      %v1726 = vsel %vm519, %v1704, %v1706
      %v1727 = vsel %vm519, %v1708, %v1710
      %v1728 = vsel %vm519, %v1710, %v1712
      %v1729 = vsel %vm519, %v1714, %v1716
      %v1730 = vsel %vm519, %v1716, %v1718
      %v1731 = vsel %vm519, %v1720, %v1722
      %v1732 = vsel %vm519, %v1722, %v1724
      %1741 = vst [vmem:[#allocation3 + $0x100] sm:$0xff] %v1725
      %1742 = vst [vmem:[#allocation3 + $0x108] sm:$0xff] %v1726
      %1743 = vst [vmem:[#allocation3 + $0x110] sm:$0xff] %v1727
      %1744 = vst [vmem:[#allocation3 + $0x118] sm:$0xff] %v1728
      %1745 = vst [vmem:[#allocation3 + $0x120] sm:$0xff] %v1729
      %1746 = vst [vmem:[#allocation3 + $0x128] sm:$0xff] %v1730
      %1747 = vst [vmem:[#allocation3 + $0x130] sm:$0xff] %v1731
      %1748 = vst [vmem:[#allocation3 + $0x138] sm:$0xff] %v1732
      %v1749 = vld [vmem:[#allocation2] sm:$0xff]
      %v1750 = vld [vmem:[#allocation2 + $0x8] sm:$0xff]
      %v1751 = vld [vmem:[#allocation2 + $0x10] sm:$0xff]
      %v1752 = vld [vmem:[#allocation2 + $0x18] sm:$0xff]
      %v1753 = vld [vmem:[#allocation2 + $0x20] sm:$0xff]
      %v1754 = vld [vmem:[#allocation2 + $0x28] sm:$0xff]
      %v1755 = vld [vmem:[#allocation2 + $0x30] sm:$0xff]
      %v1756 = vld [vmem:[#allocation2 + $0x38] sm:$0xff]
      %v1757 = vld [vmem:[#allocation2 + $0x40] sm:$0xff]
      %v1758 = vld [vmem:[#allocation2 + $0x48] sm:$0xff]
      %v1759 = vld [vmem:[#allocation2 + $0x50] sm:$0xff]
      %v1760 = vld [vmem:[#allocation2 + $0x58] sm:$0xff]
      %v1761 = vmul.f32 %v1749, %v530
      %v1762 = vmul.f32 %v1750, %v534
      %v1763 = vmul.f32 %v1751, %v532
      %v1764 = vmul.f32 %v1752, %v530
      %v1765 = vmul.f32 %v1753, %v534
      %v1766 = vmul.f32 %v1754, %v532
      %v1767 = vmul.f32 %v1755, %v530
      %v1768 = vmul.f32 %v1756, %v534
      %v1769 = vmul.f32 %v1757, %v532
      %v1770 = vmul.f32 %v1758, %v530
      %v1771 = vmul.f32 %v1759, %v534
      %v1772 = vmul.f32 %v1760, %v532
      %1785 = vrot.lane.b32.xlu0 %v1761, 110
      %v1786 = vpop.permute.xlu0 %1785
      %1787 = vrot.lane.b32.xlu0 %v1762, 110
      %v1788 = vpop.permute.xlu0 %1787
      %1789 = vrot.lane.b32.xlu0 %v1763, 110
      %v1790 = vpop.permute.xlu0 %1789
      %1791 = vrot.lane.b32.xlu0 %v1764, 110
      %v1792 = vpop.permute.xlu0 %1791
      %1793 = vrot.lane.b32.xlu0 %v1765, 110
      %v1794 = vpop.permute.xlu0 %1793
      %1795 = vrot.lane.b32.xlu0 %v1766, 110
      %v1796 = vpop.permute.xlu0 %1795
      %1797 = vrot.lane.b32.xlu0 %v1767, 110
      %v1798 = vpop.permute.xlu0 %1797
      %1799 = vrot.lane.b32.xlu0 %v1768, 110
      %v1800 = vpop.permute.xlu0 %1799
      %1801 = vrot.lane.b32.xlu0 %v1769, 110
      %v1802 = vpop.permute.xlu0 %1801
      %1803 = vrot.lane.b32.xlu0 %v1770, 110
      %v1804 = vpop.permute.xlu0 %1803
      %1805 = vrot.lane.b32.xlu0 %v1771, 110
      %v1806 = vpop.permute.xlu0 %1805
      %1807 = vrot.lane.b32.xlu0 %v1772, 110
      %v1808 = vpop.permute.xlu0 %1807
      %v1809 = vsel %vm553, %v1786, %v1788
      %v1810 = vsel %vm553, %v1788, %v1790
      %v1811 = vsel %vm553, %v1792, %v1794
      %v1812 = vsel %vm553, %v1794, %v1796
      %v1813 = vsel %vm553, %v1798, %v1800
      %v1814 = vsel %vm553, %v1800, %v1802
      %v1815 = vsel %vm553, %v1804, %v1806
      %v1816 = vsel %vm553, %v1806, %v1808
      %1825 = vst [vmem:[#allocation3 + $0x140] sm:$0xff] %v1809
      %1826 = vst [vmem:[#allocation3 + $0x148] sm:$0xff] %v1810
      %1827 = vst [vmem:[#allocation3 + $0x150] sm:$0xff] %v1811
      %1828 = vst [vmem:[#allocation3 + $0x158] sm:$0xff] %v1812
      %1829 = vst [vmem:[#allocation3 + $0x160] sm:$0xff] %v1813
      %1830 = vst [vmem:[#allocation3 + $0x168] sm:$0xff] %v1814
      %1831 = vst [vmem:[#allocation3 + $0x170] sm:$0xff] %v1815
      %1832 = vst [vmem:[#allocation3 + $0x178] sm:$0xff] %v1816
      %v1833 = vld [vmem:[#allocation2] sm:$0xff]
      %v1834 = vld [vmem:[#allocation2 + $0x8] sm:$0xff]
      %v1835 = vld [vmem:[#allocation2 + $0x10] sm:$0xff]
      %v1836 = vld [vmem:[#allocation2 + $0x18] sm:$0xff]
      %v1837 = vld [vmem:[#allocation2 + $0x20] sm:$0xff]
      %v1838 = vld [vmem:[#allocation2 + $0x28] sm:$0xff]
      %v1839 = vld [vmem:[#allocation2 + $0x30] sm:$0xff]
      %v1840 = vld [vmem:[#allocation2 + $0x38] sm:$0xff]
      %v1841 = vld [vmem:[#allocation2 + $0x40] sm:$0xff]
      %v1842 = vld [vmem:[#allocation2 + $0x48] sm:$0xff]
      %v1843 = vld [vmem:[#allocation2 + $0x50] sm:$0xff]
      %v1844 = vld [vmem:[#allocation2 + $0x58] sm:$0xff]
      %v1845 = vmul.f32 %v1833, %v566
      %v1846 = vmul.f32 %v1834, %v570
      %v1847 = vmul.f32 %v1835, %v568
      %v1848 = vmul.f32 %v1836, %v566
      %v1849 = vmul.f32 %v1837, %v570
      %v1850 = vmul.f32 %v1838, %v568
      %v1851 = vmul.f32 %v1839, %v566
      %v1852 = vmul.f32 %v1840, %v570
      %v1853 = vmul.f32 %v1841, %v568
      %v1854 = vmul.f32 %v1842, %v566
      %v1855 = vmul.f32 %v1843, %v570
      %v1856 = vmul.f32 %v1844, %v568
      %1869 = vrot.lane.b32.xlu0 %v1845, 96
      %v1870 = vpop.permute.xlu0 %1869
      %1871 = vrot.lane.b32.xlu0 %v1846, 96
      %v1872 = vpop.permute.xlu0 %1871
      %1873 = vrot.lane.b32.xlu0 %v1847, 96
      %v1874 = vpop.permute.xlu0 %1873
      %1875 = vrot.lane.b32.xlu0 %v1848, 96
      %v1876 = vpop.permute.xlu0 %1875
      %1877 = vrot.lane.b32.xlu0 %v1849, 96
      %v1878 = vpop.permute.xlu0 %1877
      %1879 = vrot.lane.b32.xlu0 %v1850, 96
      %v1880 = vpop.permute.xlu0 %1879
      %1881 = vrot.lane.b32.xlu0 %v1851, 96
      %v1882 = vpop.permute.xlu0 %1881
      %1883 = vrot.lane.b32.xlu0 %v1852, 96
      %v1884 = vpop.permute.xlu0 %1883
      %1885 = vrot.lane.b32.xlu0 %v1853, 96
      %v1886 = vpop.permute.xlu0 %1885
      %1887 = vrot.lane.b32.xlu0 %v1854, 96
      %v1888 = vpop.permute.xlu0 %1887
      %1889 = vrot.lane.b32.xlu0 %v1855, 96
      %v1890 = vpop.permute.xlu0 %1889
      %1891 = vrot.lane.b32.xlu0 %v1856, 96
      %v1892 = vpop.permute.xlu0 %1891
      %v1893 = vsel %vm589, %v1870, %v1872
      %v1894 = vsel %vm589, %v1872, %v1874
      %v1895 = vsel %vm589, %v1876, %v1878
      %v1896 = vsel %vm589, %v1878, %v1880
      %v1897 = vsel %vm589, %v1882, %v1884
      %v1898 = vsel %vm589, %v1884, %v1886
      %v1899 = vsel %vm589, %v1888, %v1890
      %v1900 = vsel %vm589, %v1890, %v1892
      %1909 = vst [vmem:[#allocation3 + $0x180] sm:$0xff] %v1893
      %1910 = vst [vmem:[#allocation3 + $0x188] sm:$0xff] %v1894
      %1911 = vst [vmem:[#allocation3 + $0x190] sm:$0xff] %v1895
      %1912 = vst [vmem:[#allocation3 + $0x198] sm:$0xff] %v1896
      %1913 = vst [vmem:[#allocation3 + $0x1a0] sm:$0xff] %v1897
      %1914 = vst [vmem:[#allocation3 + $0x1a8] sm:$0xff] %v1898
      %1915 = vst [vmem:[#allocation3 + $0x1b0] sm:$0xff] %v1899
      %1916 = vst [vmem:[#allocation3 + $0x1b8] sm:$0xff] %v1900
      %v1917 = vld [vmem:[#allocation2] sm:$0xff]
      %v1918 = vld [vmem:[#allocation2 + $0x8] sm:$0xff]
      %v1919 = vld [vmem:[#allocation2 + $0x10] sm:$0xff]
      %v1920 = vld [vmem:[#allocation2 + $0x18] sm:$0xff]
      %v1921 = vld [vmem:[#allocation2 + $0x20] sm:$0xff]
      %v1922 = vld [vmem:[#allocation2 + $0x28] sm:$0xff]
      %v1923 = vld [vmem:[#allocation2 + $0x30] sm:$0xff]
      %v1924 = vld [vmem:[#allocation2 + $0x38] sm:$0xff]
      %v1925 = vld [vmem:[#allocation2 + $0x40] sm:$0xff]
      %v1926 = vld [vmem:[#allocation2 + $0x48] sm:$0xff]
      %v1927 = vld [vmem:[#allocation2 + $0x50] sm:$0xff]
      %v1928 = vld [vmem:[#allocation2 + $0x58] sm:$0xff]
      %1941 = vrot.lane.b32.xlu0 %v1917, 95
      %v1942 = vpop.permute.xlu0 %1941
      %1943 = vrot.lane.b32.xlu0 %v1918, 95
      %v1944 = vpop.permute.xlu0 %1943
      %1945 = vrot.lane.b32.xlu0 %v1919, 95
      %v1946 = vpop.permute.xlu0 %1945
      %1947 = vrot.lane.b32.xlu0 %v1920, 95
      %v1948 = vpop.permute.xlu0 %1947
      %1949 = vrot.lane.b32.xlu0 %v1921, 95
      %v1950 = vpop.permute.xlu0 %1949
      %1951 = vrot.lane.b32.xlu0 %v1922, 95
      %v1952 = vpop.permute.xlu0 %1951
      %1953 = vrot.lane.b32.xlu0 %v1923, 95
      %v1954 = vpop.permute.xlu0 %1953
      %1955 = vrot.lane.b32.xlu0 %v1924, 95
      %v1956 = vpop.permute.xlu0 %1955
      %1957 = vrot.lane.b32.xlu0 %v1925, 95
      %v1958 = vpop.permute.xlu0 %1957
      %1959 = vrot.lane.b32.xlu0 %v1926, 95
      %v1960 = vpop.permute.xlu0 %1959
      %1961 = vrot.lane.b32.xlu0 %v1927, 95
      %v1962 = vpop.permute.xlu0 %1961
      %1963 = vrot.lane.b32.xlu0 %v1928, 95
      %v1964 = vpop.permute.xlu0 %1963
      %v1965 = vsel %vm611, %v1942, %v1944
      %v1966 = vsel %vm611, %v1944, %v1946
      %v1967 = vsel %vm611, %v1948, %v1950
      %v1968 = vsel %vm611, %v1950, %v1952
      %v1969 = vsel %vm611, %v1954, %v1956
      %v1970 = vsel %vm611, %v1956, %v1958
      %v1971 = vsel %vm611, %v1960, %v1962
      %v1972 = vsel %vm611, %v1962, %v1964
      %1981 = vst [vmem:[#allocation3 + $0x1c0] sm:$0xff] %v1965
      %1982 = vst [vmem:[#allocation3 + $0x1c8] sm:$0xff] %v1966
      %1983 = vst [vmem:[#allocation3 + $0x1d0] sm:$0xff] %v1967
      %1984 = vst [vmem:[#allocation3 + $0x1d8] sm:$0xff] %v1968
      %1985 = vst [vmem:[#allocation3 + $0x1e0] sm:$0xff] %v1969
      %1986 = vst [vmem:[#allocation3 + $0x1e8] sm:$0xff] %v1970
      %1987 = vst [vmem:[#allocation3 + $0x1f0] sm:$0xff] %v1971
      %1988 = vst [vmem:[#allocation3 + $0x1f8] sm:$0xff] %v1972
      %v1989 = vld [vmem:[#allocation2] sm:$0xff]
      %v1990 = vld [vmem:[#allocation2 + $0x8] sm:$0xff]
      %v1991 = vld [vmem:[#allocation2 + $0x10] sm:$0xff]
      %v1992 = vld [vmem:[#allocation2 + $0x18] sm:$0xff]
      %v1993 = vld [vmem:[#allocation2 + $0x20] sm:$0xff]
      %v1994 = vld [vmem:[#allocation2 + $0x28] sm:$0xff]
      %v1995 = vld [vmem:[#allocation2 + $0x30] sm:$0xff]
      %v1996 = vld [vmem:[#allocation2 + $0x38] sm:$0xff]
      %v1997 = vld [vmem:[#allocation2 + $0x40] sm:$0xff]
      %v1998 = vld [vmem:[#allocation2 + $0x48] sm:$0xff]
      %v1999 = vld [vmem:[#allocation2 + $0x50] sm:$0xff]
      %v2000 = vld [vmem:[#allocation2 + $0x58] sm:$0xff]
      %v2001 = vmul.f32 %v1989, %v622
      %v2002 = vmul.f32 %v1990, %v625
      %v2003 = vmul.f32 %v1991, %v624
      %v2004 = vmul.f32 %v1992, %v622
      %v2005 = vmul.f32 %v1993, %v625
      %v2006 = vmul.f32 %v1994, %v624
      %v2007 = vmul.f32 %v1995, %v622
      %v2008 = vmul.f32 %v1996, %v625
      %v2009 = vmul.f32 %v1997, %v624
      %v2010 = vmul.f32 %v1998, %v622
      %v2011 = vmul.f32 %v1999, %v625
      %v2012 = vmul.f32 %v2000, %v624
      %2025 = vrot.lane.b32.xlu0 %v2001, 94
      %v2026 = vpop.permute.xlu0 %2025
      %2027 = vrot.lane.b32.xlu0 %v2002, 94
      %v2028 = vpop.permute.xlu0 %2027
      %2029 = vrot.lane.b32.xlu0 %v2003, 94
      %v2030 = vpop.permute.xlu0 %2029
      %2031 = vrot.lane.b32.xlu0 %v2004, 94
      %v2032 = vpop.permute.xlu0 %2031
      %2033 = vrot.lane.b32.xlu0 %v2005, 94
      %v2034 = vpop.permute.xlu0 %2033
      %2035 = vrot.lane.b32.xlu0 %v2006, 94
      %v2036 = vpop.permute.xlu0 %2035
      %2037 = vrot.lane.b32.xlu0 %v2007, 94
      %v2038 = vpop.permute.xlu0 %2037
      %2039 = vrot.lane.b32.xlu0 %v2008, 94
      %v2040 = vpop.permute.xlu0 %2039
      %2041 = vrot.lane.b32.xlu0 %v2009, 94
      %v2042 = vpop.permute.xlu0 %2041
      %2043 = vrot.lane.b32.xlu0 %v2010, 94
      %v2044 = vpop.permute.xlu0 %2043
      %2045 = vrot.lane.b32.xlu0 %v2011, 94
      %v2046 = vpop.permute.xlu0 %2045
      %2047 = vrot.lane.b32.xlu0 %v2012, 94
      %v2048 = vpop.permute.xlu0 %2047
      %v2049 = vsel %vm641, %v2026, %v2028
      %v2050 = vsel %vm641, %v2028, %v2030
      %v2051 = vsel %vm641, %v2032, %v2034
      %v2052 = vsel %vm641, %v2034, %v2036
      %v2053 = vsel %vm641, %v2038, %v2040
      %v2054 = vsel %vm641, %v2040, %v2042
      %v2055 = vsel %vm641, %v2044, %v2046
      %v2056 = vsel %vm641, %v2046, %v2048
      %2065 = vst [vmem:[#allocation3 + $0x200] sm:$0xff] %v2049
      %2066 = vst [vmem:[#allocation3 + $0x208] sm:$0xff] %v2050
      %2067 = vst [vmem:[#allocation3 + $0x210] sm:$0xff] %v2051
      %2068 = vst [vmem:[#allocation3 + $0x218] sm:$0xff] %v2052
      %2069 = vst [vmem:[#allocation3 + $0x220] sm:$0xff] %v2053
      %2070 = vst [vmem:[#allocation3 + $0x228] sm:$0xff] %v2054
      %2071 = vst [vmem:[#allocation3 + $0x230] sm:$0xff] %v2055
      %2072 = vst [vmem:[#allocation3 + $0x238] sm:$0xff] %v2056
      %v2073 = vld [vmem:[%s3] sm:$0xff]
      %v2074 = vld [vmem:[%s3 + $0x8] sm:$0xff]
      %v2075 = vld [vmem:[%s3 + $0x10] sm:$0xff]
      %v2076 = vld [vmem:[%s3 + $0x18] sm:$0xff]
      %v2077 = vld [vmem:[%s3 + $0x20] sm:$0xff]
      %v2078 = vld [vmem:[%s3 + $0x28] sm:$0xff]
      %v2079 = vld [vmem:[#allocation3] sm:$0xff]
      %v2080 = vld [vmem:[#allocation3 + $0x8] sm:$0xff]
      %v2081 = vld [vmem:[#allocation3 + $0x10] sm:$0xff]
      %v2082 = vld [vmem:[#allocation3 + $0x18] sm:$0xff]
      %v2083 = vld [vmem:[#allocation3 + $0x20] sm:$0xff]
      %v2084 = vld [vmem:[#allocation3 + $0x28] sm:$0xff]
      %v2085 = vld [vmem:[#allocation3 + $0x30] sm:$0xff]
      %v2086 = vld [vmem:[#allocation3 + $0x38] sm:$0xff]
      %v2087 = vld [vmem:[#allocation3 + $0x40] sm:$0xff]
      %v2088 = vld [vmem:[#allocation3 + $0x48] sm:$0xff]
      %v2089 = vld [vmem:[#allocation3 + $0x50] sm:$0xff]
      %v2090 = vld [vmem:[#allocation3 + $0x58] sm:$0xff]
      %v2091 = vld [vmem:[#allocation3 + $0x60] sm:$0xff]
      %v2092 = vld [vmem:[#allocation3 + $0x68] sm:$0xff]
      %v2093 = vld [vmem:[#allocation3 + $0x70] sm:$0xff]
      %v2094 = vld [vmem:[#allocation3 + $0x78] sm:$0xff]
      %v2095 = vld [vmem:[#allocation3 + $0x80] sm:$0xff]
      %v2096 = vld [vmem:[#allocation3 + $0x88] sm:$0xff]
      %v2097 = vld [vmem:[#allocation3 + $0x90] sm:$0xff]
      %v2098 = vld [vmem:[#allocation3 + $0x98] sm:$0xff]
      %v2099 = vld [vmem:[#allocation3 + $0xa0] sm:$0xff]
      %v2100 = vld [vmem:[#allocation3 + $0xa8] sm:$0xff]
      %v2101 = vld [vmem:[#allocation3 + $0xb0] sm:$0xff]
      %v2102 = vld [vmem:[#allocation3 + $0xb8] sm:$0xff]
      %v2103 = vld [vmem:[#allocation3 + $0xc0] sm:$0xff]
      %v2104 = vld [vmem:[#allocation3 + $0xc8] sm:$0xff]
      %v2105 = vld [vmem:[#allocation3 + $0xd0] sm:$0xff]
      %v2106 = vld [vmem:[#allocation3 + $0xd8] sm:$0xff]
      %v2107 = vld [vmem:[#allocation3 + $0xe0] sm:$0xff]
      %v2108 = vld [vmem:[#allocation3 + $0xe8] sm:$0xff]
      %v2109 = vld [vmem:[#allocation3 + $0xf0] sm:$0xff]
      %v2110 = vld [vmem:[#allocation3 + $0xf8] sm:$0xff]
      %v2111 = vld [vmem:[#allocation3 + $0x100] sm:$0xff]
      %v2112 = vld [vmem:[#allocation3 + $0x108] sm:$0xff]
      %v2113 = vld [vmem:[#allocation3 + $0x110] sm:$0xff]
      %v2114 = vld [vmem:[#allocation3 + $0x118] sm:$0xff]
      %v2115 = vld [vmem:[#allocation3 + $0x120] sm:$0xff]
      %v2116 = vld [vmem:[#allocation3 + $0x128] sm:$0xff]
      %v2117 = vld [vmem:[#allocation3 + $0x130] sm:$0xff]
      %v2118 = vld [vmem:[#allocation3 + $0x138] sm:$0xff]
      %v2119 = vld [vmem:[#allocation3 + $0x140] sm:$0xff]
      %v2120 = vld [vmem:[#allocation3 + $0x148] sm:$0xff]
      %v2121 = vld [vmem:[#allocation3 + $0x150] sm:$0xff]
      %v2122 = vld [vmem:[#allocation3 + $0x158] sm:$0xff]
      %v2123 = vld [vmem:[#allocation3 + $0x160] sm:$0xff]
      %v2124 = vld [vmem:[#allocation3 + $0x168] sm:$0xff]
      %v2125 = vld [vmem:[#allocation3 + $0x170] sm:$0xff]
      %v2126 = vld [vmem:[#allocation3 + $0x178] sm:$0xff]
      %v2127 = vld [vmem:[#allocation3 + $0x180] sm:$0xff]
      %v2128 = vld [vmem:[#allocation3 + $0x188] sm:$0xff]
      %v2129 = vld [vmem:[#allocation3 + $0x190] sm:$0xff]
      %v2130 = vld [vmem:[#allocation3 + $0x198] sm:$0xff]
      %v2131 = vld [vmem:[#allocation3 + $0x1a0] sm:$0xff]
      %v2132 = vld [vmem:[#allocation3 + $0x1a8] sm:$0xff]
      %v2133 = vld [vmem:[#allocation3 + $0x1b0] sm:$0xff]
      %v2134 = vld [vmem:[#allocation3 + $0x1b8] sm:$0xff]
      %v2135 = vld [vmem:[#allocation3 + $0x1c0] sm:$0xff]
      %v2136 = vld [vmem:[#allocation3 + $0x1c8] sm:$0xff]
      %v2137 = vld [vmem:[#allocation3 + $0x1d0] sm:$0xff]
      %v2138 = vld [vmem:[#allocation3 + $0x1d8] sm:$0xff]
      %v2139 = vld [vmem:[#allocation3 + $0x1e0] sm:$0xff]
      %v2140 = vld [vmem:[#allocation3 + $0x1e8] sm:$0xff]
      %v2141 = vld [vmem:[#allocation3 + $0x1f0] sm:$0xff]
      %v2142 = vld [vmem:[#allocation3 + $0x1f8] sm:$0xff]
      %v2143 = vld [vmem:[#allocation3 + $0x200] sm:$0xff]
      %v2144 = vld [vmem:[#allocation3 + $0x208] sm:$0xff]
      %v2145 = vld [vmem:[#allocation3 + $0x210] sm:$0xff]
      %v2146 = vld [vmem:[#allocation3 + $0x218] sm:$0xff]
      %v2147 = vld [vmem:[#allocation3 + $0x220] sm:$0xff]
      %v2148 = vld [vmem:[#allocation3 + $0x228] sm:$0xff]
      %v2149 = vld [vmem:[#allocation3 + $0x230] sm:$0xff]
      %v2150 = vld [vmem:[#allocation3 + $0x238] sm:$0xff]
      %v2152 = vsel %vm569, %v2075, 0
      %v2155 = vsel %vm569, %v2078, 0
      %2157 = vmatprep.subr.mxu0 %v2080
      %2158 = vmatpush1.msra.mxu0 %v2079
      %2159 = vmatprep.subr.mxu0 %v2082
      %2160 = vmatpush1.msra.mxu0 %v2081
      %2161 = vmatprep.subr.mxu0 %v2084
      %2162 = vmatpush1.msra.mxu0 %v2083
      %2163 = vmatprep.subr.mxu0 %v2086
      %2164 = vmatpush1.msra.mxu0 %v2085
      %2165 = vmatprep.subr.mxu0 %v2088
      %2166 = vmatpush1.msra.mxu0 %v2087
      %2167 = vmatprep.subr.mxu0 %v2090
      %2168 = vmatpush1.msra.mxu0 %v2089
      %2169 = vmatprep.subr.mxu0 %v2092
      %2170 = vmatpush1.msra.mxu0 %v2091
      %2171 = vmatprep.subr.mxu0 %v2094
      %2172 = vmatpush1.msra.mxu0 %v2093
      %2173 = vmatprep.subr.mxu0 %v2096
      %2174 = vmatpush1.msra.mxu0 %v2095
      %2175 = vmatprep.subr.mxu0 %v2098
      %2176 = vmatpush1.msra.mxu0 %v2097
      %2177 = vmatprep.subr.mxu0 %v2100
      %2178 = vmatpush1.msra.mxu0 %v2099
      %2179 = vmatprep.subr.mxu0 %v2102
      %2180 = vmatpush1.msra.mxu0 %v2101
      %2181 = vmatprep.subr.mxu0 %v2104
      %2182 = vmatpush1.msra.mxu0 %v2103
      %2183 = vmatprep.subr.mxu0 %v2106
      %2184 = vmatpush1.msra.mxu0 %v2105
      %2185 = vmatprep.subr.mxu0 %v2108
      %2186 = vmatpush1.msra.mxu0 %v2107
      %2187 = vmatprep.subr.mxu0 %v2110
      %2188 = vmatpush1.msra.mxu0 %v2109
      %2189 = vmatprep.subr.mxu0 %v2112
      %2190 = vmatpush1.msra.mxu0 %v2111
      %2191 = vmatprep.subr.mxu0 %v2114
      %2192 = vmatpush1.msra.mxu0 %v2113
      %2193 = vmatprep.subr.mxu0 %v2116
      %2194 = vmatpush1.msra.mxu0 %v2115
      %2195 = vmatprep.subr.mxu0 %v2118
      %2196 = vmatpush1.msra.mxu0 %v2117
      %2197 = vmatprep.subr.mxu0 %v2120
      %2198 = vmatpush1.msra.mxu0 %v2119
      %2199 = vmatprep.subr.mxu0 %v2122
      %2200 = vmatpush1.msra.mxu0 %v2121
      %2201 = vmatprep.subr.mxu0 %v2124
      %2202 = vmatpush1.msra.mxu0 %v2123
      %2203 = vmatprep.subr.mxu0 %v2126
      %2204 = vmatpush1.msra.mxu0 %v2125
      %2205 = vmatprep.subr.mxu0 %v2128
      %2206 = vmatpush1.msra.mxu0 %v2127
      %2207 = vmatprep.subr.mxu0 %v2130
      %2208 = vmatpush1.msra.mxu0 %v2129
      %2209 = vmatprep.subr.mxu0 %v2132
      %2210 = vmatpush1.msra.mxu0 %v2131
      %2211 = vmatprep.subr.mxu0 %v2134
      %2212 = vmatpush1.msra.mxu0 %v2133
      %2213 = vmatprep.subr.mxu0 %v2136
      %2214 = vmatpush1.msra.mxu0 %v2135
      %2215 = vmatprep.subr.mxu0 %v2138
      %2216 = vmatpush1.msra.mxu0 %v2137
      %2217 = vmatprep.subr.mxu0 %v2140
      %2218 = vmatpush1.msra.mxu0 %v2139
      %2219 = vmatprep.subr.mxu0 %v2142
      %2220 = vmatpush1.msra.mxu0 %v2141
      %2221 = vmatprep.mubr.f32.mxu0 %v2074
      %2222 = vmatmul.mubr.f32.gmra.mrb[0].mxu0 %v2073
      %v2223 = vpop.f32.mrb[0].mxu0
      %v2224 = vadd.f32 0.0, %v2223
      %v2225 = vpop.f32.mrb[0].mxu0
      %v2226 = vadd.f32 0.0, %v2225
      %2227 = vmatprep.mubr.f32.mxu0 %v2077
      %2228 = vmatmul.mubr.f32.gmra.mrb[0].mxu0 %v2076
      %v2229 = vpop.f32.mrb[0].mxu0
      %v2230 = vadd.f32 0.0, %v2229
      %v2231 = vpop.f32.mrb[0].mxu0
      %v2232 = vadd.f32 0.0, %v2231
      %2233 = vdwg.mxu0
      %2234 = vmatprep.subr.mxu0 %v2144
      %2235 = vmatpush1.msra.mxu0 %v2143
      %2236 = vmatprep.subr.mxu0 %v2146
      %2237 = vmatpush1.msra.mxu0 %v2145
      %2238 = vmatprep.subr.mxu0 %v2148
      %2239 = vmatpush1.msra.mxu0 %v2147
      %2240 = vmatprep.subr.mxu0 %v2150
      %2241 = vmatpush1.msra.mxu0 %v2149
      %2242 = vmatprep.subr.mxu0 0.0
      %2243 = vmatpush1.msra.mxu0 0.0
      %2244 = vmatprep.subr.mxu0 0.0
      %2245 = vmatpush1.msra.mxu0 0.0
      %2246 = vmatprep.subr.mxu0 0.0
      %2247 = vmatpush1.msra.mxu0 0.0
      %2248 = vmatprep.subr.mxu0 0.0
      %2249 = vmatpush1.msra.mxu0 0.0
      %2250 = vmatprep.subr.mxu0 0.0
      %2251 = vmatpush1.msra.mxu0 0.0
      %2252 = vmatprep.subr.mxu0 0.0
      %2253 = vmatpush1.msra.mxu0 0.0
      %2254 = vmatprep.subr.mxu0 0.0
      %2255 = vmatpush1.msra.mxu0 0.0
      %2256 = vmatprep.subr.mxu0 0.0
      %2257 = vmatpush1.msra.mxu0 0.0
      %2258 = vmatprep.subr.mxu0 0.0
      %2259 = vmatpush1.msra.mxu0 0.0
      %2260 = vmatprep.subr.mxu0 0.0
      %2261 = vmatpush1.msra.mxu0 0.0
      %2262 = vmatprep.subr.mxu0 0.0
      %2263 = vmatpush1.msra.mxu0 0.0
      %2264 = vmatprep.subr.mxu0 0.0
      %2265 = vmatpush1.msra.mxu0 0.0
      %2266 = vmatprep.subr.mxu0 0.0
      %2267 = vmatpush1.msra.mxu0 0.0
      %2268 = vmatprep.subr.mxu0 0.0
      %2269 = vmatpush1.msra.mxu0 0.0
      %2270 = vmatprep.subr.mxu0 0.0
      %2271 = vmatpush1.msra.mxu0 0.0
      %2272 = vmatprep.subr.mxu0 0.0
      %2273 = vmatpush1.msra.mxu0 0.0
      %2274 = vmatprep.subr.mxu0 0.0
      %2275 = vmatpush1.msra.mxu0 0.0
      %2276 = vmatprep.subr.mxu0 0.0
      %2277 = vmatpush1.msra.mxu0 0.0
      %2278 = vmatprep.subr.mxu0 0.0
      %2279 = vmatpush1.msra.mxu0 0.0
      %2280 = vmatprep.subr.mxu0 0.0
      %2281 = vmatpush1.msra.mxu0 0.0
      %2282 = vmatprep.subr.mxu0 0.0
      %2283 = vmatpush1.msra.mxu0 0.0
      %2284 = vmatprep.subr.mxu0 0.0
      %2285 = vmatpush1.msra.mxu0 0.0
      %2286 = vmatprep.subr.mxu0 0.0
      %2287 = vmatpush1.msra.mxu0 0.0
      %2288 = vmatprep.subr.mxu0 0.0
      %2289 = vmatpush1.msra.mxu0 0.0
      %2290 = vmatprep.subr.mxu0 0.0
      %2291 = vmatpush1.msra.mxu0 0.0
      %2292 = vmatprep.subr.mxu0 0.0
      %2293 = vmatpush1.msra.mxu0 0.0
      %2294 = vmatprep.subr.mxu0 0.0
      %2295 = vmatpush1.msra.mxu0 0.0
      %2296 = vmatprep.subr.mxu0 0.0
      %2297 = vmatpush1.msra.mxu0 0.0
      %2298 = vmatprep.mubr.f32.mxu0 0.0
      %2299 = vmatmul.mubr.f32.gmra.mrb[0].mxu0 %v2152
      %v2300 = vpop.f32.mrb[0].mxu0
      %v2301 = vadd.f32 %v2224, %v2300
      %v2302 = vpop.f32.mrb[0].mxu0
      %v2303 = vadd.f32 %v2226, %v2302
      %2304 = vmatprep.mubr.f32.mxu0 0.0
      %2305 = vmatmul.mubr.f32.gmra.mrb[0].mxu0 %v2155
      %v2306 = vpop.f32.mrb[0].mxu0
      %v2307 = vadd.f32 %v2230, %v2306
      %v2308 = vpop.f32.mrb[0].mxu0
      %v2309 = vadd.f32 %v2232, %v2308
      %2310 = vdwg.mxu0
      %v2311 = vld [vmem:[%s7] sm:$0xff]
      %v2312 = vld [vmem:[%s7 + $0x8] sm:$0xff]
      %2314 = vset.pattern.permute.xlu0 0
      %2315 = vperm.xlu0 %2314, %v2311
      %v2316 = vpop.permute.xlu0 %2315
      %2319 = vset.pattern.permute.xlu0 0
      %2320 = vperm.xlu0 %2319, %v2312
      %v2321 = vpop.permute.xlu0 %2320
      %v2323 = vmul.f32 %v2301, %v2316
      %v2324 = vmul.f32 %v2303, %v2316
      %v2325 = vmul.f32 %v2307, %v2321
      %v2326 = vmul.f32 %v2309, %v2321
      %s2327 = scalar_lea.vmem %s7, 16
      %v2328 = vld [vmem:[%s2327] sm:$0xff]
      %v2329 = vld [vmem:[%s2327 + $0x8] sm:$0xff]
      %2331 = vset.pattern.permute.xlu0 0
      %2332 = vperm.xlu0 %2331, %v2328
      %v2333 = vpop.permute.xlu0 %2332
      %2336 = vset.pattern.permute.xlu0 0
      %2337 = vperm.xlu0 %2336, %v2329
      %v2338 = vpop.permute.xlu0 %2337
      %v2340 = vadd.f32 %v2323, %v2333
      %v2341 = vadd.f32 %v2324, %v2333
      %v2342 = vadd.f32 %v2325, %v2338
      %v2343 = vadd.f32 %v2326, %v2338
      %v2344 = vmax.f32 %v2340, 0.0
      %v2345 = vmax.f32 %v2341, 0.0
      %v2346 = vmax.f32 %v2342, 0.0
      %v2347 = vmax.f32 %v2343, 0.0
      %2352 = vrot.lane.b32.xlu0 %v2344, 17
      %v2353 = vpop.permute.xlu0 %2352
      %2354 = vrot.lane.b32.xlu0 %v2345, 17
      %v2355 = vpop.permute.xlu0 %2354
      %2356 = vrot.lane.b32.xlu0 %v2346, 17
      %v2357 = vpop.permute.xlu0 %2356
      %2358 = vrot.lane.b32.xlu0 %v2347, 17
      %v2359 = vpop.permute.xlu0 %2358
      %v2360 = vsel %vm392, %v2353, %v2355
      %v2361 = vsel %vm392, %v2357, %v2359
      %2368 = vst.msk [vmem:[#allocation2] sm:$0xff] %vm806, %v2353
      %2369 = vst [vmem:[#allocation2 + $0x8] sm:$0xff] %v2360
      %2370 = vst.msk [vmem:[#allocation2 + $0x10] sm:$0xff] %vm392, %v2355
      %2371 = vst.msk [vmem:[#allocation2 + $0x18] sm:$0xff] %vm806, %v2357
      %2372 = vst [vmem:[#allocation2 + $0x20] sm:$0xff] %v2361
      %2373 = vst.msk [vmem:[#allocation2 + $0x28] sm:$0xff] %vm392, %v2359
      %v2374 = vld [vmem:[#allocation2] sm:$0xff]
      %v2375 = vld [vmem:[#allocation2 + $0x8] sm:$0xff]
      %v2376 = vld [vmem:[#allocation2 + $0x18] sm:$0xff]
      %v2377 = vld [vmem:[#allocation2 + $0x20] sm:$0xff]
      %v2378 = vmul.f32 %v2374, %v364
      %v2379 = vmul.f32 %v2375, %v365
      %v2380 = vmul.f32 %v2376, %v364
      %v2381 = vmul.f32 %v2377, %v365
      %2382 = vst [vmem:[#allocation3] sm:$0xff] %v2378
      %2383 = vst [vmem:[#allocation3 + $0x8] sm:$0xff] %v2379
      %2384 = vst [vmem:[#allocation3 + $0x10] sm:$0xff] %v2380
      %2385 = vst [vmem:[#allocation3 + $0x18] sm:$0xff] %v2381
      %v2386 = vld [vmem:[#allocation2] sm:$0xff]
      %v2387 = vld [vmem:[#allocation2 + $0x8] sm:$0xff]
      %v2388 = vld [vmem:[#allocation2 + $0x10] sm:$0xff]
      %v2389 = vld [vmem:[#allocation2 + $0x18] sm:$0xff]
      %v2390 = vld [vmem:[#allocation2 + $0x20] sm:$0xff]
      %v2391 = vld [vmem:[#allocation2 + $0x28] sm:$0xff]
      %2398 = vrot.lane.b32.xlu0 %v2386, 127
      %v2399 = vpop.permute.xlu0 %2398
      %2400 = vrot.lane.b32.xlu0 %v2387, 127
      %v2401 = vpop.permute.xlu0 %2400
      %2402 = vrot.lane.b32.xlu0 %v2388, 127
      %v2403 = vpop.permute.xlu0 %2402
      %2404 = vrot.lane.b32.xlu0 %v2389, 127
      %v2405 = vpop.permute.xlu0 %2404
      %2406 = vrot.lane.b32.xlu0 %v2390, 127
      %v2407 = vpop.permute.xlu0 %2406
      %2408 = vrot.lane.b32.xlu0 %v2391, 127
      %v2409 = vpop.permute.xlu0 %2408
      %v2410 = vsel %vm423, %v2399, %v2401
      %v2411 = vsel %vm423, %v2401, %v2403
      %v2412 = vsel %vm423, %v2405, %v2407
      %v2413 = vsel %vm423, %v2407, %v2409
      %2418 = vst [vmem:[#allocation3 + $0x20] sm:$0xff] %v2410
      %2419 = vst [vmem:[#allocation3 + $0x28] sm:$0xff] %v2411
      %2420 = vst [vmem:[#allocation3 + $0x30] sm:$0xff] %v2412
      %2421 = vst [vmem:[#allocation3 + $0x38] sm:$0xff] %v2413
      %v2422 = vld [vmem:[#allocation2] sm:$0xff]
      %v2423 = vld [vmem:[#allocation2 + $0x8] sm:$0xff]
      %v2424 = vld [vmem:[#allocation2 + $0x10] sm:$0xff]
      %v2425 = vld [vmem:[#allocation2 + $0x18] sm:$0xff]
      %v2426 = vld [vmem:[#allocation2 + $0x20] sm:$0xff]
      %v2427 = vld [vmem:[#allocation2 + $0x28] sm:$0xff]
      %v2428 = vmul.f32 %v2422, %v436
      %v2429 = vmul.f32 %v2423, %v440
      %v2430 = vmul.f32 %v2424, %v438
      %v2431 = vmul.f32 %v2425, %v436
      %v2432 = vmul.f32 %v2426, %v440
      %v2433 = vmul.f32 %v2427, %v438
      %2440 = vrot.lane.b32.xlu0 %v2428, 126
      %v2441 = vpop.permute.xlu0 %2440
      %2442 = vrot.lane.b32.xlu0 %v2429, 126
      %v2443 = vpop.permute.xlu0 %2442
      %2444 = vrot.lane.b32.xlu0 %v2430, 126
      %v2445 = vpop.permute.xlu0 %2444
      %2446 = vrot.lane.b32.xlu0 %v2431, 126
      %v2447 = vpop.permute.xlu0 %2446
      %2448 = vrot.lane.b32.xlu0 %v2432, 126
      %v2449 = vpop.permute.xlu0 %2448
      %2450 = vrot.lane.b32.xlu0 %v2433, 126
      %v2451 = vpop.permute.xlu0 %2450
      %v2452 = vsel %vm459, %v2441, %v2443
      %v2453 = vsel %vm459, %v2443, %v2445
      %v2454 = vsel %vm459, %v2447, %v2449
      %v2455 = vsel %vm459, %v2449, %v2451
      %2460 = vst [vmem:[#allocation3 + $0x40] sm:$0xff] %v2452
      %2461 = vst [vmem:[#allocation3 + $0x48] sm:$0xff] %v2453
      %2462 = vst [vmem:[#allocation3 + $0x50] sm:$0xff] %v2454
      %2463 = vst [vmem:[#allocation3 + $0x58] sm:$0xff] %v2455
      %v2464 = vld [vmem:[#allocation2] sm:$0xff]
      %v2465 = vld [vmem:[#allocation2 + $0x8] sm:$0xff]
      %v2466 = vld [vmem:[#allocation2 + $0x10] sm:$0xff]
      %v2467 = vld [vmem:[#allocation2 + $0x18] sm:$0xff]
      %v2468 = vld [vmem:[#allocation2 + $0x20] sm:$0xff]
      %v2469 = vld [vmem:[#allocation2 + $0x28] sm:$0xff]
      %v2470 = vmul.f32 %v2464, %v474
      %v2471 = vmul.f32 %v2465, %v478
      %v2472 = vmul.f32 %v2466, %v476
      %v2473 = vmul.f32 %v2467, %v474
      %v2474 = vmul.f32 %v2468, %v478
      %v2475 = vmul.f32 %v2469, %v476
      %2482 = vrot.lane.b32.xlu0 %v2470, 112
      %v2483 = vpop.permute.xlu0 %2482
      %2484 = vrot.lane.b32.xlu0 %v2471, 112
      %v2485 = vpop.permute.xlu0 %2484
      %2486 = vrot.lane.b32.xlu0 %v2472, 112
      %v2487 = vpop.permute.xlu0 %2486
      %2488 = vrot.lane.b32.xlu0 %v2473, 112
      %v2489 = vpop.permute.xlu0 %2488
      %2490 = vrot.lane.b32.xlu0 %v2474, 112
      %v2491 = vpop.permute.xlu0 %2490
      %2492 = vrot.lane.b32.xlu0 %v2475, 112
      %v2493 = vpop.permute.xlu0 %2492
      %v2494 = vsel %vm497, %v2483, %v2485
      %v2495 = vsel %vm497, %v2485, %v2487
      %v2496 = vsel %vm497, %v2489, %v2491
      %v2497 = vsel %vm497, %v2491, %v2493
      %2502 = vst [vmem:[#allocation3 + $0x60] sm:$0xff] %v2494
      %2503 = vst [vmem:[#allocation3 + $0x68] sm:$0xff] %v2495
      %2504 = vst [vmem:[#allocation3 + $0x70] sm:$0xff] %v2496
      %2505 = vst [vmem:[#allocation3 + $0x78] sm:$0xff] %v2497
      %v2506 = vld [vmem:[#allocation2] sm:$0xff]
      %v2507 = vld [vmem:[#allocation2 + $0x8] sm:$0xff]
      %v2508 = vld [vmem:[#allocation2 + $0x10] sm:$0xff]
      %v2509 = vld [vmem:[#allocation2 + $0x18] sm:$0xff]
      %v2510 = vld [vmem:[#allocation2 + $0x20] sm:$0xff]
      %v2511 = vld [vmem:[#allocation2 + $0x28] sm:$0xff]
      %2518 = vrot.lane.b32.xlu0 %v2506, 111
      %v2519 = vpop.permute.xlu0 %2518
      %2520 = vrot.lane.b32.xlu0 %v2507, 111
      %v2521 = vpop.permute.xlu0 %2520
      %2522 = vrot.lane.b32.xlu0 %v2508, 111
      %v2523 = vpop.permute.xlu0 %2522
      %2524 = vrot.lane.b32.xlu0 %v2509, 111
      %v2525 = vpop.permute.xlu0 %2524
      %2526 = vrot.lane.b32.xlu0 %v2510, 111
      %v2527 = vpop.permute.xlu0 %2526
      %2528 = vrot.lane.b32.xlu0 %v2511, 111
      %v2529 = vpop.permute.xlu0 %2528
      %v2530 = vsel %vm519, %v2519, %v2521
      %v2531 = vsel %vm519, %v2521, %v2523
      %v2532 = vsel %vm519, %v2525, %v2527
      %v2533 = vsel %vm519, %v2527, %v2529
      %2538 = vst [vmem:[#allocation3 + $0x80] sm:$0xff] %v2530
      %2539 = vst [vmem:[#allocation3 + $0x88] sm:$0xff] %v2531
      %2540 = vst [vmem:[#allocation3 + $0x90] sm:$0xff] %v2532
      %2541 = vst [vmem:[#allocation3 + $0x98] sm:$0xff] %v2533
      %v2542 = vld [vmem:[#allocation2] sm:$0xff]
      %v2543 = vld [vmem:[#allocation2 + $0x8] sm:$0xff]
      %v2544 = vld [vmem:[#allocation2 + $0x10] sm:$0xff]
      %v2545 = vld [vmem:[#allocation2 + $0x18] sm:$0xff]
      %v2546 = vld [vmem:[#allocation2 + $0x20] sm:$0xff]
      %v2547 = vld [vmem:[#allocation2 + $0x28] sm:$0xff]
      %v2548 = vmul.f32 %v2542, %v530
      %v2549 = vmul.f32 %v2543, %v534
      %v2550 = vmul.f32 %v2544, %v532
      %v2551 = vmul.f32 %v2545, %v530
      %v2552 = vmul.f32 %v2546, %v534
      %v2553 = vmul.f32 %v2547, %v532
      %2560 = vrot.lane.b32.xlu0 %v2548, 110
      %v2561 = vpop.permute.xlu0 %2560
      %2562 = vrot.lane.b32.xlu0 %v2549, 110
      %v2563 = vpop.permute.xlu0 %2562
      %2564 = vrot.lane.b32.xlu0 %v2550, 110
      %v2565 = vpop.permute.xlu0 %2564
      %2566 = vrot.lane.b32.xlu0 %v2551, 110
      %v2567 = vpop.permute.xlu0 %2566
      %2568 = vrot.lane.b32.xlu0 %v2552, 110
      %v2569 = vpop.permute.xlu0 %2568
      %2570 = vrot.lane.b32.xlu0 %v2553, 110
      %v2571 = vpop.permute.xlu0 %2570
      %v2572 = vsel %vm553, %v2561, %v2563
      %v2573 = vsel %vm553, %v2563, %v2565
      %v2574 = vsel %vm553, %v2567, %v2569
      %v2575 = vsel %vm553, %v2569, %v2571
      %2580 = vst [vmem:[#allocation3 + $0xa0] sm:$0xff] %v2572
      %2581 = vst [vmem:[#allocation3 + $0xa8] sm:$0xff] %v2573
      %2582 = vst [vmem:[#allocation3 + $0xb0] sm:$0xff] %v2574
      %2583 = vst [vmem:[#allocation3 + $0xb8] sm:$0xff] %v2575
      %v2584 = vld [vmem:[#allocation2] sm:$0xff]
      %v2585 = vld [vmem:[#allocation2 + $0x8] sm:$0xff]
      %v2586 = vld [vmem:[#allocation2 + $0x10] sm:$0xff]
      %v2587 = vld [vmem:[#allocation2 + $0x18] sm:$0xff]
      %v2588 = vld [vmem:[#allocation2 + $0x20] sm:$0xff]
      %v2589 = vld [vmem:[#allocation2 + $0x28] sm:$0xff]
      %v2590 = vmul.f32 %v2584, %v566
      %v2591 = vmul.f32 %v2585, %v570
      %v2592 = vmul.f32 %v2586, %v568
      %v2593 = vmul.f32 %v2587, %v566
      %v2594 = vmul.f32 %v2588, %v570
      %v2595 = vmul.f32 %v2589, %v568
      %2602 = vrot.lane.b32.xlu0 %v2590, 96
      %v2603 = vpop.permute.xlu0 %2602
      %2604 = vrot.lane.b32.xlu0 %v2591, 96
      %v2605 = vpop.permute.xlu0 %2604
      %2606 = vrot.lane.b32.xlu0 %v2592, 96
      %v2607 = vpop.permute.xlu0 %2606
      %2608 = vrot.lane.b32.xlu0 %v2593, 96
      %v2609 = vpop.permute.xlu0 %2608
      %2610 = vrot.lane.b32.xlu0 %v2594, 96
      %v2611 = vpop.permute.xlu0 %2610
      %2612 = vrot.lane.b32.xlu0 %v2595, 96
      %v2613 = vpop.permute.xlu0 %2612
      %v2614 = vsel %vm589, %v2603, %v2605
      %v2615 = vsel %vm589, %v2605, %v2607
      %v2616 = vsel %vm589, %v2609, %v2611
      %v2617 = vsel %vm589, %v2611, %v2613
      %2622 = vst [vmem:[#allocation3 + $0xc0] sm:$0xff] %v2614
      %2623 = vst [vmem:[#allocation3 + $0xc8] sm:$0xff] %v2615
      %2624 = vst [vmem:[#allocation3 + $0xd0] sm:$0xff] %v2616
      %2625 = vst [vmem:[#allocation3 + $0xd8] sm:$0xff] %v2617
      %v2626 = vld [vmem:[#allocation2] sm:$0xff]
      %v2627 = vld [vmem:[#allocation2 + $0x8] sm:$0xff]
      %v2628 = vld [vmem:[#allocation2 + $0x10] sm:$0xff]
      %v2629 = vld [vmem:[#allocation2 + $0x18] sm:$0xff]
      %v2630 = vld [vmem:[#allocation2 + $0x20] sm:$0xff]
      %v2631 = vld [vmem:[#allocation2 + $0x28] sm:$0xff]
      %2638 = vrot.lane.b32.xlu0 %v2626, 95
      %v2639 = vpop.permute.xlu0 %2638
      %2640 = vrot.lane.b32.xlu0 %v2627, 95
      %v2641 = vpop.permute.xlu0 %2640
      %2642 = vrot.lane.b32.xlu0 %v2628, 95
      %v2643 = vpop.permute.xlu0 %2642
      %2644 = vrot.lane.b32.xlu0 %v2629, 95
      %v2645 = vpop.permute.xlu0 %2644
      %2646 = vrot.lane.b32.xlu0 %v2630, 95
      %v2647 = vpop.permute.xlu0 %2646
      %2648 = vrot.lane.b32.xlu0 %v2631, 95
      %v2649 = vpop.permute.xlu0 %2648
      %v2650 = vsel %vm611, %v2639, %v2641
      %v2651 = vsel %vm611, %v2641, %v2643
      %v2652 = vsel %vm611, %v2645, %v2647
      %v2653 = vsel %vm611, %v2647, %v2649
      %2658 = vst [vmem:[#allocation3 + $0xe0] sm:$0xff] %v2650
      %2659 = vst [vmem:[#allocation3 + $0xe8] sm:$0xff] %v2651
      %2660 = vst [vmem:[#allocation3 + $0xf0] sm:$0xff] %v2652
      %2661 = vst [vmem:[#allocation3 + $0xf8] sm:$0xff] %v2653
      %v2662 = vld [vmem:[#allocation2] sm:$0xff]
      %v2663 = vld [vmem:[#allocation2 + $0x8] sm:$0xff]
      %v2664 = vld [vmem:[#allocation2 + $0x10] sm:$0xff]
      %v2665 = vld [vmem:[#allocation2 + $0x18] sm:$0xff]
      %v2666 = vld [vmem:[#allocation2 + $0x20] sm:$0xff]
      %v2667 = vld [vmem:[#allocation2 + $0x28] sm:$0xff]
      %v2668 = vmul.f32 %v2662, %v622
      %v2669 = vmul.f32 %v2663, %v625
      %v2670 = vmul.f32 %v2664, %v624
      %v2671 = vmul.f32 %v2665, %v622
      %v2672 = vmul.f32 %v2666, %v625
      %v2673 = vmul.f32 %v2667, %v624
      %2680 = vrot.lane.b32.xlu0 %v2668, 94
      %v2681 = vpop.permute.xlu0 %2680
      %2682 = vrot.lane.b32.xlu0 %v2669, 94
      %v2683 = vpop.permute.xlu0 %2682
      %2684 = vrot.lane.b32.xlu0 %v2670, 94
      %v2685 = vpop.permute.xlu0 %2684
      %2686 = vrot.lane.b32.xlu0 %v2671, 94
      %v2687 = vpop.permute.xlu0 %2686
      %2688 = vrot.lane.b32.xlu0 %v2672, 94
      %v2689 = vpop.permute.xlu0 %2688
      %2690 = vrot.lane.b32.xlu0 %v2673, 94
      %v2691 = vpop.permute.xlu0 %2690
      %v2692 = vsel %vm641, %v2681, %v2683
      %v2693 = vsel %vm641, %v2683, %v2685
      %v2694 = vsel %vm641, %v2687, %v2689
      %v2695 = vsel %vm641, %v2689, %v2691
      %2700 = vst [vmem:[#allocation3 + $0x100] sm:$0xff] %v2692
      %2701 = vst [vmem:[#allocation3 + $0x108] sm:$0xff] %v2693
      %2702 = vst [vmem:[#allocation3 + $0x110] sm:$0xff] %v2694
      %2703 = vst [vmem:[#allocation3 + $0x118] sm:$0xff] %v2695
      %v2704 = vld [vmem:[%s4] sm:$0x77]
      %v2705 = vld [vmem:[#allocation3] sm:$0xff]
      %v2706 = vld [vmem:[#allocation3 + $0x8] sm:$0xff]
      %v2707 = vld [vmem:[#allocation3 + $0x10] sm:$0xff]
      %v2708 = vld [vmem:[#allocation3 + $0x18] sm:$0xff]
      %v2709 = vld [vmem:[#allocation3 + $0x20] sm:$0xff]
      %v2710 = vld [vmem:[#allocation3 + $0x28] sm:$0xff]
      %v2711 = vld [vmem:[#allocation3 + $0x30] sm:$0xff]
      %v2712 = vld [vmem:[#allocation3 + $0x38] sm:$0xff]
      %v2713 = vld [vmem:[#allocation3 + $0x40] sm:$0xff]
      %v2714 = vld [vmem:[#allocation3 + $0x48] sm:$0xff]
      %v2715 = vld [vmem:[#allocation3 + $0x50] sm:$0xff]
      %v2716 = vld [vmem:[#allocation3 + $0x58] sm:$0xff]
      %v2717 = vld [vmem:[#allocation3 + $0x60] sm:$0xff]
      %v2718 = vld [vmem:[#allocation3 + $0x68] sm:$0xff]
      %v2719 = vld [vmem:[#allocation3 + $0x70] sm:$0xff]
      %v2720 = vld [vmem:[#allocation3 + $0x78] sm:$0xff]
      %v2721 = vld [vmem:[#allocation3 + $0x80] sm:$0xff]
      %v2722 = vld [vmem:[#allocation3 + $0x88] sm:$0xff]
      %v2723 = vld [vmem:[#allocation3 + $0x90] sm:$0xff]
      %v2724 = vld [vmem:[#allocation3 + $0x98] sm:$0xff]
      %v2725 = vld [vmem:[#allocation3 + $0xa0] sm:$0xff]
      %v2726 = vld [vmem:[#allocation3 + $0xa8] sm:$0xff]
      %v2727 = vld [vmem:[#allocation3 + $0xb0] sm:$0xff]
      %v2728 = vld [vmem:[#allocation3 + $0xb8] sm:$0xff]
      %v2729 = vld [vmem:[#allocation3 + $0xc0] sm:$0xff]
      %v2730 = vld [vmem:[#allocation3 + $0xc8] sm:$0xff]
      %v2731 = vld [vmem:[#allocation3 + $0xd0] sm:$0xff]
      %v2732 = vld [vmem:[#allocation3 + $0xd8] sm:$0xff]
      %v2733 = vld [vmem:[#allocation3 + $0xe0] sm:$0xff]
      %v2734 = vld [vmem:[#allocation3 + $0xe8] sm:$0xff]
      %v2735 = vld [vmem:[#allocation3 + $0xf0] sm:$0xff]
      %v2736 = vld [vmem:[#allocation3 + $0xf8] sm:$0xff]
      %v2737 = vld [vmem:[#allocation3 + $0x100] sm:$0xff]
      %v2738 = vld [vmem:[#allocation3 + $0x108] sm:$0xff]
      %v2739 = vld [vmem:[#allocation3 + $0x110] sm:$0xff]
      %v2740 = vld [vmem:[#allocation3 + $0x118] sm:$0xff]
      %v2742 = vcombine.high %v2704, %v2704
      %v2743 = vsel %vm477, %v2742, 0
      %2745 = vmatprep.subr.mxu0 %v2706
      %2746 = vmatpush1.msra.mxu0 %v2705
      %2747 = vmatprep.subr.mxu0 %v2708
      %2748 = vmatpush1.msra.mxu0 %v2707
      %2749 = vmatprep.subr.mxu0 %v2710
      %2750 = vmatpush1.msra.mxu0 %v2709
      %2751 = vmatprep.subr.mxu0 %v2712
      %2752 = vmatpush1.msra.mxu0 %v2711
      %2753 = vmatprep.subr.mxu0 %v2714
      %2754 = vmatpush1.msra.mxu0 %v2713
      %2755 = vmatprep.subr.mxu0 %v2716
      %2756 = vmatpush1.msra.mxu0 %v2715
      %2757 = vmatprep.subr.mxu0 %v2718
      %2758 = vmatpush1.msra.mxu0 %v2717
      %2759 = vmatprep.subr.mxu0 %v2720
      %2760 = vmatpush1.msra.mxu0 %v2719
      %2761 = vmatprep.subr.mxu0 %v2722
      %2762 = vmatpush1.msra.mxu0 %v2721
      %2763 = vmatprep.subr.mxu0 %v2724
      %2764 = vmatpush1.msra.mxu0 %v2723
      %2765 = vmatprep.subr.mxu0 %v2726
      %2766 = vmatpush1.msra.mxu0 %v2725
      %2767 = vmatprep.subr.mxu0 %v2728
      %2768 = vmatpush1.msra.mxu0 %v2727
      %2769 = vmatprep.subr.mxu0 %v2730
      %2770 = vmatpush1.msra.mxu0 %v2729
      %2771 = vmatprep.subr.mxu0 %v2732
      %2772 = vmatpush1.msra.mxu0 %v2731
      %2773 = vmatprep.subr.mxu0 %v2734
      %2774 = vmatpush1.msra.mxu0 %v2733
      %2775 = vmatprep.subr.mxu0 %v2736
      %2776 = vmatpush1.msra.mxu0 %v2735
      %2777 = vmatprep.subr.mxu0 %v2738
      %2778 = vmatpush1.msra.mxu0 %v2737
      %2779 = vmatprep.subr.mxu0 %v2740
      %2780 = vmatpush1.msra.mxu0 %v2739
      %2781 = vmatprep.subr.mxu0 0.0
      %2782 = vmatpush1.msra.mxu0 0.0
      %2783 = vmatprep.subr.mxu0 0.0
      %2784 = vmatpush1.msra.mxu0 0.0
      %2785 = vmatprep.subr.mxu0 0.0
      %2786 = vmatpush1.msra.mxu0 0.0
      %2787 = vmatprep.subr.mxu0 0.0
      %2788 = vmatpush1.msra.mxu0 0.0
      %2789 = vmatprep.subr.mxu0 0.0
      %2790 = vmatpush1.msra.mxu0 0.0
      %2791 = vmatprep.subr.mxu0 0.0
      %2792 = vmatpush1.msra.mxu0 0.0
      %2793 = vmatprep.subr.mxu0 0.0
      %2794 = vmatpush1.msra.mxu0 0.0
      %2795 = vmatprep.subr.mxu0 0.0
      %2796 = vmatpush1.msra.mxu0 0.0
      %2797 = vmatprep.subr.mxu0 0.0
      %2798 = vmatpush1.msra.mxu0 0.0
      %2799 = vmatprep.subr.mxu0 0.0
      %2800 = vmatpush1.msra.mxu0 0.0
      %2801 = vmatprep.subr.mxu0 0.0
      %2802 = vmatpush1.msra.mxu0 0.0
      %2803 = vmatprep.subr.mxu0 0.0
      %2804 = vmatpush1.msra.mxu0 0.0
      %2805 = vmatprep.subr.mxu0 0.0
      %2806 = vmatpush1.msra.mxu0 0.0
      %2807 = vmatprep.subr.mxu0 0.0
      %2808 = vmatpush1.msra.mxu0 0.0
      %2809 = vmatprep.mubr.f32.mxu0 %v2743
      %2810 = vmatmul.mubr.f32.gmra.mrb[0].mxu0 %v2704
      %v2811 = vpop.f32.mrb[0].mxu0
      %v2812 = vadd.f32 0.0, %v2811
      %v2813 = vpop.f32.mrb[0].mxu0
      %v2814 = vadd.f32 0.0, %v2813
      %2815 = vdwg.mxu0
      %v2816 = vld [vmem:[%s8] sm:$0x7]
      %2818 = vset.pattern.permute.xlu0 0
      %2819 = vperm.xlu0 %2818, %v2816
      %v2820 = vpop.permute.xlu0 %2819
      %v2822 = vmul.f32 %v2812, %v2820
      %v2823 = vmul.f32 %v2814, %v2820
      %s2824 = scalar_lea.vmem %s8, 4
      %v2825 = vld [vmem:[%s2824] sm:$0x7]
      %2827 = vset.pattern.permute.xlu0 0
      %2828 = vperm.xlu0 %2827, %v2825
      %v2829 = vpop.permute.xlu0 %2828
      %v2831 = vadd.f32 %v2822, %v2829
      %v2832 = vadd.f32 %v2823, %v2829
      %v2833 = vxor.u32 %v2831, 2147483648
      %v2834 = vxor.u32 %v2832, 2147483648
      %v2835 = vmul.f32 %v2833, 1.442695
      %v2836 = vpow.pop %v2835
      %v2837 = vmul.f32 %v2834, 1.442695
      %v2838 = vpow.pop %v2837
      %v2839 = vadd.f32 %v2836, 1.0
      %v2840 = vadd.f32 %v2838, 1.0
      %v2841 = vrcp.pop %v2839
      %v2842 = vmul.f32 1.0, %v2841
      %v2843 = vrcp.pop %v2840
      %v2844 = vmul.f32 1.0, %v2843
      %v2847 = vcombine.low %v2842, %v2844
      %2849 = vst [vmem:[%s332] sm:$0x77] %v2847
      %p2850 = scmp.lt.s32.totalorder %s20, 1
      %s2851 = scalar_select %p2850, %s20, 1
      %s2852 = smul.addr %s2851, 2
      %s2853 = smul.addr %s2852, 4
      %s2854 = scalar_lea.vmem %s9, %s2853
      // Predicated region
      $region57: #{cnnnet_forward.1} parent=55 // pred_check
        %p2855 = pneg %p232
      $region58: #{cnnnet_forward.1} parent=55 // pred_check_branch
        %2857 = sbr.rel (%p2855) target = $region60
      $region59: #{cnnnet_forward.1} parent=55 // pred_region
        _
      $region60: #{cnnnet_forward.1} parent=55 // pred_fallthru
        _
    $region56: #{cnnnet_forward.1} parent=5 // pred_fallthru
      _
    %p2858 = scmp.le.s32.totalorder 2, %s15
    // Predicated region
    $region61: #{cnnnet_forward.1} parent=5 // pred_check
      %p2859 = pneg %p2858
    $region62: #{cnnnet_forward.1} parent=5 // pred_check_branch
      %2861 = sbr.rel (%p2859) target = $region64
    $region63: #{cnnnet_forward.1} parent=5 // pred_region
      %s2862 = ssub.s32 %s15, 2
      // Predicated region
      $region65: #{cnnnet_forward.1} parent=63 // pred_check
        %p2863 = pneg %p238
      $region66: #{cnnnet_forward.1} parent=63 // pred_check_branch
        %2865 = sbr.rel (%p2863) target = $region68
      $region67: #{cnnnet_forward.1} parent=63 // pred_region
        %p2866 = scmp.lt.s32.totalorder %s21, 1
        %s2867 = scalar_select %p2866, %s21, 1
        %s2868 = smul.addr %s2867, 2
        %s2869 = smul.addr %s2868, 4
        %s2870 = scalar_lea.vmem %s9, %s2869
      $region68: #{cnnnet_forward.1} parent=63 // pred_fallthru
        _
    $region64: #{cnnnet_forward.1} parent=5 // pred_fallthru
      _
  $region6: #{cnnnet_forward.1} parent=0 // loop_footer
    %s19 = sadd.s32 1, %s15
  $region7: #{cnnnet_forward.1} parent=0 // loop_footer_branch
    %14 = sbr.rel target = $region3
  $region8: #{cnnnet_forward.1} parent=0 // loop_exit
    _

</llo_original>
